<compile_context>
chip_gen: v6e
topology: v6e:2x2x1
jax: 0.10.0
libtpu: 0.0.40
codegen_flags: <defaults>
</compile_context>

<pallas_src>
import functools

import jax
import jax.numpy as jnp
import numpy as np
from jax.experimental import pallas as pl
from jax.experimental.pallas import tpu as pltpu

BN_EPS = 1e-5
C = 16  # per-layer channel width


# ----------------------------- fused DenseBlock kernel -----------------------------

def dense_block_kernel(x_ref, wx_ref, wc1_ref, wc2_ref, m_ref, g_ref, be_ref,
                       o_ref, *, wpad, n_valid):
    """Fused DenseBlock forward in transposed (channel-on-sublane) layout.

    x_ref   : (16, L)  f32   input x at output-aligned lanes n*Hp*Wp + h*Wp + w.
    wx_ref  : (48, 144) bf16 [conv1 | conv2 x-part | conv3 x-part]; rows=cout,
                             cols=(dy*3+dx)*16 + cin.
    wc1_ref : (32, 144) bf16 [conv2 c1-part | conv3 c1-part].
    wc2_ref : (16, 144) bf16 [conv3 c2-part].
    m_ref   : (5, L)   f32   lane masks: [valid, wp==0, wp==Wp-1, hp==0, hp==Hp-1].
    g_ref   : (48, 1)  f32   BN gamma (conv1..3 channels stacked on rows).
    be_ref  : (48, 1)  f32   BN beta.
    o_ref   : (64, L)  f32   rows = [x | conv1 | conv2 | conv3] channels.
    """
    L = x_ref.shape[1]
    inv_n = 1.0 / float(n_valid)

    m_valid = m_ref[0:1, :]
    m_left = m_ref[1:2, :] > 0.5
    m_right = m_ref[2:3, :] > 0.5
    m_top = m_ref[3:4, :] > 0.5
    m_bot = m_ref[4:5, :] > 0.5

    def shift(v, s):
        # y[:, i] = v[:, (i + s) % L]  — pure lane rotation (== pltpu.roll(v, -s, axis=-1)).
        s = s % L
        if s == 0:
            return v
        return jnp.concatenate([v[:, s:], v[:, :s]], axis=-1)

    def reflect_pad(y):
        # y: (16, L) at output alignment -> reflection-padded map at padded alignment.
        # Wrap-around lanes only ever land in border / invalid lanes (overwritten / unread).
        p = shift(y, -(wpad + 1))                     # interior: P[hp,wp] = y[hp-1, wp-1]
        p = jnp.where(m_left, shift(p, 2), p)         # wp = 0     <- wp = 2
        p = jnp.where(m_right, shift(p, -2), p)       # wp = Wp-1  <- wp = Wp-3
        p = jnp.where(m_top, shift(p, 2 * wpad), p)   # hp = 0     <- hp = 2
        p = jnp.where(m_bot, shift(p, -2 * wpad), p)  # hp = Hp-1  <- hp = Hp-3
        return p

    def taps(pmap_f32):
        # 9 lane-shifted views of the padded map stacked on sublanes -> (144, L) bf16.
        # This replaces the old strided-slice + 9-way lane concat im2col entirely.
        pmap = pmap_f32.astype(jnp.bfloat16)
        return jnp.concatenate(
            [shift(pmap, dy * wpad + dx) for dy in range(3) for dx in range(3)],
            axis=0)

    def bn_relu(pre, layer):
        # Training-mode BatchNorm (biased variance) + ReLU, single-pass stats, all f32.
        # Conv bias omitted: exactly cancelled by the mean subtraction.
        g = g_ref[layer * C:(layer + 1) * C, :]
        b = be_ref[layer * C:(layer + 1) * C, :]
        pm = pre * m_valid                            # zero out pad / garbage lanes
        s = jnp.sum(pm, axis=1, keepdims=True)
        ss = jnp.sum(pm * pm, axis=1, keepdims=True)
        mean = s * inv_n
        var = jnp.maximum(ss * inv_n - mean * mean, 0.0)
        y = (pre - mean) * jax.lax.rsqrt(var + BN_EPS) * g + b
        return jnp.maximum(y, 0.0)

    x = x_ref[...]
    o_ref[0:C, :] = x                                 # exact f32 pass-through, lane-dense

    # x-part contributions of conv1/2/3: one K=144 MXU matmul.
    px = jnp.dot(wx_ref[...], taps(reflect_pad(x)),
                 preferred_element_type=jnp.float32)  # (48, L)

    y1 = bn_relu(px[0:C, :], 0)
    o_ref[C:2 * C, :] = y1

    # c1-part contributions of conv2/3.
    pc1 = jnp.dot(wc1_ref[...], taps(reflect_pad(y1)),
                  preferred_element_type=jnp.float32)  # (32, L)

    y2 = bn_relu(px[C:2 * C, :] + pc1[0:C, :], 1)
    o_ref[2 * C:3 * C, :] = y2

    # c2-part contribution of conv3.
    pc2 = jnp.dot(wc2_ref[...], taps(reflect_pad(y2)),
                  preferred_element_type=jnp.float32)  # (16, L)

    y3 = bn_relu(px[2 * C:3 * C, :] + pc1[C:2 * C, :] + pc2, 2)
    o_ref[3 * C:4 * C, :] = y3


# ----------------------------------- wrapper -----------------------------------

def _lhs_block(w_part):
    # (3,3,16,16) HWIO -> (16, 144) matmul LHS: rows = cout, cols = (dy*3+dx)*16 + cin.
    return jnp.transpose(w_part, (3, 0, 1, 2)).reshape(C, 9 * C)


def _lane_masks(n, h, w, lanes):
    hp, wp = h + 2, w + 2
    l = np.arange(lanes)
    q = l % (hp * wp)
    row = q // wp
    col = q % wp
    valid = (l < n * hp * wp) & (row < h) & (col < w)
    m = np.stack([valid, col == 0, col == wp - 1, row == 0, row == hp - 1])
    return jnp.asarray(m.astype(np.float32))


def dense_block_forward(x_nchw, params):
    """DenseBlock forward. x_nchw: (N, 16, H, W) f32 -> (N, 64, H, W) f32."""
    N, Cin, H, W = x_nchw.shape
    assert Cin == C, "DenseBlock expects 16 input channels"
    assert H >= 2 and W >= 2, "ReflectionPad2d(1) needs H, W >= 2"
    Hp, Wp = H + 2, W + 2
    L = ((N * Hp * Wp + 127) // 128) * 128

    # Place x at output-aligned lanes n*Hp*Wp + h*Wp + w (zeros elsewhere): pure layout.
    xz = jnp.pad(x_nchw, ((0, 0), (0, 0), (0, 2), (0, 2)))
    x_t = jnp.transpose(xz, (1, 0, 2, 3)).reshape(C, N * Hp * Wp)
    x_t = jnp.pad(x_t, ((0, 0), (0, L - N * Hp * Wp)))

    w1, _b1, g1, be1 = params["conv1"]    # (3,3,16,16); biases unused (cancelled by BN)
    w2, _b2, g2, be2 = params["conv2"]    # (3,3,32,16)
    w3, _b3, g3, be3 = params["conv3"]    # (3,3,48,16)

    wx = jnp.concatenate([_lhs_block(w1),
                          _lhs_block(w2[:, :, 0:C, :]),
                          _lhs_block(w3[:, :, 0:C, :])], axis=0).astype(jnp.bfloat16)
    wc1 = jnp.concatenate([_lhs_block(w2[:, :, C:2 * C, :]),
                           _lhs_block(w3[:, :, C:2 * C, :])], axis=0).astype(jnp.bfloat16)
    wc2 = _lhs_block(w3[:, :, 2 * C:3 * C, :]).astype(jnp.bfloat16)

    g_all = jnp.concatenate([g1, g2, g3]).reshape(3 * C, 1)
    be_all = jnp.concatenate([be1, be2, be3]).reshape(3 * C, 1)
    masks = _lane_masks(N, H, W, L)

    out_t = pl.pallas_call(
        functools.partial(dense_block_kernel, wpad=Wp, n_valid=N * H * W),
        out_shape=jax.ShapeDtypeStruct((4 * C, L), jnp.float32),
        grid=(1,),
        in_specs=[
            pl.BlockSpec((C, L), lambda i: (0, 0)),
            pl.BlockSpec((3 * C, 9 * C), lambda i: (0, 0)),
            pl.BlockSpec((2 * C, 9 * C), lambda i: (0, 0)),
            pl.BlockSpec((C, 9 * C), lambda i: (0, 0)),
            pl.BlockSpec((5, L), lambda i: (0, 0)),
            pl.BlockSpec((3 * C, 1), lambda i: (0, 0)),
            pl.BlockSpec((3 * C, 1), lambda i: (0, 0)),
        ],
        out_specs=pl.BlockSpec((4 * C, L), lambda i: (0, 0)),
        compiler_params=pltpu.CompilerParams(
            dimension_semantics=("arbitrary",)),
    )(x_t, wx, wc1, wc2, masks, g_all, be_all)

    # (64, L) padded-flat-spatial -> (N, 64, H, W); layout plumbing outside the kernel.
    out = out_t[:, :N * Hp * Wp].reshape(4 * C, N, Hp, Wp)[:, :, :H, :W]
    return jnp.transpose(out, (1, 0, 2, 3))


# ----------------------- parameter init (deterministic) -----------------------

def init_convlayer_params(key, cin, cout):
    k1, k2, k3, k4 = jax.random.split(key, 4)
    w = jax.random.normal(k1, (3, 3, cin, cout), jnp.float32) / jnp.sqrt(9.0 * cin)
    b = 0.1 * jax.random.normal(k2, (cout,), jnp.float32)
    gamma = 1.0 + 0.1 * jax.random.normal(k3, (cout,), jnp.float32)
    beta = 0.1 * jax.random.normal(k4, (cout,), jnp.float32)
    return (w, b, gamma, beta)


def init_dense_block_params(key):
    k1, k2, k3 = jax.random.split(key, 3)
    return {
        "conv1": init_convlayer_params(k1, 16, 16),
        "conv2": init_convlayer_params(k2, 32, 16),
        "conv3": init_convlayer_params(k3, 48, 16),
    }


# ------------------------------ pure-JAX reference ------------------------------
# Matches the kernel's matmul precision (bf16 inputs, f32 accumulation); BN/ReLU in f32.
# The reference keeps the conv bias; the kernel drops it (cancelled by BN mean subtraction).

def ref_convlayer(x_nhwc, w, b, gamma, beta):
    xp = jnp.pad(x_nhwc, ((0, 0), (1, 1), (1, 1), (0, 0)), mode="reflect")
    y = jax.lax.conv_general_dilated(
        xp.astype(jnp.bfloat16), w.astype(jnp.bfloat16),
        window_strides=(1, 1), padding="VALID",
        dimension_numbers=("NHWC", "HWIO", "NHWC"),
        preferred_element_type=jnp.float32) + b
    mean = jnp.mean(y, axis=(0, 1, 2), keepdims=True)
    var = jnp.mean((y - mean) ** 2, axis=(0, 1, 2), keepdims=True)
    y = (y - mean) * jax.lax.rsqrt(var + BN_EPS) * gamma + beta
    return jnp.maximum(y, 0.0)


def ref_dense_block(x_nchw, params):
    x = jnp.transpose(x_nchw, (0, 2, 3, 1))
    c1 = ref_convlayer(x, *params["conv1"])
    c2 = ref_convlayer(jnp.concatenate([x, c1], axis=-1), *params["conv2"])
    c3 = ref_convlayer(jnp.concatenate([x, c1, c2], axis=-1), *params["conv3"])
    out = jnp.concatenate([x, c1, c2, c3], axis=-1)
    return jnp.transpose(out, (0, 3, 1, 2))


# ------------------------------------ main ------------------------------------

if __name__ == "__main__":
    key = jax.random.PRNGKey(0)
    kx, kp = jax.random.split(key)

    N, Cin, H, W = 2, 16, 16, 16
    x = jax.random.normal(kx, (N, Cin, H, W), jnp.float32)             # NCHW input
    params = init_dense_block_params(kp)

    out = jax.jit(dense_block_forward)(x, params)
    out = jax.block_until_ready(out)
    assert out.shape == (N, 64, H, W), out.shape

    ref = ref_dense_block(x, params)
    max_err = float(jnp.max(jnp.abs(out - ref)))
    assert jnp.allclose(out, ref, atol=2e-2, rtol=2e-2), max_err

    print("KERNEL_OK")
</pallas_src>

<mosaic_0001>
module attributes {stable_mosaic.version = 11 : i64} {
  func.func @dense_block_kernel(%arg0: i32, %arg1: memref<16x768xf32, #tpu.memory_space<vmem>>, %arg2: memref<48x144xbf16, #tpu.memory_space<vmem>>, %arg3: memref<32x144xbf16, #tpu.memory_space<vmem>>, %arg4: memref<16x144xbf16, #tpu.memory_space<vmem>>, %arg5: memref<5x768xf32, #tpu.memory_space<vmem>>, %arg6: memref<48x1xf32, #tpu.memory_space<vmem>>, %arg7: memref<48x1xf32, #tpu.memory_space<vmem>>, %arg8: memref<64x768xf32, #tpu.memory_space<vmem>>) attributes {dimension_semantics = [#tpu.dimension_semantics<arbitrary>], iteration_bounds = array<i64: 1>, scalar_prefetch = 0 : i64, scratch_operands = 0 : i64, tpu.core_type = #tpu.core_type<tc>, window_params = [{pipeline_mode = #tpu.pipeline_mode<synchronous>, transform_indices = @transform_0, window_bounds = array<i64: 16, 768>}, {pipeline_mode = #tpu.pipeline_mode<synchronous>, transform_indices = @transform_1, window_bounds = array<i64: 48, 144>}, {pipeline_mode = #tpu.pipeline_mode<synchronous>, transform_indices = @transform_2, window_bounds = array<i64: 32, 144>}, {pipeline_mode = #tpu.pipeline_mode<synchronous>, transform_indices = @transform_3, window_bounds = array<i64: 16, 144>}, {pipeline_mode = #tpu.pipeline_mode<synchronous>, transform_indices = @transform_4, window_bounds = array<i64: 5, 768>}, {pipeline_mode = #tpu.pipeline_mode<synchronous>, transform_indices = @transform_5, window_bounds = array<i64: 48, 1>}, {pipeline_mode = #tpu.pipeline_mode<synchronous>, transform_indices = @transform_6, window_bounds = array<i64: 48, 1>}, {pipeline_mode = #tpu.pipeline_mode<synchronous>, transform_indices = @transform_7, window_bounds = array<i64: 64, 768>}]} {
    %c0 = arith.constant 0 : index
    %c0_0 = arith.constant 0 : index
    %0 = vector.load %arg5[%c0, %c0_0] : memref<5x768xf32, #tpu.memory_space<vmem>>, vector<1x768xf32>
    %c1 = arith.constant 1 : index
    %c0_1 = arith.constant 0 : index
    %1 = vector.load %arg5[%c1, %c0_1] : memref<5x768xf32, #tpu.memory_space<vmem>>, vector<1x768xf32>
    %cst = arith.constant 5.000000e-01 : f32
    %2 = vector.broadcast %cst : f32 to vector<1x768xf32>
    %3 = arith.cmpf ogt, %1, %2 : vector<1x768xf32>
    %c2 = arith.constant 2 : index
    %c0_2 = arith.constant 0 : index
    %4 = vector.load %arg5[%c2, %c0_2] : memref<5x768xf32, #tpu.memory_space<vmem>>, vector<1x768xf32>
    %cst_3 = arith.constant 5.000000e-01 : f32
    %5 = vector.broadcast %cst_3 : f32 to vector<1x768xf32>
    %6 = arith.cmpf ogt, %4, %5 : vector<1x768xf32>
    %c3 = arith.constant 3 : index
    %c0_4 = arith.constant 0 : index
    %7 = vector.load %arg5[%c3, %c0_4] : memref<5x768xf32, #tpu.memory_space<vmem>>, vector<1x768xf32>
    %cst_5 = arith.constant 5.000000e-01 : f32
    %8 = vector.broadcast %cst_5 : f32 to vector<1x768xf32>
    %9 = arith.cmpf ogt, %7, %8 : vector<1x768xf32>
    %c4 = arith.constant 4 : index
    %c0_6 = arith.constant 0 : index
    %10 = vector.load %arg5[%c4, %c0_6] : memref<5x768xf32, #tpu.memory_space<vmem>>, vector<1x768xf32>
    %cst_7 = arith.constant 5.000000e-01 : f32
    %11 = vector.broadcast %cst_7 : f32 to vector<1x768xf32>
    %12 = arith.cmpf ogt, %10, %11 : vector<1x768xf32>
    %c0_8 = arith.constant 0 : index
    %c0_9 = arith.constant 0 : index
    %13 = vector.load %arg1[%c0_8, %c0_9] : memref<16x768xf32, #tpu.memory_space<vmem>>, vector<16x768xf32>
    %c0_10 = arith.constant 0 : index
    %c0_11 = arith.constant 0 : index
    %14 = vector.load %arg8[%c0_10, %c0_11] : memref<64x768xf32, #tpu.memory_space<vmem>>, vector<16x768xf32>
    tpu.vector_store %arg8[%c0_10, %c0_11], %13 {strides = array<i32>} : memref<64x768xf32, #tpu.memory_space<vmem>>, vector<16x768xf32>,
    %c0_12 = arith.constant 0 : index
    %c0_13 = arith.constant 0 : index
    %15 = vector.load %arg2[%c0_12, %c0_13] : memref<48x144xbf16, #tpu.memory_space<vmem>>, vector<48x144xbf16>
    %16 = vector.extract_strided_slice %13 {offsets = [0, 749], sizes = [16, 19], strides = [1, 1]} : vector<16x768xf32> to vector<16x19xf32>
    %17 = vector.extract_strided_slice %13 {offsets = [0, 0], sizes = [16, 749], strides = [1, 1]} : vector<16x768xf32> to vector<16x749xf32>
    %18 = tpu.concatenate %16, %17 in 1 : vector<16x19xf32>, vector<16x749xf32> -> vector<16x768xf32>
    %19 = vector.extract_strided_slice %18 {offsets = [0, 2], sizes = [16, 766], strides = [1, 1]} : vector<16x768xf32> to vector<16x766xf32>
    %20 = vector.extract_strided_slice %18 {offsets = [0, 0], sizes = [16, 2], strides = [1, 1]} : vector<16x768xf32> to vector<16x2xf32>
    %21 = tpu.concatenate %19, %20 in 1 : vector<16x766xf32>, vector<16x2xf32> -> vector<16x768xf32>
    %22 = vector.shape_cast %3 : vector<1x768xi1> to vector<1x768xi1>
    %23 = vector.broadcast %22 : vector<1x768xi1> to vector<16x768xi1>
    %24 = arith.select %23, %21, %18 : vector<16x768xi1>, vector<16x768xf32>
    %25 = vector.extract_strided_slice %24 {offsets = [0, 766], sizes = [16, 2], strides = [1, 1]} : vector<16x768xf32> to vector<16x2xf32>
    %26 = vector.extract_strided_slice %24 {offsets = [0, 0], sizes = [16, 766], strides = [1, 1]} : vector<16x768xf32> to vector<16x766xf32>
    %27 = tpu.concatenate %25, %26 in 1 : vector<16x2xf32>, vector<16x766xf32> -> vector<16x768xf32>
    %28 = vector.shape_cast %6 : vector<1x768xi1> to vector<1x768xi1>
    %29 = vector.broadcast %28 : vector<1x768xi1> to vector<16x768xi1>
    %30 = arith.select %29, %27, %24 : vector<16x768xi1>, vector<16x768xf32>
    %31 = vector.extract_strided_slice %30 {offsets = [0, 36], sizes = [16, 732], strides = [1, 1]} : vector<16x768xf32> to vector<16x732xf32>
    %32 = vector.extract_strided_slice %30 {offsets = [0, 0], sizes = [16, 36], strides = [1, 1]} : vector<16x768xf32> to vector<16x36xf32>
    %33 = tpu.concatenate %31, %32 in 1 : vector<16x732xf32>, vector<16x36xf32> -> vector<16x768xf32>
    %34 = vector.shape_cast %9 : vector<1x768xi1> to vector<1x768xi1>
    %35 = vector.broadcast %34 : vector<1x768xi1> to vector<16x768xi1>
    %36 = arith.select %35, %33, %30 : vector<16x768xi1>, vector<16x768xf32>
    %37 = vector.extract_strided_slice %36 {offsets = [0, 732], sizes = [16, 36], strides = [1, 1]} : vector<16x768xf32> to vector<16x36xf32>
    %38 = vector.extract_strided_slice %36 {offsets = [0, 0], sizes = [16, 732], strides = [1, 1]} : vector<16x768xf32> to vector<16x732xf32>
    %39 = tpu.concatenate %37, %38 in 1 : vector<16x36xf32>, vector<16x732xf32> -> vector<16x768xf32>
    %40 = vector.shape_cast %12 : vector<1x768xi1> to vector<1x768xi1>
    %41 = vector.broadcast %40 : vector<1x768xi1> to vector<16x768xi1>
    %42 = arith.select %41, %39, %36 : vector<16x768xi1>, vector<16x768xf32>
    %43 = arith.truncf %42 : vector<16x768xf32> to vector<16x768xbf16>
    %44 = vector.extract_strided_slice %43 {offsets = [0, 1], sizes = [16, 767], strides = [1, 1]} : vector<16x768xbf16> to vector<16x767xbf16>
    %45 = vector.extract_strided_slice %43 {offsets = [0, 0], sizes = [16, 1], strides = [1, 1]} : vector<16x768xbf16> to vector<16x1xbf16>
    %46 = tpu.concatenate %44, %45 in 1 : vector<16x767xbf16>, vector<16x1xbf16> -> vector<16x768xbf16>
    %47 = vector.extract_strided_slice %43 {offsets = [0, 2], sizes = [16, 766], strides = [1, 1]} : vector<16x768xbf16> to vector<16x766xbf16>
    %48 = vector.extract_strided_slice %43 {offsets = [0, 0], sizes = [16, 2], strides = [1, 1]} : vector<16x768xbf16> to vector<16x2xbf16>
    %49 = tpu.concatenate %47, %48 in 1 : vector<16x766xbf16>, vector<16x2xbf16> -> vector<16x768xbf16>
    %50 = vector.extract_strided_slice %43 {offsets = [0, 18], sizes = [16, 750], strides = [1, 1]} : vector<16x768xbf16> to vector<16x750xbf16>
    %51 = vector.extract_strided_slice %43 {offsets = [0, 0], sizes = [16, 18], strides = [1, 1]} : vector<16x768xbf16> to vector<16x18xbf16>
    %52 = tpu.concatenate %50, %51 in 1 : vector<16x750xbf16>, vector<16x18xbf16> -> vector<16x768xbf16>
    %53 = vector.extract_strided_slice %43 {offsets = [0, 19], sizes = [16, 749], strides = [1, 1]} : vector<16x768xbf16> to vector<16x749xbf16>
    %54 = vector.extract_strided_slice %43 {offsets = [0, 0], sizes = [16, 19], strides = [1, 1]} : vector<16x768xbf16> to vector<16x19xbf16>
    %55 = tpu.concatenate %53, %54 in 1 : vector<16x749xbf16>, vector<16x19xbf16> -> vector<16x768xbf16>
    %56 = vector.extract_strided_slice %43 {offsets = [0, 20], sizes = [16, 748], strides = [1, 1]} : vector<16x768xbf16> to vector<16x748xbf16>
    %57 = vector.extract_strided_slice %43 {offsets = [0, 0], sizes = [16, 20], strides = [1, 1]} : vector<16x768xbf16> to vector<16x20xbf16>
    %58 = tpu.concatenate %56, %57 in 1 : vector<16x748xbf16>, vector<16x20xbf16> -> vector<16x768xbf16>
    %59 = vector.extract_strided_slice %43 {offsets = [0, 36], sizes = [16, 732], strides = [1, 1]} : vector<16x768xbf16> to vector<16x732xbf16>
    %60 = vector.extract_strided_slice %43 {offsets = [0, 0], sizes = [16, 36], strides = [1, 1]} : vector<16x768xbf16> to vector<16x36xbf16>
    %61 = tpu.concatenate %59, %60 in 1 : vector<16x732xbf16>, vector<16x36xbf16> -> vector<16x768xbf16>
    %62 = vector.extract_strided_slice %43 {offsets = [0, 37], sizes = [16, 731], strides = [1, 1]} : vector<16x768xbf16> to vector<16x731xbf16>
    %63 = vector.extract_strided_slice %43 {offsets = [0, 0], sizes = [16, 37], strides = [1, 1]} : vector<16x768xbf16> to vector<16x37xbf16>
    %64 = tpu.concatenate %62, %63 in 1 : vector<16x731xbf16>, vector<16x37xbf16> -> vector<16x768xbf16>
    %65 = vector.extract_strided_slice %43 {offsets = [0, 38], sizes = [16, 730], strides = [1, 1]} : vector<16x768xbf16> to vector<16x730xbf16>
    %66 = vector.extract_strided_slice %43 {offsets = [0, 0], sizes = [16, 38], strides = [1, 1]} : vector<16x768xbf16> to vector<16x38xbf16>
    %67 = tpu.concatenate %65, %66 in 1 : vector<16x730xbf16>, vector<16x38xbf16> -> vector<16x768xbf16>
    %68 = tpu.concatenate %43, %46, %49, %52, %55, %58, %61, %64, %67 in 0 : vector<16x768xbf16>, vector<16x768xbf16>, vector<16x768xbf16>, vector<16x768xbf16>, vector<16x768xbf16>, vector<16x768xbf16>, vector<16x768xbf16>, vector<16x768xbf16>, vector<16x768xbf16> -> vector<144x768xbf16>
    %cst_14 = arith.constant dense<0.000000e+00> : vector<48x768xf32>
    %69 = tpu.matmul %15, %68, %cst_14 {dimension_numbers = #tpu.dot_dimension_numbers<[1], [0], [0], [1], [0, 0, 1, 1], [], []>} : vector<48x144xbf16>, vector<144x768xbf16>, vector<48x768xf32> -> vector<48x768xf32>
    %70 = vector.extract_strided_slice %69 {offsets = [0, 0], sizes = [16, 768], strides = [1, 1]} : vector<48x768xf32> to vector<16x768xf32>
    %c0_15 = arith.constant 0 : index
    %c0_16 = arith.constant 0 : index
    %71 = vector.load %arg6[%c0_15, %c0_16] : memref<48x1xf32, #tpu.memory_space<vmem>>, vector<16x1xf32>
    %c0_17 = arith.constant 0 : index
    %c0_18 = arith.constant 0 : index
    %72 = vector.load %arg7[%c0_17, %c0_18] : memref<48x1xf32, #tpu.memory_space<vmem>>, vector<16x1xf32>
    %73 = vector.broadcast %0 : vector<1x768xf32> to vector<16x768xf32>
    %74 = arith.mulf %70, %73 : vector<16x768xf32>
    %cst_19 = arith.constant dense<0.000000e+00> : vector<16xf32>
    %75 = vector.multi_reduction <add>, %74, %cst_19 [1] : vector<16x768xf32> to vector<16xf32>
    %76 = vector.shape_cast %75 : vector<16xf32> to vector<16x1xf32>
    %77 = arith.mulf %74, %74 : vector<16x768xf32>
    %cst_20 = arith.constant dense<0.000000e+00> : vector<16xf32>
    %78 = vector.multi_reduction <add>, %77, %cst_20 [1] : vector<16x768xf32> to vector<16xf32>
    %79 = vector.shape_cast %78 : vector<16xf32> to vector<16x1xf32>
    %cst_21 = arith.constant 0.001953125 : f32
    %80 = vector.broadcast %cst_21 : f32 to vector<16x1xf32>
    %81 = arith.mulf %76, %80 : vector<16x1xf32>
    %cst_22 = arith.constant 0.001953125 : f32
    %82 = vector.broadcast %cst_22 : f32 to vector<16x1xf32>
    %83 = arith.mulf %79, %82 : vector<16x1xf32>
    %84 = arith.mulf %81, %81 : vector<16x1xf32>
    %85 = arith.subf %83, %84 : vector<16x1xf32>
    %cst_23 = arith.constant 0.000000e+00 : f32
    %86 = vector.broadcast %cst_23 : f32 to vector<16x1xf32>
    %87 = arith.maximumf %85, %86 : vector<16x1xf32>
    %88 = vector.broadcast %81 : vector<16x1xf32> to vector<16x768xf32>
    %89 = arith.subf %70, %88 : vector<16x768xf32>
    %cst_24 = arith.constant 9.99999974E-6 : f32
    %90 = vector.broadcast %cst_24 : f32 to vector<16x1xf32>
    %91 = arith.addf %87, %90 : vector<16x1xf32>
    %92 = math.rsqrt %91 : vector<16x1xf32>
    %93 = vector.broadcast %92 : vector<16x1xf32> to vector<16x768xf32>
    %94 = arith.mulf %89, %93 : vector<16x768xf32>
    %95 = vector.broadcast %71 : vector<16x1xf32> to vector<16x768xf32>
    %96 = arith.mulf %94, %95 : vector<16x768xf32>
    %97 = vector.broadcast %72 : vector<16x1xf32> to vector<16x768xf32>
    %98 = arith.addf %96, %97 : vector<16x768xf32>
    %cst_25 = arith.constant 0.000000e+00 : f32
    %99 = vector.broadcast %cst_25 : f32 to vector<16x768xf32>
    %100 = arith.maximumf %98, %99 : vector<16x768xf32>
    %c16 = arith.constant 16 : index
    %c0_26 = arith.constant 0 : index
    %101 = vector.load %arg8[%c16, %c0_26] : memref<64x768xf32, #tpu.memory_space<vmem>>, vector<16x768xf32>
    tpu.vector_store %arg8[%c16, %c0_26], %100 {strides = array<i32>} : memref<64x768xf32, #tpu.memory_space<vmem>>, vector<16x768xf32>,
    %c0_27 = arith.constant 0 : index
    %c0_28 = arith.constant 0 : index
    %102 = vector.load %arg3[%c0_27, %c0_28] : memref<32x144xbf16, #tpu.memory_space<vmem>>, vector<32x144xbf16>
    %103 = vector.extract_strided_slice %100 {offsets = [0, 749], sizes = [16, 19], strides = [1, 1]} : vector<16x768xf32> to vector<16x19xf32>
    %104 = vector.extract_strided_slice %100 {offsets = [0, 0], sizes = [16, 749], strides = [1, 1]} : vector<16x768xf32> to vector<16x749xf32>
    %105 = tpu.concatenate %103, %104 in 1 : vector<16x19xf32>, vector<16x749xf32> -> vector<16x768xf32>
    %106 = vector.extract_strided_slice %105 {offsets = [0, 2], sizes = [16, 766], strides = [1, 1]} : vector<16x768xf32> to vector<16x766xf32>
    %107 = vector.extract_strided_slice %105 {offsets = [0, 0], sizes = [16, 2], strides = [1, 1]} : vector<16x768xf32> to vector<16x2xf32>
    %108 = tpu.concatenate %106, %107 in 1 : vector<16x766xf32>, vector<16x2xf32> -> vector<16x768xf32>
    %109 = vector.shape_cast %3 : vector<1x768xi1> to vector<1x768xi1>
    %110 = vector.broadcast %109 : vector<1x768xi1> to vector<16x768xi1>
    %111 = arith.select %110, %108, %105 : vector<16x768xi1>, vector<16x768xf32>
    %112 = vector.extract_strided_slice %111 {offsets = [0, 766], sizes = [16, 2], strides = [1, 1]} : vector<16x768xf32> to vector<16x2xf32>
    %113 = vector.extract_strided_slice %111 {offsets = [0, 0], sizes = [16, 766], strides = [1, 1]} : vector<16x768xf32> to vector<16x766xf32>
    %114 = tpu.concatenate %112, %113 in 1 : vector<16x2xf32>, vector<16x766xf32> -> vector<16x768xf32>
    %115 = vector.shape_cast %6 : vector<1x768xi1> to vector<1x768xi1>
    %116 = vector.broadcast %115 : vector<1x768xi1> to vector<16x768xi1>
    %117 = arith.select %116, %114, %111 : vector<16x768xi1>, vector<16x768xf32>
    %118 = vector.extract_strided_slice %117 {offsets = [0, 36], sizes = [16, 732], strides = [1, 1]} : vector<16x768xf32> to vector<16x732xf32>
    %119 = vector.extract_strided_slice %117 {offsets = [0, 0], sizes = [16, 36], strides = [1, 1]} : vector<16x768xf32> to vector<16x36xf32>
    %120 = tpu.concatenate %118, %119 in 1 : vector<16x732xf32>, vector<16x36xf32> -> vector<16x768xf32>
    %121 = vector.shape_cast %9 : vector<1x768xi1> to vector<1x768xi1>
    %122 = vector.broadcast %121 : vector<1x768xi1> to vector<16x768xi1>
    %123 = arith.select %122, %120, %117 : vector<16x768xi1>, vector<16x768xf32>
    %124 = vector.extract_strided_slice %123 {offsets = [0, 732], sizes = [16, 36], strides = [1, 1]} : vector<16x768xf32> to vector<16x36xf32>
    %125 = vector.extract_strided_slice %123 {offsets = [0, 0], sizes = [16, 732], strides = [1, 1]} : vector<16x768xf32> to vector<16x732xf32>
    %126 = tpu.concatenate %124, %125 in 1 : vector<16x36xf32>, vector<16x732xf32> -> vector<16x768xf32>
    %127 = vector.shape_cast %12 : vector<1x768xi1> to vector<1x768xi1>
    %128 = vector.broadcast %127 : vector<1x768xi1> to vector<16x768xi1>
    %129 = arith.select %128, %126, %123 : vector<16x768xi1>, vector<16x768xf32>
    %130 = arith.truncf %129 : vector<16x768xf32> to vector<16x768xbf16>
    %131 = vector.extract_strided_slice %130 {offsets = [0, 1], sizes = [16, 767], strides = [1, 1]} : vector<16x768xbf16> to vector<16x767xbf16>
    %132 = vector.extract_strided_slice %130 {offsets = [0, 0], sizes = [16, 1], strides = [1, 1]} : vector<16x768xbf16> to vector<16x1xbf16>
    %133 = tpu.concatenate %131, %132 in 1 : vector<16x767xbf16>, vector<16x1xbf16> -> vector<16x768xbf16>
    %134 = vector.extract_strided_slice %130 {offsets = [0, 2], sizes = [16, 766], strides = [1, 1]} : vector<16x768xbf16> to vector<16x766xbf16>
    %135 = vector.extract_strided_slice %130 {offsets = [0, 0], sizes = [16, 2], strides = [1, 1]} : vector<16x768xbf16> to vector<16x2xbf16>
    %136 = tpu.concatenate %134, %135 in 1 : vector<16x766xbf16>, vector<16x2xbf16> -> vector<16x768xbf16>
    %137 = vector.extract_strided_slice %130 {offsets = [0, 18], sizes = [16, 750], strides = [1, 1]} : vector<16x768xbf16> to vector<16x750xbf16>
    %138 = vector.extract_strided_slice %130 {offsets = [0, 0], sizes = [16, 18], strides = [1, 1]} : vector<16x768xbf16> to vector<16x18xbf16>
    %139 = tpu.concatenate %137, %138 in 1 : vector<16x750xbf16>, vector<16x18xbf16> -> vector<16x768xbf16>
    %140 = vector.extract_strided_slice %130 {offsets = [0, 19], sizes = [16, 749], strides = [1, 1]} : vector<16x768xbf16> to vector<16x749xbf16>
    %141 = vector.extract_strided_slice %130 {offsets = [0, 0], sizes = [16, 19], strides = [1, 1]} : vector<16x768xbf16> to vector<16x19xbf16>
    %142 = tpu.concatenate %140, %141 in 1 : vector<16x749xbf16>, vector<16x19xbf16> -> vector<16x768xbf16>
    %143 = vector.extract_strided_slice %130 {offsets = [0, 20], sizes = [16, 748], strides = [1, 1]} : vector<16x768xbf16> to vector<16x748xbf16>
    %144 = vector.extract_strided_slice %130 {offsets = [0, 0], sizes = [16, 20], strides = [1, 1]} : vector<16x768xbf16> to vector<16x20xbf16>
    %145 = tpu.concatenate %143, %144 in 1 : vector<16x748xbf16>, vector<16x20xbf16> -> vector<16x768xbf16>
    %146 = vector.extract_strided_slice %130 {offsets = [0, 36], sizes = [16, 732], strides = [1, 1]} : vector<16x768xbf16> to vector<16x732xbf16>
    %147 = vector.extract_strided_slice %130 {offsets = [0, 0], sizes = [16, 36], strides = [1, 1]} : vector<16x768xbf16> to vector<16x36xbf16>
    %148 = tpu.concatenate %146, %147 in 1 : vector<16x732xbf16>, vector<16x36xbf16> -> vector<16x768xbf16>
    %149 = vector.extract_strided_slice %130 {offsets = [0, 37], sizes = [16, 731], strides = [1, 1]} : vector<16x768xbf16> to vector<16x731xbf16>
    %150 = vector.extract_strided_slice %130 {offsets = [0, 0], sizes = [16, 37], strides = [1, 1]} : vector<16x768xbf16> to vector<16x37xbf16>
    %151 = tpu.concatenate %149, %150 in 1 : vector<16x731xbf16>, vector<16x37xbf16> -> vector<16x768xbf16>
    %152 = vector.extract_strided_slice %130 {offsets = [0, 38], sizes = [16, 730], strides = [1, 1]} : vector<16x768xbf16> to vector<16x730xbf16>
    %153 = vector.extract_strided_slice %130 {offsets = [0, 0], sizes = [16, 38], strides = [1, 1]} : vector<16x768xbf16> to vector<16x38xbf16>
    %154 = tpu.concatenate %152, %153 in 1 : vector<16x730xbf16>, vector<16x38xbf16> -> vector<16x768xbf16>
    %155 = tpu.concatenate %130, %133, %136, %139, %142, %145, %148, %151, %154 in 0 : vector<16x768xbf16>, vector<16x768xbf16>, vector<16x768xbf16>, vector<16x768xbf16>, vector<16x768xbf16>, vector<16x768xbf16>, vector<16x768xbf16>, vector<16x768xbf16>, vector<16x768xbf16> -> vector<144x768xbf16>
    %cst_29 = arith.constant dense<0.000000e+00> : vector<32x768xf32>
    %156 = tpu.matmul %102, %155, %cst_29 {dimension_numbers = #tpu.dot_dimension_numbers<[1], [0], [0], [1], [0, 0, 1, 1], [], []>} : vector<32x144xbf16>, vector<144x768xbf16>, vector<32x768xf32> -> vector<32x768xf32>
    %157 = vector.extract_strided_slice %69 {offsets = [16, 0], sizes = [16, 768], strides = [1, 1]} : vector<48x768xf32> to vector<16x768xf32>
    %158 = vector.extract_strided_slice %156 {offsets = [0, 0], sizes = [16, 768], strides = [1, 1]} : vector<32x768xf32> to vector<16x768xf32>
    %159 = arith.addf %157, %158 : vector<16x768xf32>
    %c16_30 = arith.constant 16 : index
    %c0_31 = arith.constant 0 : index
    %160 = vector.load %arg6[%c16_30, %c0_31] : memref<48x1xf32, #tpu.memory_space<vmem>>, vector<16x1xf32>
    %c16_32 = arith.constant 16 : index
    %c0_33 = arith.constant 0 : index
    %161 = vector.load %arg7[%c16_32, %c0_33] : memref<48x1xf32, #tpu.memory_space<vmem>>, vector<16x1xf32>
    %162 = vector.broadcast %0 : vector<1x768xf32> to vector<16x768xf32>
    %163 = arith.mulf %159, %162 : vector<16x768xf32>
    %cst_34 = arith.constant dense<0.000000e+00> : vector<16xf32>
    %164 = vector.multi_reduction <add>, %163, %cst_34 [1] : vector<16x768xf32> to vector<16xf32>
    %165 = vector.shape_cast %164 : vector<16xf32> to vector<16x1xf32>
    %166 = arith.mulf %163, %163 : vector<16x768xf32>
    %cst_35 = arith.constant dense<0.000000e+00> : vector<16xf32>
    %167 = vector.multi_reduction <add>, %166, %cst_35 [1] : vector<16x768xf32> to vector<16xf32>
    %168 = vector.shape_cast %167 : vector<16xf32> to vector<16x1xf32>
    %cst_36 = arith.constant 0.001953125 : f32
    %169 = vector.broadcast %cst_36 : f32 to vector<16x1xf32>
    %170 = arith.mulf %165, %169 : vector<16x1xf32>
    %cst_37 = arith.constant 0.001953125 : f32
    %171 = vector.broadcast %cst_37 : f32 to vector<16x1xf32>
    %172 = arith.mulf %168, %171 : vector<16x1xf32>
    %173 = arith.mulf %170, %170 : vector<16x1xf32>
    %174 = arith.subf %172, %173 : vector<16x1xf32>
    %cst_38 = arith.constant 0.000000e+00 : f32
    %175 = vector.broadcast %cst_38 : f32 to vector<16x1xf32>
    %176 = arith.maximumf %174, %175 : vector<16x1xf32>
    %177 = vector.broadcast %170 : vector<16x1xf32> to vector<16x768xf32>
    %178 = arith.subf %159, %177 : vector<16x768xf32>
    %cst_39 = arith.constant 9.99999974E-6 : f32
    %179 = vector.broadcast %cst_39 : f32 to vector<16x1xf32>
    %180 = arith.addf %176, %179 : vector<16x1xf32>
    %181 = math.rsqrt %180 : vector<16x1xf32>
    %182 = vector.broadcast %181 : vector<16x1xf32> to vector<16x768xf32>
    %183 = arith.mulf %178, %182 : vector<16x768xf32>
    %184 = vector.broadcast %160 : vector<16x1xf32> to vector<16x768xf32>
    %185 = arith.mulf %183, %184 : vector<16x768xf32>
    %186 = vector.broadcast %161 : vector<16x1xf32> to vector<16x768xf32>
    %187 = arith.addf %185, %186 : vector<16x768xf32>
    %cst_40 = arith.constant 0.000000e+00 : f32
    %188 = vector.broadcast %cst_40 : f32 to vector<16x768xf32>
    %189 = arith.maximumf %187, %188 : vector<16x768xf32>
    %c32 = arith.constant 32 : index
    %c0_41 = arith.constant 0 : index
    %190 = vector.load %arg8[%c32, %c0_41] : memref<64x768xf32, #tpu.memory_space<vmem>>, vector<16x768xf32>
    tpu.vector_store %arg8[%c32, %c0_41], %189 {strides = array<i32>} : memref<64x768xf32, #tpu.memory_space<vmem>>, vector<16x768xf32>,
    %c0_42 = arith.constant 0 : index
    %c0_43 = arith.constant 0 : index
    %191 = vector.load %arg4[%c0_42, %c0_43] : memref<16x144xbf16, #tpu.memory_space<vmem>>, vector<16x144xbf16>
    %192 = vector.extract_strided_slice %189 {offsets = [0, 749], sizes = [16, 19], strides = [1, 1]} : vector<16x768xf32> to vector<16x19xf32>
    %193 = vector.extract_strided_slice %189 {offsets = [0, 0], sizes = [16, 749], strides = [1, 1]} : vector<16x768xf32> to vector<16x749xf32>
    %194 = tpu.concatenate %192, %193 in 1 : vector<16x19xf32>, vector<16x749xf32> -> vector<16x768xf32>
    %195 = vector.extract_strided_slice %194 {offsets = [0, 2], sizes = [16, 766], strides = [1, 1]} : vector<16x768xf32> to vector<16x766xf32>
    %196 = vector.extract_strided_slice %194 {offsets = [0, 0], sizes = [16, 2], strides = [1, 1]} : vector<16x768xf32> to vector<16x2xf32>
    %197 = tpu.concatenate %195, %196 in 1 : vector<16x766xf32>, vector<16x2xf32> -> vector<16x768xf32>
    %198 = vector.shape_cast %3 : vector<1x768xi1> to vector<1x768xi1>
    %199 = vector.broadcast %198 : vector<1x768xi1> to vector<16x768xi1>
    %200 = arith.select %199, %197, %194 : vector<16x768xi1>, vector<16x768xf32>
    %201 = vector.extract_strided_slice %200 {offsets = [0, 766], sizes = [16, 2], strides = [1, 1]} : vector<16x768xf32> to vector<16x2xf32>
    %202 = vector.extract_strided_slice %200 {offsets = [0, 0], sizes = [16, 766], strides = [1, 1]} : vector<16x768xf32> to vector<16x766xf32>
    %203 = tpu.concatenate %201, %202 in 1 : vector<16x2xf32>, vector<16x766xf32> -> vector<16x768xf32>
    %204 = vector.shape_cast %6 : vector<1x768xi1> to vector<1x768xi1>
    %205 = vector.broadcast %204 : vector<1x768xi1> to vector<16x768xi1>
    %206 = arith.select %205, %203, %200 : vector<16x768xi1>, vector<16x768xf32>
    %207 = vector.extract_strided_slice %206 {offsets = [0, 36], sizes = [16, 732], strides = [1, 1]} : vector<16x768xf32> to vector<16x732xf32>
    %208 = vector.extract_strided_slice %206 {offsets = [0, 0], sizes = [16, 36], strides = [1, 1]} : vector<16x768xf32> to vector<16x36xf32>
    %209 = tpu.concatenate %207, %208 in 1 : vector<16x732xf32>, vector<16x36xf32> -> vector<16x768xf32>
    %210 = vector.shape_cast %9 : vector<1x768xi1> to vector<1x768xi1>
    %211 = vector.broadcast %210 : vector<1x768xi1> to vector<16x768xi1>
    %212 = arith.select %211, %209, %206 : vector<16x768xi1>, vector<16x768xf32>
    %213 = vector.extract_strided_slice %212 {offsets = [0, 732], sizes = [16, 36], strides = [1, 1]} : vector<16x768xf32> to vector<16x36xf32>
    %214 = vector.extract_strided_slice %212 {offsets = [0, 0], sizes = [16, 732], strides = [1, 1]} : vector<16x768xf32> to vector<16x732xf32>
    %215 = tpu.concatenate %213, %214 in 1 : vector<16x36xf32>, vector<16x732xf32> -> vector<16x768xf32>
    %216 = vector.shape_cast %12 : vector<1x768xi1> to vector<1x768xi1>
    %217 = vector.broadcast %216 : vector<1x768xi1> to vector<16x768xi1>
    %218 = arith.select %217, %215, %212 : vector<16x768xi1>, vector<16x768xf32>
    %219 = arith.truncf %218 : vector<16x768xf32> to vector<16x768xbf16>
    %220 = vector.extract_strided_slice %219 {offsets = [0, 1], sizes = [16, 767], strides = [1, 1]} : vector<16x768xbf16> to vector<16x767xbf16>
    %221 = vector.extract_strided_slice %219 {offsets = [0, 0], sizes = [16, 1], strides = [1, 1]} : vector<16x768xbf16> to vector<16x1xbf16>
    %222 = tpu.concatenate %220, %221 in 1 : vector<16x767xbf16>, vector<16x1xbf16> -> vector<16x768xbf16>
    %223 = vector.extract_strided_slice %219 {offsets = [0, 2], sizes = [16, 766], strides = [1, 1]} : vector<16x768xbf16> to vector<16x766xbf16>
    %224 = vector.extract_strided_slice %219 {offsets = [0, 0], sizes = [16, 2], strides = [1, 1]} : vector<16x768xbf16> to vector<16x2xbf16>
    %225 = tpu.concatenate %223, %224 in 1 : vector<16x766xbf16>, vector<16x2xbf16> -> vector<16x768xbf16>
    %226 = vector.extract_strided_slice %219 {offsets = [0, 18], sizes = [16, 750], strides = [1, 1]} : vector<16x768xbf16> to vector<16x750xbf16>
    %227 = vector.extract_strided_slice %219 {offsets = [0, 0], sizes = [16, 18], strides = [1, 1]} : vector<16x768xbf16> to vector<16x18xbf16>
    %228 = tpu.concatenate %226, %227 in 1 : vector<16x750xbf16>, vector<16x18xbf16> -> vector<16x768xbf16>
    %229 = vector.extract_strided_slice %219 {offsets = [0, 19], sizes = [16, 749], strides = [1, 1]} : vector<16x768xbf16> to vector<16x749xbf16>
    %230 = vector.extract_strided_slice %219 {offsets = [0, 0], sizes = [16, 19], strides = [1, 1]} : vector<16x768xbf16> to vector<16x19xbf16>
    %231 = tpu.concatenate %229, %230 in 1 : vector<16x749xbf16>, vector<16x19xbf16> -> vector<16x768xbf16>
    %232 = vector.extract_strided_slice %219 {offsets = [0, 20], sizes = [16, 748], strides = [1, 1]} : vector<16x768xbf16> to vector<16x748xbf16>
    %233 = vector.extract_strided_slice %219 {offsets = [0, 0], sizes = [16, 20], strides = [1, 1]} : vector<16x768xbf16> to vector<16x20xbf16>
    %234 = tpu.concatenate %232, %233 in 1 : vector<16x748xbf16>, vector<16x20xbf16> -> vector<16x768xbf16>
    %235 = vector.extract_strided_slice %219 {offsets = [0, 36], sizes = [16, 732], strides = [1, 1]} : vector<16x768xbf16> to vector<16x732xbf16>
    %236 = vector.extract_strided_slice %219 {offsets = [0, 0], sizes = [16, 36], strides = [1, 1]} : vector<16x768xbf16> to vector<16x36xbf16>
    %237 = tpu.concatenate %235, %236 in 1 : vector<16x732xbf16>, vector<16x36xbf16> -> vector<16x768xbf16>
    %238 = vector.extract_strided_slice %219 {offsets = [0, 37], sizes = [16, 731], strides = [1, 1]} : vector<16x768xbf16> to vector<16x731xbf16>
    %239 = vector.extract_strided_slice %219 {offsets = [0, 0], sizes = [16, 37], strides = [1, 1]} : vector<16x768xbf16> to vector<16x37xbf16>
    %240 = tpu.concatenate %238, %239 in 1 : vector<16x731xbf16>, vector<16x37xbf16> -> vector<16x768xbf16>
    %241 = vector.extract_strided_slice %219 {offsets = [0, 38], sizes = [16, 730], strides = [1, 1]} : vector<16x768xbf16> to vector<16x730xbf16>
    %242 = vector.extract_strided_slice %219 {offsets = [0, 0], sizes = [16, 38], strides = [1, 1]} : vector<16x768xbf16> to vector<16x38xbf16>
    %243 = tpu.concatenate %241, %242 in 1 : vector<16x730xbf16>, vector<16x38xbf16> -> vector<16x768xbf16>
    %244 = tpu.concatenate %219, %222, %225, %228, %231, %234, %237, %240, %243 in 0 : vector<16x768xbf16>, vector<16x768xbf16>, vector<16x768xbf16>, vector<16x768xbf16>, vector<16x768xbf16>, vector<16x768xbf16>, vector<16x768xbf16>, vector<16x768xbf16>, vector<16x768xbf16> -> vector<144x768xbf16>
    %cst_44 = arith.constant dense<0.000000e+00> : vector<16x768xf32>
    %245 = tpu.matmul %191, %244, %cst_44 {dimension_numbers = #tpu.dot_dimension_numbers<[1], [0], [0], [1], [0, 0, 1, 1], [], []>} : vector<16x144xbf16>, vector<144x768xbf16>, vector<16x768xf32> -> vector<16x768xf32>
    %246 = vector.extract_strided_slice %69 {offsets = [32, 0], sizes = [16, 768], strides = [1, 1]} : vector<48x768xf32> to vector<16x768xf32>
    %247 = vector.extract_strided_slice %156 {offsets = [16, 0], sizes = [16, 768], strides = [1, 1]} : vector<32x768xf32> to vector<16x768xf32>
    %248 = arith.addf %246, %247 : vector<16x768xf32>
    %249 = arith.addf %248, %245 : vector<16x768xf32>
    %c32_45 = arith.constant 32 : index
    %c0_46 = arith.constant 0 : index
    %250 = vector.load %arg6[%c32_45, %c0_46] : memref<48x1xf32, #tpu.memory_space<vmem>>, vector<16x1xf32>
    %c32_47 = arith.constant 32 : index
    %c0_48 = arith.constant 0 : index
    %251 = vector.load %arg7[%c32_47, %c0_48] : memref<48x1xf32, #tpu.memory_space<vmem>>, vector<16x1xf32>
    %252 = vector.broadcast %0 : vector<1x768xf32> to vector<16x768xf32>
    %253 = arith.mulf %249, %252 : vector<16x768xf32>
    %cst_49 = arith.constant dense<0.000000e+00> : vector<16xf32>
    %254 = vector.multi_reduction <add>, %253, %cst_49 [1] : vector<16x768xf32> to vector<16xf32>
    %255 = vector.shape_cast %254 : vector<16xf32> to vector<16x1xf32>
    %256 = arith.mulf %253, %253 : vector<16x768xf32>
    %cst_50 = arith.constant dense<0.000000e+00> : vector<16xf32>
    %257 = vector.multi_reduction <add>, %256, %cst_50 [1] : vector<16x768xf32> to vector<16xf32>
    %258 = vector.shape_cast %257 : vector<16xf32> to vector<16x1xf32>
    %cst_51 = arith.constant 0.001953125 : f32
    %259 = vector.broadcast %cst_51 : f32 to vector<16x1xf32>
    %260 = arith.mulf %255, %259 : vector<16x1xf32>
    %cst_52 = arith.constant 0.001953125 : f32
    %261 = vector.broadcast %cst_52 : f32 to vector<16x1xf32>
    %262 = arith.mulf %258, %261 : vector<16x1xf32>
    %263 = arith.mulf %260, %260 : vector<16x1xf32>
    %264 = arith.subf %262, %263 : vector<16x1xf32>
    %cst_53 = arith.constant 0.000000e+00 : f32
    %265 = vector.broadcast %cst_53 : f32 to vector<16x1xf32>
    %266 = arith.maximumf %264, %265 : vector<16x1xf32>
    %267 = vector.broadcast %260 : vector<16x1xf32> to vector<16x768xf32>
    %268 = arith.subf %249, %267 : vector<16x768xf32>
    %cst_54 = arith.constant 9.99999974E-6 : f32
    %269 = vector.broadcast %cst_54 : f32 to vector<16x1xf32>
    %270 = arith.addf %266, %269 : vector<16x1xf32>
    %271 = math.rsqrt %270 : vector<16x1xf32>
    %272 = vector.broadcast %271 : vector<16x1xf32> to vector<16x768xf32>
    %273 = arith.mulf %268, %272 : vector<16x768xf32>
    %274 = vector.broadcast %250 : vector<16x1xf32> to vector<16x768xf32>
    %275 = arith.mulf %273, %274 : vector<16x768xf32>
    %276 = vector.broadcast %251 : vector<16x1xf32> to vector<16x768xf32>
    %277 = arith.addf %275, %276 : vector<16x768xf32>
    %cst_55 = arith.constant 0.000000e+00 : f32
    %278 = vector.broadcast %cst_55 : f32 to vector<16x768xf32>
    %279 = arith.maximumf %277, %278 : vector<16x768xf32>
    %c48 = arith.constant 48 : index
    %c0_56 = arith.constant 0 : index
    %280 = vector.load %arg8[%c48, %c0_56] : memref<64x768xf32, #tpu.memory_space<vmem>>, vector<16x768xf32>
    tpu.vector_store %arg8[%c48, %c0_56], %279 {strides = array<i32>} : memref<64x768xf32, #tpu.memory_space<vmem>>, vector<16x768xf32>,
    return
  }
  func.func @transform_0(%arg0: i32) -> (i32, i32) {
    %c0_i32 = arith.constant 0 : i32
    %c0_i32_0 = arith.constant 0 : i32
    %c0_i32_1 = arith.constant 0 : i32
    return %c0_i32, %c0_i32_0 : i32, i32
  }
  func.func @transform_1(%arg0: i32) -> (i32, i32) {
    %c0_i32 = arith.constant 0 : i32
    %c0_i32_0 = arith.constant 0 : i32
    %c0_i32_1 = arith.constant 0 : i32
    return %c0_i32, %c0_i32_0 : i32, i32
  }
  func.func @transform_2(%arg0: i32) -> (i32, i32) {
    %c0_i32 = arith.constant 0 : i32
    %c0_i32_0 = arith.constant 0 : i32
    %c0_i32_1 = arith.constant 0 : i32
    return %c0_i32, %c0_i32_0 : i32, i32
  }
  func.func @transform_3(%arg0: i32) -> (i32, i32) {
    %c0_i32 = arith.constant 0 : i32
    %c0_i32_0 = arith.constant 0 : i32
    %c0_i32_1 = arith.constant 0 : i32
    return %c0_i32, %c0_i32_0 : i32, i32
  }
  func.func @transform_4(%arg0: i32) -> (i32, i32) {
    %c0_i32 = arith.constant 0 : i32
    %c0_i32_0 = arith.constant 0 : i32
    %c0_i32_1 = arith.constant 0 : i32
    return %c0_i32, %c0_i32_0 : i32, i32
  }
  func.func @transform_5(%arg0: i32) -> (i32, i32) {
    %c0_i32 = arith.constant 0 : i32
    %c0_i32_0 = arith.constant 0 : i32
    %c0_i32_1 = arith.constant 0 : i32
    return %c0_i32, %c0_i32_0 : i32, i32
  }
  func.func @transform_6(%arg0: i32) -> (i32, i32) {
    %c0_i32 = arith.constant 0 : i32
    %c0_i32_0 = arith.constant 0 : i32
    %c0_i32_1 = arith.constant 0 : i32
    return %c0_i32, %c0_i32_0 : i32, i32
  }
  func.func @transform_7(%arg0: i32) -> (i32, i32) {
    %c0_i32 = arith.constant 0 : i32
    %c0_i32_0 = arith.constant 0 : i32
    %c0_i32_1 = arith.constant 0 : i32
    return %c0_i32, %c0_i32_0 : i32, i32
  }
}

</mosaic_0001>

<llo_original>
// kernel: dense_block_forward.1
$region0: #{dense_block_forward.1}
  #allocation0 [shape = 'u32[]', space=smem, size = 0x4, offset = 0x4, fixed_abs, tag = 'smem constant byte address 0x4 - core index']
  #allocation1 [shape = 'u32[144,128]{1,0:T(1,128)}', space=vmem, size = 0x12000, scoped, tag = 'internal scratch']
  %s0 = inlined_call_operand.vmem [shape: f32[16,768], index: 0, kind: input, shape index: {}]
  %s1 = inlined_call_operand.vmem [shape: bf16[48,144], index: 1, kind: input, shape index: {}]
  %s2 = inlined_call_operand.vmem [shape: bf16[32,144], index: 2, kind: input, shape index: {}]
  %s3 = inlined_call_operand.vmem [shape: bf16[16,144], index: 3, kind: input, shape index: {}]
  %s4 = inlined_call_operand.vmem [shape: f32[5,768], index: 4, kind: input, shape index: {}]
  %s5 = inlined_call_operand.vmem [shape: f32[48,1], index: 5, kind: input, shape index: {}]
  %s6 = inlined_call_operand.vmem [shape: f32[48,1], index: 6, kind: input, shape index: {}]
  %s7 = inlined_call_operand.vmem [shape: f32[64,768], index: 7, kind: output, shape index: {}]
  %s8 = sld [smem:[#allocation0]]
  $region38: #{dense_block_forward.1} parent=0
    _
  %s10 = ssub.s32 1, %s8
  %s11 = scalar_select 0, %s10, %s8
  // Predicated region
  $region2: #{dense_block_forward.1} parent=0 // pred_check
    _
  $region3: #{dense_block_forward.1} parent=0 // pred_check_branch
    %13 = sbr.rel (0) target = $region5
  $region4: #{dense_block_forward.1} parent=0 // pred_region
    _
  $region5: #{dense_block_forward.1} parent=0 // pred_fallthru
    _
  // Predicated region
  $region6: #{dense_block_forward.1} parent=0 // pred_check
    _
  $region7: #{dense_block_forward.1} parent=0 // pred_check_branch
    %15 = sbr.rel (0) target = $region9
  $region8: #{dense_block_forward.1} parent=0 // pred_region
    _
  $region9: #{dense_block_forward.1} parent=0 // pred_fallthru
    _
  // Predicated region
  $region10: #{dense_block_forward.1} parent=0 // pred_check
    _
  $region11: #{dense_block_forward.1} parent=0 // pred_check_branch
    %17 = sbr.rel (0) target = $region13
  $region12: #{dense_block_forward.1} parent=0 // pred_region
    _
  $region13: #{dense_block_forward.1} parent=0 // pred_fallthru
    _
  // Predicated region
  $region14: #{dense_block_forward.1} parent=0 // pred_check
    _
  $region15: #{dense_block_forward.1} parent=0 // pred_check_branch
    %19 = sbr.rel (0) target = $region17
  $region16: #{dense_block_forward.1} parent=0 // pred_region
    _
  $region17: #{dense_block_forward.1} parent=0 // pred_fallthru
    _
  // Predicated region
  $region18: #{dense_block_forward.1} parent=0 // pred_check
    _
  $region19: #{dense_block_forward.1} parent=0 // pred_check_branch
    %21 = sbr.rel (0) target = $region21
  $region20: #{dense_block_forward.1} parent=0 // pred_region
    _
  $region21: #{dense_block_forward.1} parent=0 // pred_fallthru
    _
  // Predicated region
  $region22: #{dense_block_forward.1} parent=0 // pred_check
    _
  $region23: #{dense_block_forward.1} parent=0 // pred_check_branch
    %23 = sbr.rel (0) target = $region25
  $region24: #{dense_block_forward.1} parent=0 // pred_region
    _
  $region25: #{dense_block_forward.1} parent=0 // pred_fallthru
    _
  // Predicated region
  $region26: #{dense_block_forward.1} parent=0 // pred_check
    _
  $region27: #{dense_block_forward.1} parent=0 // pred_check_branch
    %25 = sbr.rel (0) target = $region29
  $region28: #{dense_block_forward.1} parent=0 // pred_region
    _
  $region29: #{dense_block_forward.1} parent=0 // pred_fallthru
    _
  %v27 = vld [vmem:[%s4] ss:$8 sm:$0xf]
  %v28 = vld [vmem:[%s4] ss:$8 sm:$0x30]
  %v29 = vor.u32 %v27, %v28
  %s30 = scalar_lea.vmem %s4, 1
  %v31 = vld [vmem:[%s30] ss:$8 sm:$0xf]
  %v32 = vld [vmem:[%s30] ss:$8 sm:$0x30]
  %v33 = vor.u32 %v31, %v32
  %vm34 = vcmp.gt.f32.partialorder %v33, 0.5
  %s35 = scalar_lea.vmem %s4, 2
  %v36 = vld [vmem:[%s35] ss:$8 sm:$0xf]
  %v37 = vld [vmem:[%s35] ss:$8 sm:$0x30]
  %v38 = vor.u32 %v36, %v37
  %vm39 = vcmp.gt.f32.partialorder %v38, 0.5
  %s40 = scalar_lea.vmem %s4, 3
  %v41 = vld [vmem:[%s40] ss:$8 sm:$0xf]
  %v42 = vld [vmem:[%s40] ss:$8 sm:$0x30]
  %v43 = vor.u32 %v41, %v42
  %vm44 = vcmp.gt.f32.partialorder %v43, 0.5
  %s45 = scalar_lea.vmem %s4, 4
  %v46 = vld [vmem:[%s45] ss:$8 sm:$0xf]
  %v47 = vld [vmem:[%s45] ss:$8 sm:$0x30]
  %v48 = vor.u32 %v46, %v47
  %vm49 = vcmp.gt.f32.partialorder %v48, 0.5
  %v50 = vld [vmem:[%s0] sm:$0xff]
  %v51 = vld [vmem:[%s0 + $0x8] sm:$0xff]
  %v52 = vld [vmem:[%s0 + $0x10] sm:$0xff]
  %v53 = vld [vmem:[%s0 + $0x18] sm:$0xff]
  %v54 = vld [vmem:[%s0 + $0x20] sm:$0xff]
  %v55 = vld [vmem:[%s0 + $0x28] sm:$0xff]
  %v56 = vld [vmem:[%s0 + $0x30] sm:$0xff]
  %v57 = vld [vmem:[%s0 + $0x38] sm:$0xff]
  %v58 = vld [vmem:[%s0 + $0x40] sm:$0xff]
  %v59 = vld [vmem:[%s0 + $0x48] sm:$0xff]
  %v60 = vld [vmem:[%s0 + $0x50] sm:$0xff]
  %v61 = vld [vmem:[%s0 + $0x58] sm:$0xff]
  %62 = vst [vmem:[%s7] sm:$0xff] %v50
  %63 = vst [vmem:[%s7 + $0x8] sm:$0xff] %v51
  %64 = vst [vmem:[%s7 + $0x10] sm:$0xff] %v52
  %65 = vst [vmem:[%s7 + $0x18] sm:$0xff] %v53
  %66 = vst [vmem:[%s7 + $0x20] sm:$0xff] %v54
  %67 = vst [vmem:[%s7 + $0x28] sm:$0xff] %v55
  %68 = vst [vmem:[%s7 + $0x30] sm:$0xff] %v56
  %69 = vst [vmem:[%s7 + $0x38] sm:$0xff] %v57
  %70 = vst [vmem:[%s7 + $0x40] sm:$0xff] %v58
  %71 = vst [vmem:[%s7 + $0x48] sm:$0xff] %v59
  %72 = vst [vmem:[%s7 + $0x50] sm:$0xff] %v60
  %73 = vst [vmem:[%s7 + $0x58] sm:$0xff] %v61
  %v74 = vld [vmem:[%s1] sm:$0xff]
  %v75 = vld [vmem:[%s1 + $0x8] sm:$0xff]
  %v76 = vld [vmem:[%s1 + $0x10] sm:$0xff]
  %v77 = vld [vmem:[%s1 + $0x18] sm:$0xff]
  %v78 = vld [vmem:[%s1 + $0x20] sm:$0xff]
  %v79 = vld [vmem:[%s1 + $0x28] sm:$0xff]
  %82 = vrot.lane.b32.xlu0 %v55, 19
  %v83 = vpop.permute.xlu0 %82
  %84 = vrot.lane.b32.xlu0 %v61, 19
  %v85 = vpop.permute.xlu0 %84
  %98 = vrot.lane.b32.xlu0 %v50, 19
  %v99 = vpop.permute.xlu0 %98
  %100 = vrot.lane.b32.xlu0 %v51, 19
  %v101 = vpop.permute.xlu0 %100
  %102 = vrot.lane.b32.xlu0 %v52, 19
  %v103 = vpop.permute.xlu0 %102
  %104 = vrot.lane.b32.xlu0 %v53, 19
  %v105 = vpop.permute.xlu0 %104
  %106 = vrot.lane.b32.xlu0 %v54, 19
  %v107 = vpop.permute.xlu0 %106
  %108 = vrot.lane.b32.xlu0 %v56, 19
  %v109 = vpop.permute.xlu0 %108
  %110 = vrot.lane.b32.xlu0 %v57, 19
  %v111 = vpop.permute.xlu0 %110
  %112 = vrot.lane.b32.xlu0 %v58, 19
  %v113 = vpop.permute.xlu0 %112
  %114 = vrot.lane.b32.xlu0 %v59, 19
  %v115 = vpop.permute.xlu0 %114
  %116 = vrot.lane.b32.xlu0 %v60, 19
  %v117 = vpop.permute.xlu0 %116
  %vm118 = vcmask 154624
  %v119 = vsel %vm118, %v99, %v101
  %v120 = vsel %vm118, %v101, %v103
  %v121 = vsel %vm118, %v103, %v105
  %v122 = vsel %vm118, %v105, %v107
  %v123 = vsel %vm118, %v107, %v83
  %v124 = vsel %vm118, %v109, %v111
  %v125 = vsel %vm118, %v111, %v113
  %v126 = vsel %vm118, %v113, %v115
  %v127 = vsel %vm118, %v115, %v117
  %v128 = vsel %vm118, %v117, %v85
  %v141 = vsel %vm118, %v83, %v99
  %v142 = vsel %vm118, %v85, %v109
  %145 = vrot.lane.b32.xlu0 %v141, 126
  %v146 = vpop.permute.xlu0 %145
  %147 = vrot.lane.b32.xlu0 %v119, 126
  %v148 = vpop.permute.xlu0 %147
  %149 = vrot.lane.b32.xlu0 %v120, 126
  %v150 = vpop.permute.xlu0 %149
  %151 = vrot.lane.b32.xlu0 %v121, 126
  %v152 = vpop.permute.xlu0 %151
  %153 = vrot.lane.b32.xlu0 %v122, 126
  %v154 = vpop.permute.xlu0 %153
  %155 = vrot.lane.b32.xlu0 %v123, 126
  %v156 = vpop.permute.xlu0 %155
  %157 = vrot.lane.b32.xlu0 %v142, 126
  %v158 = vpop.permute.xlu0 %157
  %159 = vrot.lane.b32.xlu0 %v124, 126
  %v160 = vpop.permute.xlu0 %159
  %161 = vrot.lane.b32.xlu0 %v125, 126
  %v162 = vpop.permute.xlu0 %161
  %163 = vrot.lane.b32.xlu0 %v126, 126
  %v164 = vpop.permute.xlu0 %163
  %165 = vrot.lane.b32.xlu0 %v127, 126
  %v166 = vpop.permute.xlu0 %165
  %167 = vrot.lane.b32.xlu0 %v128, 126
  %v168 = vpop.permute.xlu0 %167
  %vm169 = vcmask 1031168
  %v170 = vsel %vm169, %v146, %v148
  %v171 = vsel %vm169, %v148, %v150
  %v172 = vsel %vm169, %v150, %v152
  %v173 = vsel %vm169, %v152, %v154
  %v174 = vsel %vm169, %v154, %v156
  %v175 = vsel %vm169, %v158, %v160
  %v176 = vsel %vm169, %v160, %v162
  %v177 = vsel %vm169, %v162, %v164
  %v178 = vsel %vm169, %v164, %v166
  %v179 = vsel %vm169, %v166, %v168
  %v194 = vsel %vm169, %v156, %v146
  %v195 = vsel %vm169, %v168, %v158
  %v196 = vsel %vm34, 1, 0
  %v197 = vlaneseq
  %v198 = vshrl.u32 %v197, 7
  %v199 = vsub.s32 0, %v198
  %v200 = vrot.slane %v196, %v199
  %v201 = vlaneseq
  %v202 = vshrl.u32 %v201, 7
  %v203 = vsub.s32 1, %v202
  %v204 = vrot.slane %v196, %v203
  %v205 = vlaneseq
  %v206 = vshrl.u32 %v205, 7
  %v207 = vsub.s32 2, %v206
  %v208 = vrot.slane %v196, %v207
  %v209 = vlaneseq
  %v210 = vshrl.u32 %v209, 7
  %v211 = vsub.s32 3, %v210
  %v212 = vrot.slane %v196, %v211
  %v213 = vlaneseq
  %v214 = vshrl.u32 %v213, 7
  %v215 = vsub.s32 4, %v214
  %v216 = vrot.slane %v196, %v215
  %v217 = vlaneseq
  %v218 = vshrl.u32 %v217, 7
  %v219 = vsub.s32 5, %v218
  %v220 = vrot.slane %v196, %v219
  %vm221 = vcmp.eq.s32.totalorder %v200, 1
  %vm222 = vcmp.eq.s32.totalorder %v204, 1
  %vm223 = vcmp.eq.s32.totalorder %v208, 1
  %vm224 = vcmp.eq.s32.totalorder %v212, 1
  %vm225 = vcmp.eq.s32.totalorder %v216, 1
  %vm226 = vcmp.eq.s32.totalorder %v220, 1
  %v227 = vsel %vm221, %v170, %v141
  %v228 = vsel %vm222, %v171, %v119
  %v229 = vsel %vm223, %v172, %v120
  %v230 = vsel %vm224, %v173, %v121
  %v231 = vsel %vm225, %v174, %v122
  %v232 = vsel %vm226, %v194, %v123
  %v233 = vsel %vm221, %v175, %v142
  %v234 = vsel %vm222, %v176, %v124
  %v235 = vsel %vm223, %v177, %v125
  %v236 = vsel %vm224, %v178, %v126
  %v237 = vsel %vm225, %v179, %v127
  %v238 = vsel %vm226, %v195, %v128
  %241 = vrot.lane.b32.xlu0 %v232, 2
  %v242 = vpop.permute.xlu0 %241
  %243 = vrot.lane.b32.xlu0 %v238, 2
  %v244 = vpop.permute.xlu0 %243
  %257 = vrot.lane.b32.xlu0 %v227, 2
  %v258 = vpop.permute.xlu0 %257
  %259 = vrot.lane.b32.xlu0 %v228, 2
  %v260 = vpop.permute.xlu0 %259
  %261 = vrot.lane.b32.xlu0 %v229, 2
  %v262 = vpop.permute.xlu0 %261
  %263 = vrot.lane.b32.xlu0 %v230, 2
  %v264 = vpop.permute.xlu0 %263
  %265 = vrot.lane.b32.xlu0 %v231, 2
  %v266 = vpop.permute.xlu0 %265
  %267 = vrot.lane.b32.xlu0 %v233, 2
  %v268 = vpop.permute.xlu0 %267
  %269 = vrot.lane.b32.xlu0 %v234, 2
  %v270 = vpop.permute.xlu0 %269
  %271 = vrot.lane.b32.xlu0 %v235, 2
  %v272 = vpop.permute.xlu0 %271
  %273 = vrot.lane.b32.xlu0 %v236, 2
  %v274 = vpop.permute.xlu0 %273
  %275 = vrot.lane.b32.xlu0 %v237, 2
  %v276 = vpop.permute.xlu0 %275
  %vm277 = vcmask 15360
  %v278 = vsel %vm277, %v258, %v260
  %v279 = vsel %vm277, %v260, %v262
  %v280 = vsel %vm277, %v262, %v264
  %v281 = vsel %vm277, %v264, %v266
  %v282 = vsel %vm277, %v266, %v242
  %v283 = vsel %vm277, %v268, %v270
  %v284 = vsel %vm277, %v270, %v272
  %v285 = vsel %vm277, %v272, %v274
  %v286 = vsel %vm277, %v274, %v276
  %v287 = vsel %vm277, %v276, %v244
  %v300 = vsel %vm277, %v242, %v258
  %v301 = vsel %vm277, %v244, %v268
  %v302 = vsel %vm39, 1, 0
  %v303 = vlaneseq
  %v304 = vshrl.u32 %v303, 7
  %v305 = vsub.s32 0, %v304
  %v306 = vrot.slane %v302, %v305
  %v307 = vlaneseq
  %v308 = vshrl.u32 %v307, 7
  %v309 = vsub.s32 1, %v308
  %v310 = vrot.slane %v302, %v309
  %v311 = vlaneseq
  %v312 = vshrl.u32 %v311, 7
  %v313 = vsub.s32 2, %v312
  %v314 = vrot.slane %v302, %v313
  %v315 = vlaneseq
  %v316 = vshrl.u32 %v315, 7
  %v317 = vsub.s32 3, %v316
  %v318 = vrot.slane %v302, %v317
  %v319 = vlaneseq
  %v320 = vshrl.u32 %v319, 7
  %v321 = vsub.s32 4, %v320
  %v322 = vrot.slane %v302, %v321
  %v323 = vlaneseq
  %v324 = vshrl.u32 %v323, 7
  %v325 = vsub.s32 5, %v324
  %v326 = vrot.slane %v302, %v325
  %vm327 = vcmp.eq.s32.totalorder %v306, 1
  %vm328 = vcmp.eq.s32.totalorder %v310, 1
  %vm329 = vcmp.eq.s32.totalorder %v314, 1
  %vm330 = vcmp.eq.s32.totalorder %v318, 1
  %vm331 = vcmp.eq.s32.totalorder %v322, 1
  %vm332 = vcmp.eq.s32.totalorder %v326, 1
  %v333 = vsel %vm327, %v300, %v227
  %v334 = vsel %vm328, %v278, %v228
  %v335 = vsel %vm329, %v279, %v229
  %v336 = vsel %vm330, %v280, %v230
  %v337 = vsel %vm331, %v281, %v231
  %v338 = vsel %vm332, %v282, %v232
  %v339 = vsel %vm327, %v301, %v233
  %v340 = vsel %vm328, %v283, %v234
  %v341 = vsel %vm329, %v284, %v235
  %v342 = vsel %vm330, %v285, %v236
  %v343 = vsel %vm331, %v286, %v237
  %v344 = vsel %vm332, %v287, %v238
  %357 = vrot.lane.b32.xlu0 %v333, 92
  %v358 = vpop.permute.xlu0 %357
  %359 = vrot.lane.b32.xlu0 %v334, 92
  %v360 = vpop.permute.xlu0 %359
  %361 = vrot.lane.b32.xlu0 %v335, 92
  %v362 = vpop.permute.xlu0 %361
  %363 = vrot.lane.b32.xlu0 %v336, 92
  %v364 = vpop.permute.xlu0 %363
  %365 = vrot.lane.b32.xlu0 %v337, 92
  %v366 = vpop.permute.xlu0 %365
  %367 = vrot.lane.b32.xlu0 %v338, 92
  %v368 = vpop.permute.xlu0 %367
  %369 = vrot.lane.b32.xlu0 %v339, 92
  %v370 = vpop.permute.xlu0 %369
  %371 = vrot.lane.b32.xlu0 %v340, 92
  %v372 = vpop.permute.xlu0 %371
  %373 = vrot.lane.b32.xlu0 %v341, 92
  %v374 = vpop.permute.xlu0 %373
  %375 = vrot.lane.b32.xlu0 %v342, 92
  %v376 = vpop.permute.xlu0 %375
  %377 = vrot.lane.b32.xlu0 %v343, 92
  %v378 = vpop.permute.xlu0 %377
  %379 = vrot.lane.b32.xlu0 %v344, 92
  %v380 = vpop.permute.xlu0 %379
  %vm381 = vcmask 752640
  %v382 = vsel %vm381, %v358, %v360
  %v383 = vsel %vm381, %v360, %v362
  %v384 = vsel %vm381, %v362, %v364
  %v385 = vsel %vm381, %v364, %v366
  %v386 = vsel %vm381, %v366, %v368
  %v387 = vsel %vm381, %v370, %v372
  %v388 = vsel %vm381, %v372, %v374
  %v389 = vsel %vm381, %v374, %v376
  %v390 = vsel %vm381, %v376, %v378
  %v391 = vsel %vm381, %v378, %v380
  %v406 = vsel %vm381, %v368, %v358
  %v407 = vsel %vm381, %v380, %v370
  %v408 = vsel %vm44, 1, 0
  %v409 = vlaneseq
  %v410 = vshrl.u32 %v409, 7
  %v411 = vsub.s32 0, %v410
  %v412 = vrot.slane %v408, %v411
  %v413 = vlaneseq
  %v414 = vshrl.u32 %v413, 7
  %v415 = vsub.s32 1, %v414
  %v416 = vrot.slane %v408, %v415
  %v417 = vlaneseq
  %v418 = vshrl.u32 %v417, 7
  %v419 = vsub.s32 2, %v418
  %v420 = vrot.slane %v408, %v419
  %v421 = vlaneseq
  %v422 = vshrl.u32 %v421, 7
  %v423 = vsub.s32 3, %v422
  %v424 = vrot.slane %v408, %v423
  %v425 = vlaneseq
  %v426 = vshrl.u32 %v425, 7
  %v427 = vsub.s32 4, %v426
  %v428 = vrot.slane %v408, %v427
  %v429 = vlaneseq
  %v430 = vshrl.u32 %v429, 7
  %v431 = vsub.s32 5, %v430
  %v432 = vrot.slane %v408, %v431
  %vm433 = vcmp.eq.s32.totalorder %v412, 1
  %vm434 = vcmp.eq.s32.totalorder %v416, 1
  %vm435 = vcmp.eq.s32.totalorder %v420, 1
  %vm436 = vcmp.eq.s32.totalorder %v424, 1
  %vm437 = vcmp.eq.s32.totalorder %v428, 1
  %vm438 = vcmp.eq.s32.totalorder %v432, 1
  %v439 = vsel %vm433, %v382, %v333
  %v440 = vsel %vm434, %v383, %v334
  %v441 = vsel %vm435, %v384, %v335
  %v442 = vsel %vm436, %v385, %v336
  %v443 = vsel %vm437, %v386, %v337
  %v444 = vsel %vm438, %v406, %v338
  %v445 = vsel %vm433, %v387, %v339
  %v446 = vsel %vm434, %v388, %v340
  %v447 = vsel %vm435, %v389, %v341
  %v448 = vsel %vm436, %v390, %v342
  %v449 = vsel %vm437, %v391, %v343
  %v450 = vsel %vm438, %v407, %v344
  %453 = vrot.lane.b32.xlu0 %v444, 36
  %v454 = vpop.permute.xlu0 %453
  %455 = vrot.lane.b32.xlu0 %v450, 36
  %v456 = vpop.permute.xlu0 %455
  %469 = vrot.lane.b32.xlu0 %v439, 36
  %v470 = vpop.permute.xlu0 %469
  %471 = vrot.lane.b32.xlu0 %v440, 36
  %v472 = vpop.permute.xlu0 %471
  %473 = vrot.lane.b32.xlu0 %v441, 36
  %v474 = vpop.permute.xlu0 %473
  %475 = vrot.lane.b32.xlu0 %v442, 36
  %v476 = vpop.permute.xlu0 %475
  %477 = vrot.lane.b32.xlu0 %v443, 36
  %v478 = vpop.permute.xlu0 %477
  %479 = vrot.lane.b32.xlu0 %v445, 36
  %v480 = vpop.permute.xlu0 %479
  %481 = vrot.lane.b32.xlu0 %v446, 36
  %v482 = vpop.permute.xlu0 %481
  %483 = vrot.lane.b32.xlu0 %v447, 36
  %v484 = vpop.permute.xlu0 %483
  %485 = vrot.lane.b32.xlu0 %v448, 36
  %v486 = vpop.permute.xlu0 %485
  %487 = vrot.lane.b32.xlu0 %v449, 36
  %v488 = vpop.permute.xlu0 %487
  %vm489 = vcmask 293888
  %v490 = vsel %vm489, %v470, %v472
  %v491 = vsel %vm489, %v472, %v474
  %v492 = vsel %vm489, %v474, %v476
  %v493 = vsel %vm489, %v476, %v478
  %v494 = vsel %vm489, %v478, %v454
  %v495 = vsel %vm489, %v480, %v482
  %v496 = vsel %vm489, %v482, %v484
  %v497 = vsel %vm489, %v484, %v486
  %v498 = vsel %vm489, %v486, %v488
  %v499 = vsel %vm489, %v488, %v456
  %v512 = vsel %vm489, %v454, %v470
  %v513 = vsel %vm489, %v456, %v480
  %v514 = vsel %vm49, 1, 0
  %v515 = vlaneseq
  %v516 = vshrl.u32 %v515, 7
  %v517 = vsub.s32 0, %v516
  %v518 = vrot.slane %v514, %v517
  %v519 = vlaneseq
  %v520 = vshrl.u32 %v519, 7
  %v521 = vsub.s32 1, %v520
  %v522 = vrot.slane %v514, %v521
  %v523 = vlaneseq
  %v524 = vshrl.u32 %v523, 7
  %v525 = vsub.s32 2, %v524
  %v526 = vrot.slane %v514, %v525
  %v527 = vlaneseq
  %v528 = vshrl.u32 %v527, 7
  %v529 = vsub.s32 3, %v528
  %v530 = vrot.slane %v514, %v529
  %v531 = vlaneseq
  %v532 = vshrl.u32 %v531, 7
  %v533 = vsub.s32 4, %v532
  %v534 = vrot.slane %v514, %v533
  %v535 = vlaneseq
  %v536 = vshrl.u32 %v535, 7
  %v537 = vsub.s32 5, %v536
  %v538 = vrot.slane %v514, %v537
  %vm539 = vcmp.eq.s32.totalorder %v518, 1
  %vm540 = vcmp.eq.s32.totalorder %v522, 1
  %vm541 = vcmp.eq.s32.totalorder %v526, 1
  %vm542 = vcmp.eq.s32.totalorder %v530, 1
  %vm543 = vcmp.eq.s32.totalorder %v534, 1
  %vm544 = vcmp.eq.s32.totalorder %v538, 1
  %v545 = vsel %vm539, %v512, %v439
  %v546 = vsel %vm540, %v490, %v440
  %v547 = vsel %vm541, %v491, %v441
  %v548 = vsel %vm542, %v492, %v442
  %v549 = vsel %vm543, %v493, %v443
  %v550 = vsel %vm544, %v494, %v444
  %v551 = vsel %vm539, %v513, %v445
  %v552 = vsel %vm540, %v495, %v446
  %v553 = vsel %vm541, %v496, %v447
  %v554 = vsel %vm542, %v497, %v448
  %v555 = vsel %vm543, %v498, %v449
  %v556 = vsel %vm544, %v499, %v450
  %v557 = vpack.c.bf16 %v551, %v545
  %v558 = vpack.c.bf16 %v552, %v546
  %v559 = vpack.c.bf16 %v553, %v547
  %v560 = vpack.c.bf16 %v554, %v548
  %v561 = vpack.c.bf16 %v555, %v549
  %v562 = vpack.c.bf16 %v556, %v550
  %569 = vrot.lane.b32.xlu0 %v557, 127
  %v570 = vpop.permute.xlu0 %569
  %571 = vrot.lane.b32.xlu0 %v558, 127
  %v572 = vpop.permute.xlu0 %571
  %573 = vrot.lane.b32.xlu0 %v559, 127
  %v574 = vpop.permute.xlu0 %573
  %575 = vrot.lane.b32.xlu0 %v560, 127
  %v576 = vpop.permute.xlu0 %575
  %577 = vrot.lane.b32.xlu0 %v561, 127
  %v578 = vpop.permute.xlu0 %577
  %579 = vrot.lane.b32.xlu0 %v562, 127
  %v580 = vpop.permute.xlu0 %579
  %vm581 = vcmask 1039360
  %v582 = vsel %vm581, %v570, %v572
  %v583 = vsel %vm581, %v572, %v574
  %v584 = vsel %vm581, %v574, %v576
  %v585 = vsel %vm581, %v576, %v578
  %v586 = vsel %vm581, %v578, %v580
  %vm592 = vcmask 1039360
  %v595 = vsel %vm592, %v580, %v570
  %597 = vrot.lane.b32.xlu0 %v557, 126
  %v598 = vpop.permute.xlu0 %597
  %599 = vrot.lane.b32.xlu0 %v558, 126
  %v600 = vpop.permute.xlu0 %599
  %601 = vrot.lane.b32.xlu0 %v559, 126
  %v602 = vpop.permute.xlu0 %601
  %603 = vrot.lane.b32.xlu0 %v560, 126
  %v604 = vpop.permute.xlu0 %603
  %605 = vrot.lane.b32.xlu0 %v561, 126
  %v606 = vpop.permute.xlu0 %605
  %607 = vrot.lane.b32.xlu0 %v562, 126
  %v608 = vpop.permute.xlu0 %607
  %vm609 = vcmask 1031168
  %v610 = vsel %vm609, %v598, %v600
  %v611 = vsel %vm609, %v600, %v602
  %v612 = vsel %vm609, %v602, %v604
  %v613 = vsel %vm609, %v604, %v606
  %v614 = vsel %vm609, %v606, %v608
  %v622 = vsel %vm169, %v608, %v598
  %624 = vrot.lane.b32.xlu0 %v557, 110
  %v625 = vpop.permute.xlu0 %624
  %626 = vrot.lane.b32.xlu0 %v558, 110
  %v627 = vpop.permute.xlu0 %626
  %628 = vrot.lane.b32.xlu0 %v559, 110
  %v629 = vpop.permute.xlu0 %628
  %630 = vrot.lane.b32.xlu0 %v560, 110
  %v631 = vpop.permute.xlu0 %630
  %632 = vrot.lane.b32.xlu0 %v561, 110
  %v633 = vpop.permute.xlu0 %632
  %634 = vrot.lane.b32.xlu0 %v562, 110
  %v635 = vpop.permute.xlu0 %634
  %vm636 = vcmask 900096
  %v637 = vsel %vm636, %v625, %v627
  %v638 = vsel %vm636, %v627, %v629
  %v639 = vsel %vm636, %v629, %v631
  %v640 = vsel %vm636, %v631, %v633
  %v641 = vsel %vm636, %v633, %v635
  %vm647 = vcmask 900096
  %v650 = vsel %vm647, %v635, %v625
  %652 = vrot.lane.b32.xlu0 %v557, 109
  %v653 = vpop.permute.xlu0 %652
  %654 = vrot.lane.b32.xlu0 %v558, 109
  %v655 = vpop.permute.xlu0 %654
  %656 = vrot.lane.b32.xlu0 %v559, 109
  %v657 = vpop.permute.xlu0 %656
  %658 = vrot.lane.b32.xlu0 %v560, 109
  %v659 = vpop.permute.xlu0 %658
  %660 = vrot.lane.b32.xlu0 %v561, 109
  %v661 = vpop.permute.xlu0 %660
  %662 = vrot.lane.b32.xlu0 %v562, 109
  %v663 = vpop.permute.xlu0 %662
  %vm664 = vcmask 891904
  %v665 = vsel %vm664, %v653, %v655
  %v666 = vsel %vm664, %v655, %v657
  %v667 = vsel %vm664, %v657, %v659
  %v668 = vsel %vm664, %v659, %v661
  %v669 = vsel %vm664, %v661, %v663
  %vm675 = vcmask 891904
  %v678 = vsel %vm675, %v663, %v653
  %680 = vrot.lane.b32.xlu0 %v557, 108
  %v681 = vpop.permute.xlu0 %680
  %682 = vrot.lane.b32.xlu0 %v558, 108
  %v683 = vpop.permute.xlu0 %682
  %684 = vrot.lane.b32.xlu0 %v559, 108
  %v685 = vpop.permute.xlu0 %684
  %686 = vrot.lane.b32.xlu0 %v560, 108
  %v687 = vpop.permute.xlu0 %686
  %688 = vrot.lane.b32.xlu0 %v561, 108
  %v689 = vpop.permute.xlu0 %688
  %690 = vrot.lane.b32.xlu0 %v562, 108
  %v691 = vpop.permute.xlu0 %690
  %vm692 = vcmask 883712
  %v693 = vsel %vm692, %v681, %v683
  %v694 = vsel %vm692, %v683, %v685
  %v695 = vsel %vm692, %v685, %v687
  %v696 = vsel %vm692, %v687, %v689
  %v697 = vsel %vm692, %v689, %v691
  %vm703 = vcmask 883712
  %v706 = vsel %vm703, %v691, %v681
  %708 = vrot.lane.b32.xlu0 %v557, 92
  %v709 = vpop.permute.xlu0 %708
  %710 = vrot.lane.b32.xlu0 %v558, 92
  %v711 = vpop.permute.xlu0 %710
  %712 = vrot.lane.b32.xlu0 %v559, 92
  %v713 = vpop.permute.xlu0 %712
  %714 = vrot.lane.b32.xlu0 %v560, 92
  %v715 = vpop.permute.xlu0 %714
  %716 = vrot.lane.b32.xlu0 %v561, 92
  %v717 = vpop.permute.xlu0 %716
  %718 = vrot.lane.b32.xlu0 %v562, 92
  %v719 = vpop.permute.xlu0 %718
  %vm720 = vcmask 752640
  %v721 = vsel %vm720, %v709, %v711
  %v722 = vsel %vm720, %v711, %v713
  %v723 = vsel %vm720, %v713, %v715
  %v724 = vsel %vm720, %v715, %v717
  %v725 = vsel %vm720, %v717, %v719
  %v733 = vsel %vm381, %v719, %v709
  %735 = vrot.lane.b32.xlu0 %v557, 91
  %v736 = vpop.permute.xlu0 %735
  %737 = vrot.lane.b32.xlu0 %v558, 91
  %v738 = vpop.permute.xlu0 %737
  %739 = vrot.lane.b32.xlu0 %v559, 91
  %v740 = vpop.permute.xlu0 %739
  %741 = vrot.lane.b32.xlu0 %v560, 91
  %v742 = vpop.permute.xlu0 %741
  %743 = vrot.lane.b32.xlu0 %v561, 91
  %v744 = vpop.permute.xlu0 %743
  %745 = vrot.lane.b32.xlu0 %v562, 91
  %v746 = vpop.permute.xlu0 %745
  %vm747 = vcmask 744448
  %v748 = vsel %vm747, %v736, %v738
  %v749 = vsel %vm747, %v738, %v740
  %v750 = vsel %vm747, %v740, %v742
  %v751 = vsel %vm747, %v742, %v744
  %v752 = vsel %vm747, %v744, %v746
  %vm758 = vcmask 744448
  %v761 = vsel %vm758, %v746, %v736
  %763 = vrot.lane.b32.xlu0 %v557, 90
  %v764 = vpop.permute.xlu0 %763
  %765 = vrot.lane.b32.xlu0 %v558, 90
  %v766 = vpop.permute.xlu0 %765
  %767 = vrot.lane.b32.xlu0 %v559, 90
  %v768 = vpop.permute.xlu0 %767
  %769 = vrot.lane.b32.xlu0 %v560, 90
  %v770 = vpop.permute.xlu0 %769
  %771 = vrot.lane.b32.xlu0 %v561, 90
  %v772 = vpop.permute.xlu0 %771
  %773 = vrot.lane.b32.xlu0 %v562, 90
  %v774 = vpop.permute.xlu0 %773
  %vm775 = vcmask 736256
  %v776 = vsel %vm775, %v764, %v766
  %v777 = vsel %vm775, %v766, %v768
  %v778 = vsel %vm775, %v768, %v770
  %v779 = vsel %vm775, %v770, %v772
  %v780 = vsel %vm775, %v772, %v774
  %vm786 = vcmask 736256
  %v789 = vsel %vm786, %v774, %v764
  %v797 = vunpack.c.l.b16 %v74
  %v798 = vunpack.c.h.b16 %v74
  %v799 = vunpack.c.l.b16 %v75
  %v800 = vunpack.c.h.b16 %v75
  %v801 = vunpack.c.l.b16 %v76
  %v802 = vunpack.c.h.b16 %v76
  %v803 = vunpack.c.l.b16 %v77
  %v804 = vunpack.c.h.b16 %v77
  %v805 = vunpack.c.l.b16 %v78
  %v806 = vunpack.c.h.b16 %v78
  %v807 = vunpack.c.l.b16 %v79
  %v808 = vunpack.c.h.b16 %v79
  %v809 = vpack.c.b16 %v799, %v797
  %v810 = vpack.c.b16 %v800, %v798
  %v811 = vpack.c.b16 %v803, %v801
  %v812 = vpack.c.b16 %v804, %v802
  %v813 = vpack.c.b16 %v807, %v805
  %v814 = vpack.c.b16 %v808, %v806
  %vm818 = vcmask 130048
  %v820 = vsel %vm818, %v810, 0
  %v823 = vsel %vm818, %v812, 0
  %v826 = vsel %vm818, %v814, 0
  %828 = vmatprep.subr.bf16.mxu0 %v749
  %829 = vmatpush1.bf16.msra.mxu0 %v748
  %830 = vmatprep.subr.bf16.mxu0 %v722
  %831 = vmatpush1.bf16.msra.mxu0 %v721
  %832 = vmatprep.subr.bf16.mxu0 %v694
  %833 = vmatpush1.bf16.msra.mxu0 %v693
  %834 = vmatprep.subr.bf16.mxu0 %v666
  %835 = vmatpush1.bf16.msra.mxu0 %v665
  %836 = vmatprep.subr.bf16.mxu0 %v638
  %837 = vmatpush1.bf16.msra.mxu0 %v637
  %838 = vmatprep.subr.bf16.mxu0 %v611
  %839 = vmatpush1.bf16.msra.mxu0 %v610
  %840 = vmatprep.subr.bf16.mxu0 %v583
  %841 = vmatpush1.bf16.msra.mxu0 %v582
  %842 = vmatprep.subr.bf16.mxu0 %v558
  %843 = vmatpush1.bf16.msra.mxu0 %v557
  %844 = vmatprep.subr.bf16.mxu0 0
  %845 = vmatpush2.bf16.msra.mxu0 0
  %846 = vmatprep.subr.bf16.mxu0 0
  %847 = vmatpush2.bf16.msra.mxu0 0
  %848 = vmatprep.subr.bf16.mxu0 0
  %849 = vmatpush2.bf16.msra.mxu0 0
  %850 = vmatprep.subr.bf16.mxu0 0
  %851 = vmatpush2.bf16.msra.mxu0 0
  %852 = vmatprep.subr.bf16.mxu0 0
  %853 = vmatpush2.bf16.msra.mxu0 0
  %854 = vmatprep.subr.bf16.mxu0 0
  %855 = vmatpush2.bf16.msra.mxu0 0
  %856 = vmatprep.subr.bf16.mxu0 0
  %857 = vmatpush2.bf16.msra.mxu0 0
  %858 = vmatprep.subr.bf16.mxu0 %v777
  %859 = vmatpush2.bf16.msra.mxu0 %v776
  %860 = vmatprep.mubr.bf16.mxu0 %v820
  %861 = vmatmul.mubr.bf16.gmra.mxu0 %v809
  %v862 = vpop.f32.mrf.mxu0
  %v863 = vadd.f32 0.0, %v862
  %v864 = vpop.f32.mrf.mxu0
  %v865 = vadd.f32 0.0, %v864
  %v866 = vpop.f32.mrf.mxu0
  %v867 = vadd.f32 0.0, %v866
  %v868 = vpop.f32.mrf.mxu0
  %v869 = vadd.f32 0.0, %v868
  %870 = vmatprep.mubr.bf16.mxu0 %v823
  %871 = vmatmul.mubr.bf16.gmra.mxu0 %v811
  %v872 = vpop.f32.mrf.mxu0
  %v873 = vadd.f32 0.0, %v872
  %v874 = vpop.f32.mrf.mxu0
  %v875 = vadd.f32 0.0, %v874
  %v876 = vpop.f32.mrf.mxu0
  %v877 = vadd.f32 0.0, %v876
  %v878 = vpop.f32.mrf.mxu0
  %v879 = vadd.f32 0.0, %v878
  %880 = vmatprep.mubr.bf16.mxu0 %v826
  %881 = vmatmul.mubr.bf16.gmra.mxu0 %v813
  %v882 = vpop.f32.mrf.mxu0
  %v883 = vadd.f32 0.0, %v882
  %v884 = vpop.f32.mrf.mxu0
  %v885 = vadd.f32 0.0, %v884
  %v886 = vpop.f32.mrf.mxu0
  %v887 = vadd.f32 0.0, %v886
  %v888 = vpop.f32.mrf.mxu0
  %v889 = vadd.f32 0.0, %v888
  %890 = vdwg.mxu0
  %891 = vmatprep.subr.bf16.mxu0 %v751
  %892 = vmatpush1.bf16.msra.mxu0 %v750
  %893 = vmatprep.subr.bf16.mxu0 %v724
  %894 = vmatpush1.bf16.msra.mxu0 %v723
  %895 = vmatprep.subr.bf16.mxu0 %v696
  %896 = vmatpush1.bf16.msra.mxu0 %v695
  %897 = vmatprep.subr.bf16.mxu0 %v668
  %898 = vmatpush1.bf16.msra.mxu0 %v667
  %899 = vmatprep.subr.bf16.mxu0 %v640
  %900 = vmatpush1.bf16.msra.mxu0 %v639
  %901 = vmatprep.subr.bf16.mxu0 %v613
  %902 = vmatpush1.bf16.msra.mxu0 %v612
  %903 = vmatprep.subr.bf16.mxu0 %v585
  %904 = vmatpush1.bf16.msra.mxu0 %v584
  %905 = vmatprep.subr.bf16.mxu0 %v560
  %906 = vmatpush1.bf16.msra.mxu0 %v559
  %907 = vmatprep.subr.bf16.mxu0 0
  %908 = vmatpush2.bf16.msra.mxu0 0
  %909 = vmatprep.subr.bf16.mxu0 0
  %910 = vmatpush2.bf16.msra.mxu0 0
  %911 = vmatprep.subr.bf16.mxu0 0
  %912 = vmatpush2.bf16.msra.mxu0 0
  %913 = vmatprep.subr.bf16.mxu0 0
  %914 = vmatpush2.bf16.msra.mxu0 0
  %915 = vmatprep.subr.bf16.mxu0 0
  %916 = vmatpush2.bf16.msra.mxu0 0
  %917 = vmatprep.subr.bf16.mxu0 0
  %918 = vmatpush2.bf16.msra.mxu0 0
  %919 = vmatprep.subr.bf16.mxu0 0
  %920 = vmatpush2.bf16.msra.mxu0 0
  %921 = vmatprep.subr.bf16.mxu0 %v779
  %922 = vmatpush2.bf16.msra.mxu0 %v778
  %923 = vmatprep.mubr.bf16.mxu0 %v820
  %924 = vmatmul.mubr.bf16.gmra.mxu0 %v809
  %v925 = vpop.f32.mrf.mxu0
  %v926 = vadd.f32 0.0, %v925
  %v927 = vpop.f32.mrf.mxu0
  %v928 = vadd.f32 0.0, %v927
  %v929 = vpop.f32.mrf.mxu0
  %v930 = vadd.f32 0.0, %v929
  %v931 = vpop.f32.mrf.mxu0
  %v932 = vadd.f32 0.0, %v931
  %933 = vmatprep.mubr.bf16.mxu0 %v823
  %934 = vmatmul.mubr.bf16.gmra.mxu0 %v811
  %v935 = vpop.f32.mrf.mxu0
  %v936 = vadd.f32 0.0, %v935
  %v937 = vpop.f32.mrf.mxu0
  %v938 = vadd.f32 0.0, %v937
  %v939 = vpop.f32.mrf.mxu0
  %v940 = vadd.f32 0.0, %v939
  %v941 = vpop.f32.mrf.mxu0
  %v942 = vadd.f32 0.0, %v941
  %943 = vmatprep.mubr.bf16.mxu0 %v826
  %944 = vmatmul.mubr.bf16.gmra.mxu0 %v813
  %v945 = vpop.f32.mrf.mxu0
  %v946 = vadd.f32 0.0, %v945
  %v947 = vpop.f32.mrf.mxu0
  %v948 = vadd.f32 0.0, %v947
  %v949 = vpop.f32.mrf.mxu0
  %v950 = vadd.f32 0.0, %v949
  %v951 = vpop.f32.mrf.mxu0
  %v952 = vadd.f32 0.0, %v951
  %953 = vdwg.mxu0
  %954 = vmatprep.subr.bf16.mxu0 %v761
  %955 = vmatpush1.bf16.msra.mxu0 %v752
  %956 = vmatprep.subr.bf16.mxu0 %v733
  %957 = vmatpush1.bf16.msra.mxu0 %v725
  %958 = vmatprep.subr.bf16.mxu0 %v706
  %959 = vmatpush1.bf16.msra.mxu0 %v697
  %960 = vmatprep.subr.bf16.mxu0 %v678
  %961 = vmatpush1.bf16.msra.mxu0 %v669
  %962 = vmatprep.subr.bf16.mxu0 %v650
  %963 = vmatpush1.bf16.msra.mxu0 %v641
  %964 = vmatprep.subr.bf16.mxu0 %v622
  %965 = vmatpush1.bf16.msra.mxu0 %v614
  %966 = vmatprep.subr.bf16.mxu0 %v595
  %967 = vmatpush1.bf16.msra.mxu0 %v586
  %968 = vmatprep.subr.bf16.mxu0 %v562
  %969 = vmatpush1.bf16.msra.mxu0 %v561
  %970 = vmatprep.subr.bf16.mxu0 0
  %971 = vmatpush2.bf16.msra.mxu0 0
  %972 = vmatprep.subr.bf16.mxu0 0
  %973 = vmatpush2.bf16.msra.mxu0 0
  %974 = vmatprep.subr.bf16.mxu0 0
  %975 = vmatpush2.bf16.msra.mxu0 0
  %976 = vmatprep.subr.bf16.mxu0 0
  %977 = vmatpush2.bf16.msra.mxu0 0
  %978 = vmatprep.subr.bf16.mxu0 0
  %979 = vmatpush2.bf16.msra.mxu0 0
  %980 = vmatprep.subr.bf16.mxu0 0
  %981 = vmatpush2.bf16.msra.mxu0 0
  %982 = vmatprep.subr.bf16.mxu0 0
  %983 = vmatpush2.bf16.msra.mxu0 0
  %984 = vmatprep.subr.bf16.mxu0 %v789
  %985 = vmatpush2.bf16.msra.mxu0 %v780
  %986 = vmatprep.mubr.bf16.mxu0 %v820
  %987 = vmatmul.mubr.bf16.gmra.mxu0 %v809
  %v988 = vpop.f32.mrf.mxu0
  %v989 = vadd.f32 0.0, %v988
  %v990 = vpop.f32.mrf.mxu0
  %v991 = vadd.f32 0.0, %v990
  %v992 = vpop.f32.mrf.mxu0
  %v993 = vadd.f32 0.0, %v992
  %v994 = vpop.f32.mrf.mxu0
  %v995 = vadd.f32 0.0, %v994
  %996 = vmatprep.mubr.bf16.mxu0 %v823
  %997 = vmatmul.mubr.bf16.gmra.mxu0 %v811
  %v998 = vpop.f32.mrf.mxu0
  %v999 = vadd.f32 0.0, %v998
  %v1000 = vpop.f32.mrf.mxu0
  %v1001 = vadd.f32 0.0, %v1000
  %v1002 = vpop.f32.mrf.mxu0
  %v1003 = vadd.f32 0.0, %v1002
  %v1004 = vpop.f32.mrf.mxu0
  %v1005 = vadd.f32 0.0, %v1004
  %1006 = vmatprep.mubr.bf16.mxu0 %v826
  %1007 = vmatmul.mubr.bf16.gmra.mxu0 %v813
  %v1008 = vpop.f32.mrf.mxu0
  %v1009 = vadd.f32 0.0, %v1008
  %v1010 = vpop.f32.mrf.mxu0
  %v1011 = vadd.f32 0.0, %v1010
  %v1012 = vpop.f32.mrf.mxu0
  %v1013 = vadd.f32 0.0, %v1012
  %v1014 = vpop.f32.mrf.mxu0
  %v1015 = vadd.f32 0.0, %v1014
  %1016 = vdwg.mxu0
  %v1017 = vld [vmem:[%s5] sm:$0xff]
  %v1018 = vld [vmem:[%s5 + $0x8] sm:$0xff]
  %v1019 = vld [vmem:[%s6] sm:$0xff]
  %v1020 = vld [vmem:[%s6 + $0x8] sm:$0xff]
  %v1022 = vlaneseq
  %v1023 = vshrl.u32 %v1022, 7
  %v1024 = vsub.s32 0, %v1023
  %v1025 = vrot.slane %v29, %v1024
  %v1026 = vlaneseq
  %v1027 = vshrl.u32 %v1026, 7
  %v1028 = vsub.s32 1, %v1027
  %v1029 = vrot.slane %v29, %v1028
  %v1030 = vlaneseq
  %v1031 = vshrl.u32 %v1030, 7
  %v1032 = vsub.s32 2, %v1031
  %v1033 = vrot.slane %v29, %v1032
  %v1034 = vlaneseq
  %v1035 = vshrl.u32 %v1034, 7
  %v1036 = vsub.s32 3, %v1035
  %v1037 = vrot.slane %v29, %v1036
  %v1038 = vlaneseq
  %v1039 = vshrl.u32 %v1038, 7
  %v1040 = vsub.s32 4, %v1039
  %v1041 = vrot.slane %v29, %v1040
  %v1042 = vlaneseq
  %v1043 = vshrl.u32 %v1042, 7
  %v1044 = vsub.s32 5, %v1043
  %v1045 = vrot.slane %v29, %v1044
  %v1052 = vmul.f32 %v863, %v1025
  %v1053 = vmul.f32 %v865, %v1029
  %v1054 = vmul.f32 %v926, %v1033
  %v1055 = vmul.f32 %v928, %v1037
  %v1056 = vmul.f32 %v989, %v1041
  %v1057 = vmul.f32 %v991, %v1045
  %v1058 = vmul.f32 %v867, %v1025
  %v1059 = vmul.f32 %v869, %v1029
  %v1060 = vmul.f32 %v930, %v1033
  %v1061 = vmul.f32 %v932, %v1037
  %v1062 = vmul.f32 %v993, %v1041
  %v1063 = vmul.f32 %v995, %v1045
  %v1064 = vadd.f32 %v1052, %v1053
  %v1065 = vadd.f32 %v1064, %v1054
  %v1066 = vadd.f32 %v1065, %v1055
  %v1067 = vadd.f32 %v1066, %v1056
  %v1068 = vadd.f32 %v1067, %v1057
  %1069 = vadd.xlane.f32.xlu0 %v1068
  %v1070 = vpop.xlane.xlu0 %1069
  %v1071 = vadd.f32 %v1058, %v1059
  %v1072 = vadd.f32 %v1071, %v1060
  %v1073 = vadd.f32 %v1072, %v1061
  %v1074 = vadd.f32 %v1073, %v1062
  %v1075 = vadd.f32 %v1074, %v1063
  %1076 = vadd.xlane.f32.xlu0 %v1075
  %v1077 = vpop.xlane.xlu0 %1076
  %v1078 = vmul.f32 %v1052, %v1052
  %v1079 = vmul.f32 %v1053, %v1053
  %v1080 = vmul.f32 %v1054, %v1054
  %v1081 = vmul.f32 %v1055, %v1055
  %v1082 = vmul.f32 %v1056, %v1056
  %v1083 = vmul.f32 %v1057, %v1057
  %v1084 = vmul.f32 %v1058, %v1058
  %v1085 = vmul.f32 %v1059, %v1059
  %v1086 = vmul.f32 %v1060, %v1060
  %v1087 = vmul.f32 %v1061, %v1061
  %v1088 = vmul.f32 %v1062, %v1062
  %v1089 = vmul.f32 %v1063, %v1063
  %v1090 = vadd.f32 %v1078, %v1079
  %v1091 = vadd.f32 %v1090, %v1080
  %v1092 = vadd.f32 %v1091, %v1081
  %v1093 = vadd.f32 %v1092, %v1082
  %v1094 = vadd.f32 %v1093, %v1083
  %1095 = vadd.xlane.f32.xlu0 %v1094
  %v1096 = vpop.xlane.xlu0 %1095
  %v1097 = vadd.f32 %v1084, %v1085
  %v1098 = vadd.f32 %v1097, %v1086
  %v1099 = vadd.f32 %v1098, %v1087
  %v1100 = vadd.f32 %v1099, %v1088
  %v1101 = vadd.f32 %v1100, %v1089
  %1102 = vadd.xlane.f32.xlu0 %v1101
  %v1103 = vpop.xlane.xlu0 %1102
  %v1104 = vmul.f32 %v1070, 0.001953125
  %v1105 = vmul.f32 %v1077, 0.001953125
  %v1106 = vmul.f32 %v1096, 0.001953125
  %v1107 = vmul.f32 %v1103, 0.001953125
  %v1108 = vmul.f32 %v1104, %v1104
  %v1109 = vmul.f32 %v1105, %v1105
  %v1110 = vsub.f32 %v1106, %v1108
  %v1111 = vsub.f32 %v1107, %v1109
  %v1112 = vmax.f32 %v1110, 0.0
  %v1113 = vmax.f32 %v1111, 0.0
  %v1114 = vsub.f32 %v863, %v1104
  %v1115 = vsub.f32 %v865, %v1104
  %v1116 = vsub.f32 %v926, %v1104
  %v1117 = vsub.f32 %v928, %v1104
  %v1118 = vsub.f32 %v989, %v1104
  %v1119 = vsub.f32 %v991, %v1104
  %v1120 = vsub.f32 %v867, %v1105
  %v1121 = vsub.f32 %v869, %v1105
  %v1122 = vsub.f32 %v930, %v1105
  %v1123 = vsub.f32 %v932, %v1105
  %v1124 = vsub.f32 %v993, %v1105
  %v1125 = vsub.f32 %v995, %v1105
  %v1126 = vadd.f32 %v1112, 1e-05
  %v1127 = vadd.f32 %v1113, 1e-05
  %v1128 = vrsqrt.pop %v1126
  %v1129 = vrsqrt.pop %v1127
  %v1130 = vmul.f32 %v1114, %v1128
  %v1131 = vmul.f32 %v1115, %v1128
  %v1132 = vmul.f32 %v1116, %v1128
  %v1133 = vmul.f32 %v1117, %v1128
  %v1134 = vmul.f32 %v1118, %v1128
  %v1135 = vmul.f32 %v1119, %v1128
  %v1136 = vmul.f32 %v1120, %v1129
  %v1137 = vmul.f32 %v1121, %v1129
  %v1138 = vmul.f32 %v1122, %v1129
  %v1139 = vmul.f32 %v1123, %v1129
  %v1140 = vmul.f32 %v1124, %v1129
  %v1141 = vmul.f32 %v1125, %v1129
  %1143 = vset.pattern.permute.xlu0 0
  %1144 = vperm.xlu0 %1143, %v1017
  %v1145 = vpop.permute.xlu0 %1144
  %1148 = vset.pattern.permute.xlu0 0
  %1149 = vperm.xlu0 %1148, %v1018
  %v1150 = vpop.permute.xlu0 %1149
  %v1152 = vmul.f32 %v1130, %v1145
  %v1153 = vmul.f32 %v1131, %v1145
  %v1154 = vmul.f32 %v1132, %v1145
  %v1155 = vmul.f32 %v1133, %v1145
  %v1156 = vmul.f32 %v1134, %v1145
  %v1157 = vmul.f32 %v1135, %v1145
  %v1158 = vmul.f32 %v1136, %v1150
  %v1159 = vmul.f32 %v1137, %v1150
  %v1160 = vmul.f32 %v1138, %v1150
  %v1161 = vmul.f32 %v1139, %v1150
  %v1162 = vmul.f32 %v1140, %v1150
  %v1163 = vmul.f32 %v1141, %v1150
  %1165 = vset.pattern.permute.xlu0 0
  %1166 = vperm.xlu0 %1165, %v1019
  %v1167 = vpop.permute.xlu0 %1166
  %1170 = vset.pattern.permute.xlu0 0
  %1171 = vperm.xlu0 %1170, %v1020
  %v1172 = vpop.permute.xlu0 %1171
  %v1174 = vadd.f32 %v1152, %v1167
  %v1175 = vadd.f32 %v1153, %v1167
  %v1176 = vadd.f32 %v1154, %v1167
  %v1177 = vadd.f32 %v1155, %v1167
  %v1178 = vadd.f32 %v1156, %v1167
  %v1179 = vadd.f32 %v1157, %v1167
  %v1180 = vadd.f32 %v1158, %v1172
  %v1181 = vadd.f32 %v1159, %v1172
  %v1182 = vadd.f32 %v1160, %v1172
  %v1183 = vadd.f32 %v1161, %v1172
  %v1184 = vadd.f32 %v1162, %v1172
  %v1185 = vadd.f32 %v1163, %v1172
  %v1186 = vmax.f32 %v1174, 0.0
  %v1187 = vmax.f32 %v1175, 0.0
  %v1188 = vmax.f32 %v1176, 0.0
  %v1189 = vmax.f32 %v1177, 0.0
  %v1190 = vmax.f32 %v1178, 0.0
  %v1191 = vmax.f32 %v1179, 0.0
  %v1192 = vmax.f32 %v1180, 0.0
  %v1193 = vmax.f32 %v1181, 0.0
  %v1194 = vmax.f32 %v1182, 0.0
  %v1195 = vmax.f32 %v1183, 0.0
  %v1196 = vmax.f32 %v1184, 0.0
  %v1197 = vmax.f32 %v1185, 0.0
  %1198 = vst [vmem:[%s7 + $0x60] sm:$0xff] %v1186
  %1199 = vst [vmem:[%s7 + $0x68] sm:$0xff] %v1187
  %1200 = vst [vmem:[%s7 + $0x70] sm:$0xff] %v1188
  %1201 = vst [vmem:[%s7 + $0x78] sm:$0xff] %v1189
  %1202 = vst [vmem:[%s7 + $0x80] sm:$0xff] %v1190
  %1203 = vst [vmem:[%s7 + $0x88] sm:$0xff] %v1191
  %1204 = vst [vmem:[%s7 + $0x90] sm:$0xff] %v1192
  %1205 = vst [vmem:[%s7 + $0x98] sm:$0xff] %v1193
  %1206 = vst [vmem:[%s7 + $0xa0] sm:$0xff] %v1194
  %1207 = vst [vmem:[%s7 + $0xa8] sm:$0xff] %v1195
  %1208 = vst [vmem:[%s7 + $0xb0] sm:$0xff] %v1196
  %1209 = vst [vmem:[%s7 + $0xb8] sm:$0xff] %v1197
  %v1210 = vld [vmem:[%s2] sm:$0xff]
  %v1211 = vld [vmem:[%s2 + $0x8] sm:$0xff]
  %v1212 = vld [vmem:[%s2 + $0x10] sm:$0xff]
  %v1213 = vld [vmem:[%s2 + $0x18] sm:$0xff]
  %1216 = vrot.lane.b32.xlu0 %v1191, 19
  %v1217 = vpop.permute.xlu0 %1216
  %1218 = vrot.lane.b32.xlu0 %v1197, 19
  %v1219 = vpop.permute.xlu0 %1218
  %1232 = vrot.lane.b32.xlu0 %v1186, 19
  %v1233 = vpop.permute.xlu0 %1232
  %1234 = vrot.lane.b32.xlu0 %v1187, 19
  %v1235 = vpop.permute.xlu0 %1234
  %1236 = vrot.lane.b32.xlu0 %v1188, 19
  %v1237 = vpop.permute.xlu0 %1236
  %1238 = vrot.lane.b32.xlu0 %v1189, 19
  %v1239 = vpop.permute.xlu0 %1238
  %1240 = vrot.lane.b32.xlu0 %v1190, 19
  %v1241 = vpop.permute.xlu0 %1240
  %1242 = vrot.lane.b32.xlu0 %v1192, 19
  %v1243 = vpop.permute.xlu0 %1242
  %1244 = vrot.lane.b32.xlu0 %v1193, 19
  %v1245 = vpop.permute.xlu0 %1244
  %1246 = vrot.lane.b32.xlu0 %v1194, 19
  %v1247 = vpop.permute.xlu0 %1246
  %1248 = vrot.lane.b32.xlu0 %v1195, 19
  %v1249 = vpop.permute.xlu0 %1248
  %1250 = vrot.lane.b32.xlu0 %v1196, 19
  %v1251 = vpop.permute.xlu0 %1250
  %v1252 = vsel %vm118, %v1233, %v1235
  %v1253 = vsel %vm118, %v1235, %v1237
  %v1254 = vsel %vm118, %v1237, %v1239
  %v1255 = vsel %vm118, %v1239, %v1241
  %v1256 = vsel %vm118, %v1241, %v1217
  %v1257 = vsel %vm118, %v1243, %v1245
  %v1258 = vsel %vm118, %v1245, %v1247
  %v1259 = vsel %vm118, %v1247, %v1249
  %v1260 = vsel %vm118, %v1249, %v1251
  %v1261 = vsel %vm118, %v1251, %v1219
  %v1274 = vsel %vm118, %v1217, %v1233
  %v1275 = vsel %vm118, %v1219, %v1243
  %1278 = vrot.lane.b32.xlu0 %v1274, 126
  %v1279 = vpop.permute.xlu0 %1278
  %1280 = vrot.lane.b32.xlu0 %v1252, 126
  %v1281 = vpop.permute.xlu0 %1280
  %1282 = vrot.lane.b32.xlu0 %v1253, 126
  %v1283 = vpop.permute.xlu0 %1282
  %1284 = vrot.lane.b32.xlu0 %v1254, 126
  %v1285 = vpop.permute.xlu0 %1284
  %1286 = vrot.lane.b32.xlu0 %v1255, 126
  %v1287 = vpop.permute.xlu0 %1286
  %1288 = vrot.lane.b32.xlu0 %v1256, 126
  %v1289 = vpop.permute.xlu0 %1288
  %1290 = vrot.lane.b32.xlu0 %v1275, 126
  %v1291 = vpop.permute.xlu0 %1290
  %1292 = vrot.lane.b32.xlu0 %v1257, 126
  %v1293 = vpop.permute.xlu0 %1292
  %1294 = vrot.lane.b32.xlu0 %v1258, 126
  %v1295 = vpop.permute.xlu0 %1294
  %1296 = vrot.lane.b32.xlu0 %v1259, 126
  %v1297 = vpop.permute.xlu0 %1296
  %1298 = vrot.lane.b32.xlu0 %v1260, 126
  %v1299 = vpop.permute.xlu0 %1298
  %1300 = vrot.lane.b32.xlu0 %v1261, 126
  %v1301 = vpop.permute.xlu0 %1300
  %v1302 = vsel %vm169, %v1279, %v1281
  %v1303 = vsel %vm169, %v1281, %v1283
  %v1304 = vsel %vm169, %v1283, %v1285
  %v1305 = vsel %vm169, %v1285, %v1287
  %v1306 = vsel %vm169, %v1287, %v1289
  %v1307 = vsel %vm169, %v1291, %v1293
  %v1308 = vsel %vm169, %v1293, %v1295
  %v1309 = vsel %vm169, %v1295, %v1297
  %v1310 = vsel %vm169, %v1297, %v1299
  %v1311 = vsel %vm169, %v1299, %v1301
  %v1326 = vsel %vm169, %v1289, %v1279
  %v1327 = vsel %vm169, %v1301, %v1291
  %v1328 = vsel %vm221, %v1302, %v1274
  %v1329 = vsel %vm222, %v1303, %v1252
  %v1330 = vsel %vm223, %v1304, %v1253
  %v1331 = vsel %vm224, %v1305, %v1254
  %v1332 = vsel %vm225, %v1306, %v1255
  %v1333 = vsel %vm226, %v1326, %v1256
  %v1334 = vsel %vm221, %v1307, %v1275
  %v1335 = vsel %vm222, %v1308, %v1257
  %v1336 = vsel %vm223, %v1309, %v1258
  %v1337 = vsel %vm224, %v1310, %v1259
  %v1338 = vsel %vm225, %v1311, %v1260
  %v1339 = vsel %vm226, %v1327, %v1261
  %1342 = vrot.lane.b32.xlu0 %v1333, 2
  %v1343 = vpop.permute.xlu0 %1342
  %1344 = vrot.lane.b32.xlu0 %v1339, 2
  %v1345 = vpop.permute.xlu0 %1344
  %1358 = vrot.lane.b32.xlu0 %v1328, 2
  %v1359 = vpop.permute.xlu0 %1358
  %1360 = vrot.lane.b32.xlu0 %v1329, 2
  %v1361 = vpop.permute.xlu0 %1360
  %1362 = vrot.lane.b32.xlu0 %v1330, 2
  %v1363 = vpop.permute.xlu0 %1362
  %1364 = vrot.lane.b32.xlu0 %v1331, 2
  %v1365 = vpop.permute.xlu0 %1364
  %1366 = vrot.lane.b32.xlu0 %v1332, 2
  %v1367 = vpop.permute.xlu0 %1366
  %1368 = vrot.lane.b32.xlu0 %v1334, 2
  %v1369 = vpop.permute.xlu0 %1368
  %1370 = vrot.lane.b32.xlu0 %v1335, 2
  %v1371 = vpop.permute.xlu0 %1370
  %1372 = vrot.lane.b32.xlu0 %v1336, 2
  %v1373 = vpop.permute.xlu0 %1372
  %1374 = vrot.lane.b32.xlu0 %v1337, 2
  %v1375 = vpop.permute.xlu0 %1374
  %1376 = vrot.lane.b32.xlu0 %v1338, 2
  %v1377 = vpop.permute.xlu0 %1376
  %v1378 = vsel %vm277, %v1359, %v1361
  %v1379 = vsel %vm277, %v1361, %v1363
  %v1380 = vsel %vm277, %v1363, %v1365
  %v1381 = vsel %vm277, %v1365, %v1367
  %v1382 = vsel %vm277, %v1367, %v1343
  %v1383 = vsel %vm277, %v1369, %v1371
  %v1384 = vsel %vm277, %v1371, %v1373
  %v1385 = vsel %vm277, %v1373, %v1375
  %v1386 = vsel %vm277, %v1375, %v1377
  %v1387 = vsel %vm277, %v1377, %v1345
  %v1400 = vsel %vm277, %v1343, %v1359
  %v1401 = vsel %vm277, %v1345, %v1369
  %v1402 = vsel %vm327, %v1400, %v1328
  %v1403 = vsel %vm328, %v1378, %v1329
  %v1404 = vsel %vm329, %v1379, %v1330
  %v1405 = vsel %vm330, %v1380, %v1331
  %v1406 = vsel %vm331, %v1381, %v1332
  %v1407 = vsel %vm332, %v1382, %v1333
  %v1408 = vsel %vm327, %v1401, %v1334
  %v1409 = vsel %vm328, %v1383, %v1335
  %v1410 = vsel %vm329, %v1384, %v1336
  %v1411 = vsel %vm330, %v1385, %v1337
  %v1412 = vsel %vm331, %v1386, %v1338
  %v1413 = vsel %vm332, %v1387, %v1339
  %1426 = vrot.lane.b32.xlu0 %v1402, 92
  %v1427 = vpop.permute.xlu0 %1426
  %1428 = vrot.lane.b32.xlu0 %v1403, 92
  %v1429 = vpop.permute.xlu0 %1428
  %1430 = vrot.lane.b32.xlu0 %v1404, 92
  %v1431 = vpop.permute.xlu0 %1430
  %1432 = vrot.lane.b32.xlu0 %v1405, 92
  %v1433 = vpop.permute.xlu0 %1432
  %1434 = vrot.lane.b32.xlu0 %v1406, 92
  %v1435 = vpop.permute.xlu0 %1434
  %1436 = vrot.lane.b32.xlu0 %v1407, 92
  %v1437 = vpop.permute.xlu0 %1436
  %1438 = vrot.lane.b32.xlu0 %v1408, 92
  %v1439 = vpop.permute.xlu0 %1438
  %1440 = vrot.lane.b32.xlu0 %v1409, 92
  %v1441 = vpop.permute.xlu0 %1440
  %1442 = vrot.lane.b32.xlu0 %v1410, 92
  %v1443 = vpop.permute.xlu0 %1442
  %1444 = vrot.lane.b32.xlu0 %v1411, 92
  %v1445 = vpop.permute.xlu0 %1444
  %1446 = vrot.lane.b32.xlu0 %v1412, 92
  %v1447 = vpop.permute.xlu0 %1446
  %1448 = vrot.lane.b32.xlu0 %v1413, 92
  %v1449 = vpop.permute.xlu0 %1448
  %v1450 = vsel %vm381, %v1427, %v1429
  %v1451 = vsel %vm381, %v1429, %v1431
  %v1452 = vsel %vm381, %v1431, %v1433
  %v1453 = vsel %vm381, %v1433, %v1435
  %v1454 = vsel %vm381, %v1435, %v1437
  %v1455 = vsel %vm381, %v1439, %v1441
  %v1456 = vsel %vm381, %v1441, %v1443
  %v1457 = vsel %vm381, %v1443, %v1445
  %v1458 = vsel %vm381, %v1445, %v1447
  %v1459 = vsel %vm381, %v1447, %v1449
  %v1474 = vsel %vm381, %v1437, %v1427
  %v1475 = vsel %vm381, %v1449, %v1439
  %v1476 = vsel %vm433, %v1450, %v1402
  %v1477 = vsel %vm434, %v1451, %v1403
  %v1478 = vsel %vm435, %v1452, %v1404
  %v1479 = vsel %vm436, %v1453, %v1405
  %v1480 = vsel %vm437, %v1454, %v1406
  %v1481 = vsel %vm438, %v1474, %v1407
  %v1482 = vsel %vm433, %v1455, %v1408
  %v1483 = vsel %vm434, %v1456, %v1409
  %v1484 = vsel %vm435, %v1457, %v1410
  %v1485 = vsel %vm436, %v1458, %v1411
  %v1486 = vsel %vm437, %v1459, %v1412
  %v1487 = vsel %vm438, %v1475, %v1413
  %1490 = vrot.lane.b32.xlu0 %v1481, 36
  %v1491 = vpop.permute.xlu0 %1490
  %1492 = vrot.lane.b32.xlu0 %v1487, 36
  %v1493 = vpop.permute.xlu0 %1492
  %1506 = vrot.lane.b32.xlu0 %v1476, 36
  %v1507 = vpop.permute.xlu0 %1506
  %1508 = vrot.lane.b32.xlu0 %v1477, 36
  %v1509 = vpop.permute.xlu0 %1508
  %1510 = vrot.lane.b32.xlu0 %v1478, 36
  %v1511 = vpop.permute.xlu0 %1510
  %1512 = vrot.lane.b32.xlu0 %v1479, 36
  %v1513 = vpop.permute.xlu0 %1512
  %1514 = vrot.lane.b32.xlu0 %v1480, 36
  %v1515 = vpop.permute.xlu0 %1514
  %1516 = vrot.lane.b32.xlu0 %v1482, 36
  %v1517 = vpop.permute.xlu0 %1516
  %1518 = vrot.lane.b32.xlu0 %v1483, 36
  %v1519 = vpop.permute.xlu0 %1518
  %1520 = vrot.lane.b32.xlu0 %v1484, 36
  %v1521 = vpop.permute.xlu0 %1520
  %1522 = vrot.lane.b32.xlu0 %v1485, 36
  %v1523 = vpop.permute.xlu0 %1522
  %1524 = vrot.lane.b32.xlu0 %v1486, 36
  %v1525 = vpop.permute.xlu0 %1524
  %v1526 = vsel %vm489, %v1507, %v1509
  %v1527 = vsel %vm489, %v1509, %v1511
  %v1528 = vsel %vm489, %v1511, %v1513
  %v1529 = vsel %vm489, %v1513, %v1515
  %v1530 = vsel %vm489, %v1515, %v1491
  %v1531 = vsel %vm489, %v1517, %v1519
  %v1532 = vsel %vm489, %v1519, %v1521
  %v1533 = vsel %vm489, %v1521, %v1523
  %v1534 = vsel %vm489, %v1523, %v1525
  %v1535 = vsel %vm489, %v1525, %v1493
  %v1548 = vsel %vm489, %v1491, %v1507
  %v1549 = vsel %vm489, %v1493, %v1517
  %v1550 = vsel %vm539, %v1548, %v1476
  %v1551 = vsel %vm540, %v1526, %v1477
  %v1552 = vsel %vm541, %v1527, %v1478
  %v1553 = vsel %vm542, %v1528, %v1479
  %v1554 = vsel %vm543, %v1529, %v1480
  %v1555 = vsel %vm544, %v1530, %v1481
  %v1556 = vsel %vm539, %v1549, %v1482
  %v1557 = vsel %vm540, %v1531, %v1483
  %v1558 = vsel %vm541, %v1532, %v1484
  %v1559 = vsel %vm542, %v1533, %v1485
  %v1560 = vsel %vm543, %v1534, %v1486
  %v1561 = vsel %vm544, %v1535, %v1487
  %v1562 = vpack.c.bf16 %v1556, %v1550
  %v1563 = vpack.c.bf16 %v1557, %v1551
  %v1564 = vpack.c.bf16 %v1558, %v1552
  %v1565 = vpack.c.bf16 %v1559, %v1553
  %v1566 = vpack.c.bf16 %v1560, %v1554
  %v1567 = vpack.c.bf16 %v1561, %v1555
  %1574 = vrot.lane.b32.xlu0 %v1562, 127
  %v1575 = vpop.permute.xlu0 %1574
  %1576 = vrot.lane.b32.xlu0 %v1563, 127
  %v1577 = vpop.permute.xlu0 %1576
  %1578 = vrot.lane.b32.xlu0 %v1564, 127
  %v1579 = vpop.permute.xlu0 %1578
  %1580 = vrot.lane.b32.xlu0 %v1565, 127
  %v1581 = vpop.permute.xlu0 %1580
  %1582 = vrot.lane.b32.xlu0 %v1566, 127
  %v1583 = vpop.permute.xlu0 %1582
  %1584 = vrot.lane.b32.xlu0 %v1567, 127
  %v1585 = vpop.permute.xlu0 %1584
  %v1586 = vsel %vm581, %v1575, %v1577
  %v1587 = vsel %vm581, %v1577, %v1579
  %v1588 = vsel %vm581, %v1579, %v1581
  %v1589 = vsel %vm581, %v1581, %v1583
  %v1590 = vsel %vm581, %v1583, %v1585
  %v1598 = vsel %vm592, %v1585, %v1575
  %1600 = vrot.lane.b32.xlu0 %v1562, 126
  %v1601 = vpop.permute.xlu0 %1600
  %1602 = vrot.lane.b32.xlu0 %v1563, 126
  %v1603 = vpop.permute.xlu0 %1602
  %1604 = vrot.lane.b32.xlu0 %v1564, 126
  %v1605 = vpop.permute.xlu0 %1604
  %1606 = vrot.lane.b32.xlu0 %v1565, 126
  %v1607 = vpop.permute.xlu0 %1606
  %1608 = vrot.lane.b32.xlu0 %v1566, 126
  %v1609 = vpop.permute.xlu0 %1608
  %1610 = vrot.lane.b32.xlu0 %v1567, 126
  %v1611 = vpop.permute.xlu0 %1610
  %v1612 = vsel %vm609, %v1601, %v1603
  %v1613 = vsel %vm609, %v1603, %v1605
  %v1614 = vsel %vm609, %v1605, %v1607
  %v1615 = vsel %vm609, %v1607, %v1609
  %v1616 = vsel %vm609, %v1609, %v1611
  %v1624 = vsel %vm169, %v1611, %v1601
  %1626 = vrot.lane.b32.xlu0 %v1562, 110
  %v1627 = vpop.permute.xlu0 %1626
  %1628 = vrot.lane.b32.xlu0 %v1563, 110
  %v1629 = vpop.permute.xlu0 %1628
  %1630 = vrot.lane.b32.xlu0 %v1564, 110
  %v1631 = vpop.permute.xlu0 %1630
  %1632 = vrot.lane.b32.xlu0 %v1565, 110
  %v1633 = vpop.permute.xlu0 %1632
  %1634 = vrot.lane.b32.xlu0 %v1566, 110
  %v1635 = vpop.permute.xlu0 %1634
  %1636 = vrot.lane.b32.xlu0 %v1567, 110
  %v1637 = vpop.permute.xlu0 %1636
  %v1638 = vsel %vm636, %v1627, %v1629
  %v1639 = vsel %vm636, %v1629, %v1631
  %v1640 = vsel %vm636, %v1631, %v1633
  %v1641 = vsel %vm636, %v1633, %v1635
  %v1642 = vsel %vm636, %v1635, %v1637
  %v1650 = vsel %vm647, %v1637, %v1627
  %1652 = vrot.lane.b32.xlu0 %v1562, 109
  %v1653 = vpop.permute.xlu0 %1652
  %1654 = vrot.lane.b32.xlu0 %v1563, 109
  %v1655 = vpop.permute.xlu0 %1654
  %1656 = vrot.lane.b32.xlu0 %v1564, 109
  %v1657 = vpop.permute.xlu0 %1656
  %1658 = vrot.lane.b32.xlu0 %v1565, 109
  %v1659 = vpop.permute.xlu0 %1658
  %1660 = vrot.lane.b32.xlu0 %v1566, 109
  %v1661 = vpop.permute.xlu0 %1660
  %1662 = vrot.lane.b32.xlu0 %v1567, 109
  %v1663 = vpop.permute.xlu0 %1662
  %v1664 = vsel %vm664, %v1653, %v1655
  %v1665 = vsel %vm664, %v1655, %v1657
  %v1666 = vsel %vm664, %v1657, %v1659
  %v1667 = vsel %vm664, %v1659, %v1661
  %v1668 = vsel %vm664, %v1661, %v1663
  %v1676 = vsel %vm675, %v1663, %v1653
  %1678 = vrot.lane.b32.xlu0 %v1562, 108
  %v1679 = vpop.permute.xlu0 %1678
  %1680 = vrot.lane.b32.xlu0 %v1563, 108
  %v1681 = vpop.permute.xlu0 %1680
  %1682 = vrot.lane.b32.xlu0 %v1564, 108
  %v1683 = vpop.permute.xlu0 %1682
  %1684 = vrot.lane.b32.xlu0 %v1565, 108
  %v1685 = vpop.permute.xlu0 %1684
  %1686 = vrot.lane.b32.xlu0 %v1566, 108
  %v1687 = vpop.permute.xlu0 %1686
  %1688 = vrot.lane.b32.xlu0 %v1567, 108
  %v1689 = vpop.permute.xlu0 %1688
  %v1690 = vsel %vm692, %v1679, %v1681
  %v1691 = vsel %vm692, %v1681, %v1683
  %v1692 = vsel %vm692, %v1683, %v1685
  %v1693 = vsel %vm692, %v1685, %v1687
  %v1694 = vsel %vm692, %v1687, %v1689
  %v1702 = vsel %vm703, %v1689, %v1679
  %1704 = vrot.lane.b32.xlu0 %v1562, 92
  %v1705 = vpop.permute.xlu0 %1704
  %1706 = vrot.lane.b32.xlu0 %v1563, 92
  %v1707 = vpop.permute.xlu0 %1706
  %1708 = vrot.lane.b32.xlu0 %v1564, 92
  %v1709 = vpop.permute.xlu0 %1708
  %1710 = vrot.lane.b32.xlu0 %v1565, 92
  %v1711 = vpop.permute.xlu0 %1710
  %1712 = vrot.lane.b32.xlu0 %v1566, 92
  %v1713 = vpop.permute.xlu0 %1712
  %1714 = vrot.lane.b32.xlu0 %v1567, 92
  %v1715 = vpop.permute.xlu0 %1714
  %v1716 = vsel %vm720, %v1705, %v1707
  %v1717 = vsel %vm720, %v1707, %v1709
  %v1718 = vsel %vm720, %v1709, %v1711
  %v1719 = vsel %vm720, %v1711, %v1713
  %v1720 = vsel %vm720, %v1713, %v1715
  %v1728 = vsel %vm381, %v1715, %v1705
  %1730 = vrot.lane.b32.xlu0 %v1562, 91
  %v1731 = vpop.permute.xlu0 %1730
  %1732 = vrot.lane.b32.xlu0 %v1563, 91
  %v1733 = vpop.permute.xlu0 %1732
  %1734 = vrot.lane.b32.xlu0 %v1564, 91
  %v1735 = vpop.permute.xlu0 %1734
  %1736 = vrot.lane.b32.xlu0 %v1565, 91
  %v1737 = vpop.permute.xlu0 %1736
  %1738 = vrot.lane.b32.xlu0 %v1566, 91
  %v1739 = vpop.permute.xlu0 %1738
  %1740 = vrot.lane.b32.xlu0 %v1567, 91
  %v1741 = vpop.permute.xlu0 %1740
  %v1742 = vsel %vm747, %v1731, %v1733
  %v1743 = vsel %vm747, %v1733, %v1735
  %v1744 = vsel %vm747, %v1735, %v1737
  %v1745 = vsel %vm747, %v1737, %v1739
  %v1746 = vsel %vm747, %v1739, %v1741
  %v1754 = vsel %vm758, %v1741, %v1731
  %1756 = vrot.lane.b32.xlu0 %v1562, 90
  %v1757 = vpop.permute.xlu0 %1756
  %1758 = vrot.lane.b32.xlu0 %v1563, 90
  %v1759 = vpop.permute.xlu0 %1758
  %1760 = vrot.lane.b32.xlu0 %v1564, 90
  %v1761 = vpop.permute.xlu0 %1760
  %1762 = vrot.lane.b32.xlu0 %v1565, 90
  %v1763 = vpop.permute.xlu0 %1762
  %1764 = vrot.lane.b32.xlu0 %v1566, 90
  %v1765 = vpop.permute.xlu0 %1764
  %1766 = vrot.lane.b32.xlu0 %v1567, 90
  %v1767 = vpop.permute.xlu0 %1766
  %v1768 = vsel %vm775, %v1757, %v1759
  %v1769 = vsel %vm775, %v1759, %v1761
  %v1770 = vsel %vm775, %v1761, %v1763
  %v1771 = vsel %vm775, %v1763, %v1765
  %v1772 = vsel %vm775, %v1765, %v1767
  %v1780 = vsel %vm786, %v1767, %v1757
  %v1786 = vunpack.c.l.b16 %v1210
  %v1787 = vunpack.c.h.b16 %v1210
  %v1788 = vunpack.c.l.b16 %v1211
  %v1789 = vunpack.c.h.b16 %v1211
  %v1790 = vunpack.c.l.b16 %v1212
  %v1791 = vunpack.c.h.b16 %v1212
  %v1792 = vunpack.c.l.b16 %v1213
  %v1793 = vunpack.c.h.b16 %v1213
  %v1794 = vpack.c.b16 %v1788, %v1786
  %v1795 = vpack.c.b16 %v1789, %v1787
  %v1796 = vpack.c.b16 %v1792, %v1790
  %v1797 = vpack.c.b16 %v1793, %v1791
  %v1801 = vsel %vm818, %v1795, 0
  %v1804 = vsel %vm818, %v1797, 0
  %1806 = vmatprep.subr.bf16.mxu0 %v1743
  %1807 = vmatpush1.bf16.msra.mxu0 %v1742
  %1808 = vmatprep.subr.bf16.mxu0 %v1717
  %1809 = vmatpush1.bf16.msra.mxu0 %v1716
  %1810 = vmatprep.subr.bf16.mxu0 %v1691
  %1811 = vmatpush1.bf16.msra.mxu0 %v1690
  %1812 = vmatprep.subr.bf16.mxu0 %v1665
  %1813 = vmatpush1.bf16.msra.mxu0 %v1664
  %1814 = vmatprep.subr.bf16.mxu0 %v1639
  %1815 = vmatpush1.bf16.msra.mxu0 %v1638
  %1816 = vmatprep.subr.bf16.mxu0 %v1613
  %1817 = vmatpush1.bf16.msra.mxu0 %v1612
  %1818 = vmatprep.subr.bf16.mxu0 %v1587
  %1819 = vmatpush1.bf16.msra.mxu0 %v1586
  %1820 = vmatprep.subr.bf16.mxu0 %v1563
  %1821 = vmatpush1.bf16.msra.mxu0 %v1562
  %1822 = vmatprep.subr.bf16.mxu0 0
  %1823 = vmatpush2.bf16.msra.mxu0 0
  %1824 = vmatprep.subr.bf16.mxu0 0
  %1825 = vmatpush2.bf16.msra.mxu0 0
  %1826 = vmatprep.subr.bf16.mxu0 0
  %1827 = vmatpush2.bf16.msra.mxu0 0
  %1828 = vmatprep.subr.bf16.mxu0 0
  %1829 = vmatpush2.bf16.msra.mxu0 0
  %1830 = vmatprep.subr.bf16.mxu0 0
  %1831 = vmatpush2.bf16.msra.mxu0 0
  %1832 = vmatprep.subr.bf16.mxu0 0
  %1833 = vmatpush2.bf16.msra.mxu0 0
  %1834 = vmatprep.subr.bf16.mxu0 0
  %1835 = vmatpush2.bf16.msra.mxu0 0
  %1836 = vmatprep.subr.bf16.mxu0 %v1769
  %1837 = vmatpush2.bf16.msra.mxu0 %v1768
  %1838 = vmatprep.mubr.bf16.mxu0 %v1801
  %1839 = vmatmul.mubr.bf16.gmra.mxu0 %v1794
  %v1840 = vpop.f32.mrf.mxu0
  %v1841 = vadd.f32 0.0, %v1840
  %v1842 = vpop.f32.mrf.mxu0
  %v1843 = vadd.f32 0.0, %v1842
  %v1844 = vpop.f32.mrf.mxu0
  %v1845 = vadd.f32 0.0, %v1844
  %v1846 = vpop.f32.mrf.mxu0
  %v1847 = vadd.f32 0.0, %v1846
  %1848 = vmatprep.mubr.bf16.mxu0 %v1804
  %1849 = vmatmul.mubr.bf16.gmra.mxu0 %v1796
  %v1850 = vpop.f32.mrf.mxu0
  %v1851 = vadd.f32 0.0, %v1850
  %v1852 = vpop.f32.mrf.mxu0
  %v1853 = vadd.f32 0.0, %v1852
  %v1854 = vpop.f32.mrf.mxu0
  %v1855 = vadd.f32 0.0, %v1854
  %v1856 = vpop.f32.mrf.mxu0
  %v1857 = vadd.f32 0.0, %v1856
  %1858 = vdwg.mxu0
  %1859 = vmatprep.subr.bf16.mxu0 %v1745
  %1860 = vmatpush1.bf16.msra.mxu0 %v1744
  %1861 = vmatprep.subr.bf16.mxu0 %v1719
  %1862 = vmatpush1.bf16.msra.mxu0 %v1718
  %1863 = vmatprep.subr.bf16.mxu0 %v1693
  %1864 = vmatpush1.bf16.msra.mxu0 %v1692
  %1865 = vmatprep.subr.bf16.mxu0 %v1667
  %1866 = vmatpush1.bf16.msra.mxu0 %v1666
  %1867 = vmatprep.subr.bf16.mxu0 %v1641
  %1868 = vmatpush1.bf16.msra.mxu0 %v1640
  %1869 = vmatprep.subr.bf16.mxu0 %v1615
  %1870 = vmatpush1.bf16.msra.mxu0 %v1614
  %1871 = vmatprep.subr.bf16.mxu0 %v1589
  %1872 = vmatpush1.bf16.msra.mxu0 %v1588
  %1873 = vmatprep.subr.bf16.mxu0 %v1565
  %1874 = vmatpush1.bf16.msra.mxu0 %v1564
  %1875 = vmatprep.subr.bf16.mxu0 0
  %1876 = vmatpush2.bf16.msra.mxu0 0
  %1877 = vmatprep.subr.bf16.mxu0 0
  %1878 = vmatpush2.bf16.msra.mxu0 0
  %1879 = vmatprep.subr.bf16.mxu0 0
  %1880 = vmatpush2.bf16.msra.mxu0 0
  %1881 = vmatprep.subr.bf16.mxu0 0
  %1882 = vmatpush2.bf16.msra.mxu0 0
  %1883 = vmatprep.subr.bf16.mxu0 0
  %1884 = vmatpush2.bf16.msra.mxu0 0
  %1885 = vmatprep.subr.bf16.mxu0 0
  %1886 = vmatpush2.bf16.msra.mxu0 0
  %1887 = vmatprep.subr.bf16.mxu0 0
  %1888 = vmatpush2.bf16.msra.mxu0 0
  %1889 = vmatprep.subr.bf16.mxu0 %v1771
  %1890 = vmatpush2.bf16.msra.mxu0 %v1770
  %1891 = vmatprep.mubr.bf16.mxu0 %v1801
  %1892 = vmatmul.mubr.bf16.gmra.mxu0 %v1794
  %v1893 = vpop.f32.mrf.mxu0
  %v1894 = vadd.f32 0.0, %v1893
  %v1895 = vpop.f32.mrf.mxu0
  %v1896 = vadd.f32 0.0, %v1895
  %v1897 = vpop.f32.mrf.mxu0
  %v1898 = vadd.f32 0.0, %v1897
  %v1899 = vpop.f32.mrf.mxu0
  %v1900 = vadd.f32 0.0, %v1899
  %1901 = vmatprep.mubr.bf16.mxu0 %v1804
  %1902 = vmatmul.mubr.bf16.gmra.mxu0 %v1796
  %v1903 = vpop.f32.mrf.mxu0
  %v1904 = vadd.f32 0.0, %v1903
  %v1905 = vpop.f32.mrf.mxu0
  %v1906 = vadd.f32 0.0, %v1905
  %v1907 = vpop.f32.mrf.mxu0
  %v1908 = vadd.f32 0.0, %v1907
  %v1909 = vpop.f32.mrf.mxu0
  %v1910 = vadd.f32 0.0, %v1909
  %1911 = vdwg.mxu0
  %1912 = vmatprep.subr.bf16.mxu0 %v1754
  %1913 = vmatpush1.bf16.msra.mxu0 %v1746
  %1914 = vmatprep.subr.bf16.mxu0 %v1728
  %1915 = vmatpush1.bf16.msra.mxu0 %v1720
  %1916 = vmatprep.subr.bf16.mxu0 %v1702
  %1917 = vmatpush1.bf16.msra.mxu0 %v1694
  %1918 = vmatprep.subr.bf16.mxu0 %v1676
  %1919 = vmatpush1.bf16.msra.mxu0 %v1668
  %1920 = vmatprep.subr.bf16.mxu0 %v1650
  %1921 = vmatpush1.bf16.msra.mxu0 %v1642
  %1922 = vmatprep.subr.bf16.mxu0 %v1624
  %1923 = vmatpush1.bf16.msra.mxu0 %v1616
  %1924 = vmatprep.subr.bf16.mxu0 %v1598
  %1925 = vmatpush1.bf16.msra.mxu0 %v1590
  %1926 = vmatprep.subr.bf16.mxu0 %v1567
  %1927 = vmatpush1.bf16.msra.mxu0 %v1566
  %1928 = vmatprep.subr.bf16.mxu0 0
  %1929 = vmatpush2.bf16.msra.mxu0 0
  %1930 = vmatprep.subr.bf16.mxu0 0
  %1931 = vmatpush2.bf16.msra.mxu0 0
  %1932 = vmatprep.subr.bf16.mxu0 0
  %1933 = vmatpush2.bf16.msra.mxu0 0
  %1934 = vmatprep.subr.bf16.mxu0 0
  %1935 = vmatpush2.bf16.msra.mxu0 0
  %1936 = vmatprep.subr.bf16.mxu0 0
  %1937 = vmatpush2.bf16.msra.mxu0 0
  %1938 = vmatprep.subr.bf16.mxu0 0
  %1939 = vmatpush2.bf16.msra.mxu0 0
  %1940 = vmatprep.subr.bf16.mxu0 0
  %1941 = vmatpush2.bf16.msra.mxu0 0
  %1942 = vmatprep.subr.bf16.mxu0 %v1780
  %1943 = vmatpush2.bf16.msra.mxu0 %v1772
  %1944 = vmatprep.mubr.bf16.mxu0 %v1801
  %1945 = vmatmul.mubr.bf16.gmra.mxu0 %v1794
  %v1946 = vpop.f32.mrf.mxu0
  %v1947 = vadd.f32 0.0, %v1946
  %v1948 = vpop.f32.mrf.mxu0
  %v1949 = vadd.f32 0.0, %v1948
  %v1950 = vpop.f32.mrf.mxu0
  %v1951 = vadd.f32 0.0, %v1950
  %v1952 = vpop.f32.mrf.mxu0
  %v1953 = vadd.f32 0.0, %v1952
  %1954 = vmatprep.mubr.bf16.mxu0 %v1804
  %1955 = vmatmul.mubr.bf16.gmra.mxu0 %v1796
  %v1956 = vpop.f32.mrf.mxu0
  %v1957 = vadd.f32 0.0, %v1956
  %v1958 = vpop.f32.mrf.mxu0
  %v1959 = vadd.f32 0.0, %v1958
  %v1960 = vpop.f32.mrf.mxu0
  %v1961 = vadd.f32 0.0, %v1960
  %v1962 = vpop.f32.mrf.mxu0
  %v1963 = vadd.f32 0.0, %v1962
  %1964 = vdwg.mxu0
  %v1965 = vadd.f32 %v873, %v1841
  %v1966 = vadd.f32 %v875, %v1843
  %v1967 = vadd.f32 %v936, %v1894
  %v1968 = vadd.f32 %v938, %v1896
  %v1969 = vadd.f32 %v999, %v1947
  %v1970 = vadd.f32 %v1001, %v1949
  %v1971 = vadd.f32 %v877, %v1845
  %v1972 = vadd.f32 %v879, %v1847
  %v1973 = vadd.f32 %v940, %v1898
  %v1974 = vadd.f32 %v942, %v1900
  %v1975 = vadd.f32 %v1003, %v1951
  %v1976 = vadd.f32 %v1005, %v1953
  %v1977 = vld [vmem:[%s5 + $0x10] sm:$0xff]
  %v1978 = vld [vmem:[%s5 + $0x18] sm:$0xff]
  %v1979 = vld [vmem:[%s6 + $0x10] sm:$0xff]
  %v1980 = vld [vmem:[%s6 + $0x18] sm:$0xff]
  %v1981 = vmul.f32 %v1965, %v1025
  %v1982 = vmul.f32 %v1966, %v1029
  %v1983 = vmul.f32 %v1967, %v1033
  %v1984 = vmul.f32 %v1968, %v1037
  %v1985 = vmul.f32 %v1969, %v1041
  %v1986 = vmul.f32 %v1970, %v1045
  %v1987 = vmul.f32 %v1971, %v1025
  %v1988 = vmul.f32 %v1972, %v1029
  %v1989 = vmul.f32 %v1973, %v1033
  %v1990 = vmul.f32 %v1974, %v1037
  %v1991 = vmul.f32 %v1975, %v1041
  %v1992 = vmul.f32 %v1976, %v1045
  %v1993 = vadd.f32 %v1981, %v1982
  %v1994 = vadd.f32 %v1993, %v1983
  %v1995 = vadd.f32 %v1994, %v1984
  %v1996 = vadd.f32 %v1995, %v1985
  %v1997 = vadd.f32 %v1996, %v1986
  %1998 = vadd.xlane.f32.xlu0 %v1997
  %v1999 = vpop.xlane.xlu0 %1998
  %v2000 = vadd.f32 %v1987, %v1988
  %v2001 = vadd.f32 %v2000, %v1989
  %v2002 = vadd.f32 %v2001, %v1990
  %v2003 = vadd.f32 %v2002, %v1991
  %v2004 = vadd.f32 %v2003, %v1992
  %2005 = vadd.xlane.f32.xlu0 %v2004
  %v2006 = vpop.xlane.xlu0 %2005
  %v2007 = vmul.f32 %v1981, %v1981
  %v2008 = vmul.f32 %v1982, %v1982
  %v2009 = vmul.f32 %v1983, %v1983
  %v2010 = vmul.f32 %v1984, %v1984
  %v2011 = vmul.f32 %v1985, %v1985
  %v2012 = vmul.f32 %v1986, %v1986
  %v2013 = vmul.f32 %v1987, %v1987
  %v2014 = vmul.f32 %v1988, %v1988
  %v2015 = vmul.f32 %v1989, %v1989
  %v2016 = vmul.f32 %v1990, %v1990
  %v2017 = vmul.f32 %v1991, %v1991
  %v2018 = vmul.f32 %v1992, %v1992
  %v2019 = vadd.f32 %v2007, %v2008
  %v2020 = vadd.f32 %v2019, %v2009
  %v2021 = vadd.f32 %v2020, %v2010
  %v2022 = vadd.f32 %v2021, %v2011
  %v2023 = vadd.f32 %v2022, %v2012
  %2024 = vadd.xlane.f32.xlu0 %v2023
  %v2025 = vpop.xlane.xlu0 %2024
  %v2026 = vadd.f32 %v2013, %v2014
  %v2027 = vadd.f32 %v2026, %v2015
  %v2028 = vadd.f32 %v2027, %v2016
  %v2029 = vadd.f32 %v2028, %v2017
  %v2030 = vadd.f32 %v2029, %v2018
  %2031 = vadd.xlane.f32.xlu0 %v2030
  %v2032 = vpop.xlane.xlu0 %2031
  %v2033 = vmul.f32 %v1999, 0.001953125
  %v2034 = vmul.f32 %v2006, 0.001953125
  %v2035 = vmul.f32 %v2025, 0.001953125
  %v2036 = vmul.f32 %v2032, 0.001953125
  %v2037 = vmul.f32 %v2033, %v2033
  %v2038 = vmul.f32 %v2034, %v2034
  %v2039 = vsub.f32 %v2035, %v2037
  %v2040 = vsub.f32 %v2036, %v2038
  %v2041 = vmax.f32 %v2039, 0.0
  %v2042 = vmax.f32 %v2040, 0.0
  %v2043 = vsub.f32 %v1965, %v2033
  %v2044 = vsub.f32 %v1966, %v2033
  %v2045 = vsub.f32 %v1967, %v2033
  %v2046 = vsub.f32 %v1968, %v2033
  %v2047 = vsub.f32 %v1969, %v2033
  %v2048 = vsub.f32 %v1970, %v2033
  %v2049 = vsub.f32 %v1971, %v2034
  %v2050 = vsub.f32 %v1972, %v2034
  %v2051 = vsub.f32 %v1973, %v2034
  %v2052 = vsub.f32 %v1974, %v2034
  %v2053 = vsub.f32 %v1975, %v2034
  %v2054 = vsub.f32 %v1976, %v2034
  %v2055 = vadd.f32 %v2041, 1e-05
  %v2056 = vadd.f32 %v2042, 1e-05
  %v2057 = vrsqrt.pop %v2055
  %v2058 = vrsqrt.pop %v2056
  %v2059 = vmul.f32 %v2043, %v2057
  %v2060 = vmul.f32 %v2044, %v2057
  %v2061 = vmul.f32 %v2045, %v2057
  %v2062 = vmul.f32 %v2046, %v2057
  %v2063 = vmul.f32 %v2047, %v2057
  %v2064 = vmul.f32 %v2048, %v2057
  %v2065 = vmul.f32 %v2049, %v2058
  %v2066 = vmul.f32 %v2050, %v2058
  %v2067 = vmul.f32 %v2051, %v2058
  %v2068 = vmul.f32 %v2052, %v2058
  %v2069 = vmul.f32 %v2053, %v2058
  %v2070 = vmul.f32 %v2054, %v2058
  %2072 = vset.pattern.permute.xlu0 0
  %2073 = vperm.xlu0 %2072, %v1977
  %v2074 = vpop.permute.xlu0 %2073
  %2077 = vset.pattern.permute.xlu0 0
  %2078 = vperm.xlu0 %2077, %v1978
  %v2079 = vpop.permute.xlu0 %2078
  %v2081 = vmul.f32 %v2059, %v2074
  %v2082 = vmul.f32 %v2060, %v2074
  %v2083 = vmul.f32 %v2061, %v2074
  %v2084 = vmul.f32 %v2062, %v2074
  %v2085 = vmul.f32 %v2063, %v2074
  %v2086 = vmul.f32 %v2064, %v2074
  %v2087 = vmul.f32 %v2065, %v2079
  %v2088 = vmul.f32 %v2066, %v2079
  %v2089 = vmul.f32 %v2067, %v2079
  %v2090 = vmul.f32 %v2068, %v2079
  %v2091 = vmul.f32 %v2069, %v2079
  %v2092 = vmul.f32 %v2070, %v2079
  %2094 = vset.pattern.permute.xlu0 0
  %2095 = vperm.xlu0 %2094, %v1979
  %v2096 = vpop.permute.xlu0 %2095
  %2099 = vset.pattern.permute.xlu0 0
  %2100 = vperm.xlu0 %2099, %v1980
  %v2101 = vpop.permute.xlu0 %2100
  %v2103 = vadd.f32 %v2081, %v2096
  %v2104 = vadd.f32 %v2082, %v2096
  %v2105 = vadd.f32 %v2083, %v2096
  %v2106 = vadd.f32 %v2084, %v2096
  %v2107 = vadd.f32 %v2085, %v2096
  %v2108 = vadd.f32 %v2086, %v2096
  %v2109 = vadd.f32 %v2087, %v2101
  %v2110 = vadd.f32 %v2088, %v2101
  %v2111 = vadd.f32 %v2089, %v2101
  %v2112 = vadd.f32 %v2090, %v2101
  %v2113 = vadd.f32 %v2091, %v2101
  %v2114 = vadd.f32 %v2092, %v2101
  %v2115 = vmax.f32 %v2103, 0.0
  %v2116 = vmax.f32 %v2104, 0.0
  %v2117 = vmax.f32 %v2105, 0.0
  %v2118 = vmax.f32 %v2106, 0.0
  %v2119 = vmax.f32 %v2107, 0.0
  %v2120 = vmax.f32 %v2108, 0.0
  %v2121 = vmax.f32 %v2109, 0.0
  %v2122 = vmax.f32 %v2110, 0.0
  %v2123 = vmax.f32 %v2111, 0.0
  %v2124 = vmax.f32 %v2112, 0.0
  %v2125 = vmax.f32 %v2113, 0.0
  %v2126 = vmax.f32 %v2114, 0.0
  %2127 = vst [vmem:[%s7 + $0xc0] sm:$0xff] %v2115
  %2128 = vst [vmem:[%s7 + $0xc8] sm:$0xff] %v2116
  %2129 = vst [vmem:[%s7 + $0xd0] sm:$0xff] %v2117
  %2130 = vst [vmem:[%s7 + $0xd8] sm:$0xff] %v2118
  %2131 = vst [vmem:[%s7 + $0xe0] sm:$0xff] %v2119
  %2132 = vst [vmem:[%s7 + $0xe8] sm:$0xff] %v2120
  %2133 = vst [vmem:[%s7 + $0xf0] sm:$0xff] %v2121
  %2134 = vst [vmem:[%s7 + $0xf8] sm:$0xff] %v2122
  %2135 = vst [vmem:[%s7 + $0x100] sm:$0xff] %v2123
  %2136 = vst [vmem:[%s7 + $0x108] sm:$0xff] %v2124
  %2137 = vst [vmem:[%s7 + $0x110] sm:$0xff] %v2125
  %2138 = vst [vmem:[%s7 + $0x118] sm:$0xff] %v2126
  %v2139 = vld [vmem:[%s3] sm:$0xff]
  %v2140 = vld [vmem:[%s3 + $0x8] sm:$0xff]
  %2143 = vrot.lane.b32.xlu0 %v2120, 19
  %v2144 = vpop.permute.xlu0 %2143
  %2145 = vrot.lane.b32.xlu0 %v2126, 19
  %v2146 = vpop.permute.xlu0 %2145
  %2159 = vrot.lane.b32.xlu0 %v2115, 19
  %v2160 = vpop.permute.xlu0 %2159
  %2161 = vrot.lane.b32.xlu0 %v2116, 19
  %v2162 = vpop.permute.xlu0 %2161
  %2163 = vrot.lane.b32.xlu0 %v2117, 19
  %v2164 = vpop.permute.xlu0 %2163
  %2165 = vrot.lane.b32.xlu0 %v2118, 19
  %v2166 = vpop.permute.xlu0 %2165
  %2167 = vrot.lane.b32.xlu0 %v2119, 19
  %v2168 = vpop.permute.xlu0 %2167
  %2169 = vrot.lane.b32.xlu0 %v2121, 19
  %v2170 = vpop.permute.xlu0 %2169
  %2171 = vrot.lane.b32.xlu0 %v2122, 19
  %v2172 = vpop.permute.xlu0 %2171
  %2173 = vrot.lane.b32.xlu0 %v2123, 19
  %v2174 = vpop.permute.xlu0 %2173
  %2175 = vrot.lane.b32.xlu0 %v2124, 19
  %v2176 = vpop.permute.xlu0 %2175
  %2177 = vrot.lane.b32.xlu0 %v2125, 19
  %v2178 = vpop.permute.xlu0 %2177
  %v2179 = vsel %vm118, %v2160, %v2162
  %v2180 = vsel %vm118, %v2162, %v2164
  %v2181 = vsel %vm118, %v2164, %v2166
  %v2182 = vsel %vm118, %v2166, %v2168
  %v2183 = vsel %vm118, %v2168, %v2144
  %v2184 = vsel %vm118, %v2170, %v2172
  %v2185 = vsel %vm118, %v2172, %v2174
  %v2186 = vsel %vm118, %v2174, %v2176
  %v2187 = vsel %vm118, %v2176, %v2178
  %v2188 = vsel %vm118, %v2178, %v2146
  %v2201 = vsel %vm118, %v2144, %v2160
  %v2202 = vsel %vm118, %v2146, %v2170
  %2205 = vrot.lane.b32.xlu0 %v2201, 126
  %v2206 = vpop.permute.xlu0 %2205
  %2207 = vrot.lane.b32.xlu0 %v2179, 126
  %v2208 = vpop.permute.xlu0 %2207
  %2209 = vrot.lane.b32.xlu0 %v2180, 126
  %v2210 = vpop.permute.xlu0 %2209
  %2211 = vrot.lane.b32.xlu0 %v2181, 126
  %v2212 = vpop.permute.xlu0 %2211
  %2213 = vrot.lane.b32.xlu0 %v2182, 126
  %v2214 = vpop.permute.xlu0 %2213
  %2215 = vrot.lane.b32.xlu0 %v2183, 126
  %v2216 = vpop.permute.xlu0 %2215
  %2217 = vrot.lane.b32.xlu0 %v2202, 126
  %v2218 = vpop.permute.xlu0 %2217
  %2219 = vrot.lane.b32.xlu0 %v2184, 126
  %v2220 = vpop.permute.xlu0 %2219
  %2221 = vrot.lane.b32.xlu0 %v2185, 126
  %v2222 = vpop.permute.xlu0 %2221
  %2223 = vrot.lane.b32.xlu0 %v2186, 126
  %v2224 = vpop.permute.xlu0 %2223
  %2225 = vrot.lane.b32.xlu0 %v2187, 126
  %v2226 = vpop.permute.xlu0 %2225
  %2227 = vrot.lane.b32.xlu0 %v2188, 126
  %v2228 = vpop.permute.xlu0 %2227
  %v2229 = vsel %vm169, %v2206, %v2208
  %v2230 = vsel %vm169, %v2208, %v2210
  %v2231 = vsel %vm169, %v2210, %v2212
  %v2232 = vsel %vm169, %v2212, %v2214
  %v2233 = vsel %vm169, %v2214, %v2216
  %v2234 = vsel %vm169, %v2218, %v2220
  %v2235 = vsel %vm169, %v2220, %v2222
  %v2236 = vsel %vm169, %v2222, %v2224
  %v2237 = vsel %vm169, %v2224, %v2226
  %v2238 = vsel %vm169, %v2226, %v2228
  %v2253 = vsel %vm169, %v2216, %v2206
  %v2254 = vsel %vm169, %v2228, %v2218
  %v2255 = vsel %vm221, %v2229, %v2201
  %v2256 = vsel %vm222, %v2230, %v2179
  %v2257 = vsel %vm223, %v2231, %v2180
  %v2258 = vsel %vm224, %v2232, %v2181
  %v2259 = vsel %vm225, %v2233, %v2182
  %v2260 = vsel %vm226, %v2253, %v2183
  %v2261 = vsel %vm221, %v2234, %v2202
  %v2262 = vsel %vm222, %v2235, %v2184
  %v2263 = vsel %vm223, %v2236, %v2185
  %v2264 = vsel %vm224, %v2237, %v2186
  %v2265 = vsel %vm225, %v2238, %v2187
  %v2266 = vsel %vm226, %v2254, %v2188
  %2269 = vrot.lane.b32.xlu0 %v2260, 2
  %v2270 = vpop.permute.xlu0 %2269
  %2271 = vrot.lane.b32.xlu0 %v2266, 2
  %v2272 = vpop.permute.xlu0 %2271
  %2285 = vrot.lane.b32.xlu0 %v2255, 2
  %v2286 = vpop.permute.xlu0 %2285
  %2287 = vrot.lane.b32.xlu0 %v2256, 2
  %v2288 = vpop.permute.xlu0 %2287
  %2289 = vrot.lane.b32.xlu0 %v2257, 2
  %v2290 = vpop.permute.xlu0 %2289
  %2291 = vrot.lane.b32.xlu0 %v2258, 2
  %v2292 = vpop.permute.xlu0 %2291
  %2293 = vrot.lane.b32.xlu0 %v2259, 2
  %v2294 = vpop.permute.xlu0 %2293
  %2295 = vrot.lane.b32.xlu0 %v2261, 2
  %v2296 = vpop.permute.xlu0 %2295
  %2297 = vrot.lane.b32.xlu0 %v2262, 2
  %v2298 = vpop.permute.xlu0 %2297
  %2299 = vrot.lane.b32.xlu0 %v2263, 2
  %v2300 = vpop.permute.xlu0 %2299
  %2301 = vrot.lane.b32.xlu0 %v2264, 2
  %v2302 = vpop.permute.xlu0 %2301
  %2303 = vrot.lane.b32.xlu0 %v2265, 2
  %v2304 = vpop.permute.xlu0 %2303
  %v2305 = vsel %vm277, %v2286, %v2288
  %v2306 = vsel %vm277, %v2288, %v2290
  %v2307 = vsel %vm277, %v2290, %v2292
  %v2308 = vsel %vm277, %v2292, %v2294
  %v2309 = vsel %vm277, %v2294, %v2270
  %v2310 = vsel %vm277, %v2296, %v2298
  %v2311 = vsel %vm277, %v2298, %v2300
  %v2312 = vsel %vm277, %v2300, %v2302
  %v2313 = vsel %vm277, %v2302, %v2304
  %v2314 = vsel %vm277, %v2304, %v2272
  %v2327 = vsel %vm277, %v2270, %v2286
  %v2328 = vsel %vm277, %v2272, %v2296
  %v2329 = vsel %vm327, %v2327, %v2255
  %v2330 = vsel %vm328, %v2305, %v2256
  %v2331 = vsel %vm329, %v2306, %v2257
  %v2332 = vsel %vm330, %v2307, %v2258
  %v2333 = vsel %vm331, %v2308, %v2259
  %v2334 = vsel %vm332, %v2309, %v2260
  %v2335 = vsel %vm327, %v2328, %v2261
  %v2336 = vsel %vm328, %v2310, %v2262
  %v2337 = vsel %vm329, %v2311, %v2263
  %v2338 = vsel %vm330, %v2312, %v2264
  %v2339 = vsel %vm331, %v2313, %v2265
  %v2340 = vsel %vm332, %v2314, %v2266
  %2353 = vrot.lane.b32.xlu0 %v2329, 92
  %v2354 = vpop.permute.xlu0 %2353
  %2355 = vrot.lane.b32.xlu0 %v2330, 92
  %v2356 = vpop.permute.xlu0 %2355
  %2357 = vrot.lane.b32.xlu0 %v2331, 92
  %v2358 = vpop.permute.xlu0 %2357
  %2359 = vrot.lane.b32.xlu0 %v2332, 92
  %v2360 = vpop.permute.xlu0 %2359
  %2361 = vrot.lane.b32.xlu0 %v2333, 92
  %v2362 = vpop.permute.xlu0 %2361
  %2363 = vrot.lane.b32.xlu0 %v2334, 92
  %v2364 = vpop.permute.xlu0 %2363
  %2365 = vrot.lane.b32.xlu0 %v2335, 92
  %v2366 = vpop.permute.xlu0 %2365
  %2367 = vrot.lane.b32.xlu0 %v2336, 92
  %v2368 = vpop.permute.xlu0 %2367
  %2369 = vrot.lane.b32.xlu0 %v2337, 92
  %v2370 = vpop.permute.xlu0 %2369
  %2371 = vrot.lane.b32.xlu0 %v2338, 92
  %v2372 = vpop.permute.xlu0 %2371
  %2373 = vrot.lane.b32.xlu0 %v2339, 92
  %v2374 = vpop.permute.xlu0 %2373
  %2375 = vrot.lane.b32.xlu0 %v2340, 92
  %v2376 = vpop.permute.xlu0 %2375
  %v2377 = vsel %vm381, %v2354, %v2356
  %v2378 = vsel %vm381, %v2356, %v2358
  %v2379 = vsel %vm381, %v2358, %v2360
  %v2380 = vsel %vm381, %v2360, %v2362
  %v2381 = vsel %vm381, %v2362, %v2364
  %v2382 = vsel %vm381, %v2366, %v2368
  %v2383 = vsel %vm381, %v2368, %v2370
  %v2384 = vsel %vm381, %v2370, %v2372
  %v2385 = vsel %vm381, %v2372, %v2374
  %v2386 = vsel %vm381, %v2374, %v2376
  %v2401 = vsel %vm381, %v2364, %v2354
  %v2402 = vsel %vm381, %v2376, %v2366
  %v2403 = vsel %vm433, %v2377, %v2329
  %v2404 = vsel %vm434, %v2378, %v2330
  %v2405 = vsel %vm435, %v2379, %v2331
  %v2406 = vsel %vm436, %v2380, %v2332
  %v2407 = vsel %vm437, %v2381, %v2333
  %v2408 = vsel %vm438, %v2401, %v2334
  %v2409 = vsel %vm433, %v2382, %v2335
  %v2410 = vsel %vm434, %v2383, %v2336
  %v2411 = vsel %vm435, %v2384, %v2337
  %v2412 = vsel %vm436, %v2385, %v2338
  %v2413 = vsel %vm437, %v2386, %v2339
  %v2414 = vsel %vm438, %v2402, %v2340
  %2417 = vrot.lane.b32.xlu0 %v2408, 36
  %v2418 = vpop.permute.xlu0 %2417
  %2419 = vrot.lane.b32.xlu0 %v2414, 36
  %v2420 = vpop.permute.xlu0 %2419
  %2433 = vrot.lane.b32.xlu0 %v2403, 36
  %v2434 = vpop.permute.xlu0 %2433
  %2435 = vrot.lane.b32.xlu0 %v2404, 36
  %v2436 = vpop.permute.xlu0 %2435
  %2437 = vrot.lane.b32.xlu0 %v2405, 36
  %v2438 = vpop.permute.xlu0 %2437
  %2439 = vrot.lane.b32.xlu0 %v2406, 36
  %v2440 = vpop.permute.xlu0 %2439
  %2441 = vrot.lane.b32.xlu0 %v2407, 36
  %v2442 = vpop.permute.xlu0 %2441
  %2443 = vrot.lane.b32.xlu0 %v2409, 36
  %v2444 = vpop.permute.xlu0 %2443
  %2445 = vrot.lane.b32.xlu0 %v2410, 36
  %v2446 = vpop.permute.xlu0 %2445
  %2447 = vrot.lane.b32.xlu0 %v2411, 36
  %v2448 = vpop.permute.xlu0 %2447
  %2449 = vrot.lane.b32.xlu0 %v2412, 36
  %v2450 = vpop.permute.xlu0 %2449
  %2451 = vrot.lane.b32.xlu0 %v2413, 36
  %v2452 = vpop.permute.xlu0 %2451
  %v2453 = vsel %vm489, %v2434, %v2436
  %v2454 = vsel %vm489, %v2436, %v2438
  %v2455 = vsel %vm489, %v2438, %v2440
  %v2456 = vsel %vm489, %v2440, %v2442
  %v2457 = vsel %vm489, %v2442, %v2418
  %v2458 = vsel %vm489, %v2444, %v2446
  %v2459 = vsel %vm489, %v2446, %v2448
  %v2460 = vsel %vm489, %v2448, %v2450
  %v2461 = vsel %vm489, %v2450, %v2452
  %v2462 = vsel %vm489, %v2452, %v2420
  %v2475 = vsel %vm489, %v2418, %v2434
  %v2476 = vsel %vm489, %v2420, %v2444
  %v2477 = vsel %vm539, %v2475, %v2403
  %v2478 = vsel %vm540, %v2453, %v2404
  %v2479 = vsel %vm541, %v2454, %v2405
  %v2480 = vsel %vm542, %v2455, %v2406
  %v2481 = vsel %vm543, %v2456, %v2407
  %v2482 = vsel %vm544, %v2457, %v2408
  %v2483 = vsel %vm539, %v2476, %v2409
  %v2484 = vsel %vm540, %v2458, %v2410
  %v2485 = vsel %vm541, %v2459, %v2411
  %v2486 = vsel %vm542, %v2460, %v2412
  %v2487 = vsel %vm543, %v2461, %v2413
  %v2488 = vsel %vm544, %v2462, %v2414
  %v2489 = vpack.c.bf16 %v2483, %v2477
  %v2490 = vpack.c.bf16 %v2484, %v2478
  %v2491 = vpack.c.bf16 %v2485, %v2479
  %v2492 = vpack.c.bf16 %v2486, %v2480
  %v2493 = vpack.c.bf16 %v2487, %v2481
  %v2494 = vpack.c.bf16 %v2488, %v2482
  %2501 = vrot.lane.b32.xlu0 %v2489, 127
  %v2502 = vpop.permute.xlu0 %2501
  %2503 = vrot.lane.b32.xlu0 %v2490, 127
  %v2504 = vpop.permute.xlu0 %2503
  %2505 = vrot.lane.b32.xlu0 %v2491, 127
  %v2506 = vpop.permute.xlu0 %2505
  %2507 = vrot.lane.b32.xlu0 %v2492, 127
  %v2508 = vpop.permute.xlu0 %2507
  %2509 = vrot.lane.b32.xlu0 %v2493, 127
  %v2510 = vpop.permute.xlu0 %2509
  %2511 = vrot.lane.b32.xlu0 %v2494, 127
  %v2512 = vpop.permute.xlu0 %2511
  %v2513 = vsel %vm581, %v2502, %v2504
  %v2514 = vsel %vm581, %v2504, %v2506
  %v2515 = vsel %vm581, %v2506, %v2508
  %v2516 = vsel %vm581, %v2508, %v2510
  %v2517 = vsel %vm581, %v2510, %v2512
  %v2525 = vsel %vm592, %v2512, %v2502
  %2527 = vrot.lane.b32.xlu0 %v2489, 126
  %v2528 = vpop.permute.xlu0 %2527
  %2529 = vrot.lane.b32.xlu0 %v2490, 126
  %v2530 = vpop.permute.xlu0 %2529
  %2531 = vrot.lane.b32.xlu0 %v2491, 126
  %v2532 = vpop.permute.xlu0 %2531
  %2533 = vrot.lane.b32.xlu0 %v2492, 126
  %v2534 = vpop.permute.xlu0 %2533
  %2535 = vrot.lane.b32.xlu0 %v2493, 126
  %v2536 = vpop.permute.xlu0 %2535
  %2537 = vrot.lane.b32.xlu0 %v2494, 126
  %v2538 = vpop.permute.xlu0 %2537
  %v2539 = vsel %vm609, %v2528, %v2530
  %v2540 = vsel %vm609, %v2530, %v2532
  %v2541 = vsel %vm609, %v2532, %v2534
  %v2542 = vsel %vm609, %v2534, %v2536
  %v2543 = vsel %vm609, %v2536, %v2538
  %v2551 = vsel %vm169, %v2538, %v2528
  %2553 = vrot.lane.b32.xlu0 %v2489, 110
  %v2554 = vpop.permute.xlu0 %2553
  %2555 = vrot.lane.b32.xlu0 %v2490, 110
  %v2556 = vpop.permute.xlu0 %2555
  %2557 = vrot.lane.b32.xlu0 %v2491, 110
  %v2558 = vpop.permute.xlu0 %2557
  %2559 = vrot.lane.b32.xlu0 %v2492, 110
  %v2560 = vpop.permute.xlu0 %2559
  %2561 = vrot.lane.b32.xlu0 %v2493, 110
  %v2562 = vpop.permute.xlu0 %2561
  %2563 = vrot.lane.b32.xlu0 %v2494, 110
  %v2564 = vpop.permute.xlu0 %2563
  %v2565 = vsel %vm636, %v2554, %v2556
  %v2566 = vsel %vm636, %v2556, %v2558
  %v2567 = vsel %vm636, %v2558, %v2560
  %v2568 = vsel %vm636, %v2560, %v2562
  %v2569 = vsel %vm636, %v2562, %v2564
  %v2577 = vsel %vm647, %v2564, %v2554
  %2579 = vrot.lane.b32.xlu0 %v2489, 109
  %v2580 = vpop.permute.xlu0 %2579
  %2581 = vrot.lane.b32.xlu0 %v2490, 109
  %v2582 = vpop.permute.xlu0 %2581
  %2583 = vrot.lane.b32.xlu0 %v2491, 109
  %v2584 = vpop.permute.xlu0 %2583
  %2585 = vrot.lane.b32.xlu0 %v2492, 109
  %v2586 = vpop.permute.xlu0 %2585
  %2587 = vrot.lane.b32.xlu0 %v2493, 109
  %v2588 = vpop.permute.xlu0 %2587
  %2589 = vrot.lane.b32.xlu0 %v2494, 109
  %v2590 = vpop.permute.xlu0 %2589
  %v2591 = vsel %vm664, %v2580, %v2582
  %v2592 = vsel %vm664, %v2582, %v2584
  %v2593 = vsel %vm664, %v2584, %v2586
  %v2594 = vsel %vm664, %v2586, %v2588
  %v2595 = vsel %vm664, %v2588, %v2590
  %v2603 = vsel %vm675, %v2590, %v2580
  %2605 = vrot.lane.b32.xlu0 %v2489, 108
  %v2606 = vpop.permute.xlu0 %2605
  %2607 = vrot.lane.b32.xlu0 %v2490, 108
  %v2608 = vpop.permute.xlu0 %2607
  %2609 = vrot.lane.b32.xlu0 %v2491, 108
  %v2610 = vpop.permute.xlu0 %2609
  %2611 = vrot.lane.b32.xlu0 %v2492, 108
  %v2612 = vpop.permute.xlu0 %2611
  %2613 = vrot.lane.b32.xlu0 %v2493, 108
  %v2614 = vpop.permute.xlu0 %2613
  %2615 = vrot.lane.b32.xlu0 %v2494, 108
  %v2616 = vpop.permute.xlu0 %2615
  %v2617 = vsel %vm692, %v2606, %v2608
  %v2618 = vsel %vm692, %v2608, %v2610
  %v2619 = vsel %vm692, %v2610, %v2612
  %v2620 = vsel %vm692, %v2612, %v2614
  %v2621 = vsel %vm692, %v2614, %v2616
  %v2629 = vsel %vm703, %v2616, %v2606
  %2631 = vrot.lane.b32.xlu0 %v2489, 92
  %v2632 = vpop.permute.xlu0 %2631
  %2633 = vrot.lane.b32.xlu0 %v2490, 92
  %v2634 = vpop.permute.xlu0 %2633
  %2635 = vrot.lane.b32.xlu0 %v2491, 92
  %v2636 = vpop.permute.xlu0 %2635
  %2637 = vrot.lane.b32.xlu0 %v2492, 92
  %v2638 = vpop.permute.xlu0 %2637
  %2639 = vrot.lane.b32.xlu0 %v2493, 92
  %v2640 = vpop.permute.xlu0 %2639
  %2641 = vrot.lane.b32.xlu0 %v2494, 92
  %v2642 = vpop.permute.xlu0 %2641
  %v2643 = vsel %vm720, %v2632, %v2634
  %v2644 = vsel %vm720, %v2634, %v2636
  %v2645 = vsel %vm720, %v2636, %v2638
  %v2646 = vsel %vm720, %v2638, %v2640
  %v2647 = vsel %vm720, %v2640, %v2642
  %v2655 = vsel %vm381, %v2642, %v2632
  %2657 = vrot.lane.b32.xlu0 %v2489, 91
  %v2658 = vpop.permute.xlu0 %2657
  %2659 = vrot.lane.b32.xlu0 %v2490, 91
  %v2660 = vpop.permute.xlu0 %2659
  %2661 = vrot.lane.b32.xlu0 %v2491, 91
  %v2662 = vpop.permute.xlu0 %2661
  %2663 = vrot.lane.b32.xlu0 %v2492, 91
  %v2664 = vpop.permute.xlu0 %2663
  %2665 = vrot.lane.b32.xlu0 %v2493, 91
  %v2666 = vpop.permute.xlu0 %2665
  %2667 = vrot.lane.b32.xlu0 %v2494, 91
  %v2668 = vpop.permute.xlu0 %2667
  %v2669 = vsel %vm747, %v2658, %v2660
  %v2670 = vsel %vm747, %v2660, %v2662
  %v2671 = vsel %vm747, %v2662, %v2664
  %v2672 = vsel %vm747, %v2664, %v2666
  %v2673 = vsel %vm747, %v2666, %v2668
  %v2681 = vsel %vm758, %v2668, %v2658
  %2683 = vrot.lane.b32.xlu0 %v2489, 90
  %v2684 = vpop.permute.xlu0 %2683
  %2685 = vrot.lane.b32.xlu0 %v2490, 90
  %v2686 = vpop.permute.xlu0 %2685
  %2687 = vrot.lane.b32.xlu0 %v2491, 90
  %v2688 = vpop.permute.xlu0 %2687
  %2689 = vrot.lane.b32.xlu0 %v2492, 90
  %v2690 = vpop.permute.xlu0 %2689
  %2691 = vrot.lane.b32.xlu0 %v2493, 90
  %v2692 = vpop.permute.xlu0 %2691
  %2693 = vrot.lane.b32.xlu0 %v2494, 90
  %v2694 = vpop.permute.xlu0 %2693
  %v2695 = vsel %vm775, %v2684, %v2686
  %v2696 = vsel %vm775, %v2686, %v2688
  %v2697 = vsel %vm775, %v2688, %v2690
  %v2698 = vsel %vm775, %v2690, %v2692
  %v2699 = vsel %vm775, %v2692, %v2694
  %v2707 = vsel %vm786, %v2694, %v2684
  %v2711 = vunpack.c.l.b16 %v2139
  %v2712 = vunpack.c.h.b16 %v2139
  %v2713 = vunpack.c.l.b16 %v2140
  %v2714 = vunpack.c.h.b16 %v2140
  %v2715 = vpack.c.b16 %v2713, %v2711
  %v2716 = vpack.c.b16 %v2714, %v2712
  %v2719 = vsel %vm818, %v2716, 0
  %2721 = vmatprep.subr.bf16.mxu0 %v2670
  %2722 = vmatpush1.bf16.msra.mxu0 %v2669
  %2723 = vmatprep.subr.bf16.mxu0 %v2644
  %2724 = vmatpush1.bf16.msra.mxu0 %v2643
  %2725 = vmatprep.subr.bf16.mxu0 %v2618
  %2726 = vmatpush1.bf16.msra.mxu0 %v2617
  %2727 = vmatprep.subr.bf16.mxu0 %v2592
  %2728 = vmatpush1.bf16.msra.mxu0 %v2591
  %2729 = vmatprep.subr.bf16.mxu0 %v2566
  %2730 = vmatpush1.bf16.msra.mxu0 %v2565
  %2731 = vmatprep.subr.bf16.mxu0 %v2540
  %2732 = vmatpush1.bf16.msra.mxu0 %v2539
  %2733 = vmatprep.subr.bf16.mxu0 %v2514
  %2734 = vmatpush1.bf16.msra.mxu0 %v2513
  %2735 = vmatprep.subr.bf16.mxu0 %v2490
  %2736 = vmatpush1.bf16.msra.mxu0 %v2489
  %2737 = vmatprep.subr.bf16.mxu0 0
  %2738 = vmatpush2.bf16.msra.mxu0 0
  %2739 = vmatprep.subr.bf16.mxu0 0
  %2740 = vmatpush2.bf16.msra.mxu0 0
  %2741 = vmatprep.subr.bf16.mxu0 0
  %2742 = vmatpush2.bf16.msra.mxu0 0
  %2743 = vmatprep.subr.bf16.mxu0 0
  %2744 = vmatpush2.bf16.msra.mxu0 0
  %2745 = vmatprep.subr.bf16.mxu0 0
  %2746 = vmatpush2.bf16.msra.mxu0 0
  %2747 = vmatprep.subr.bf16.mxu0 0
  %2748 = vmatpush2.bf16.msra.mxu0 0
  %2749 = vmatprep.subr.bf16.mxu0 0
  %2750 = vmatpush2.bf16.msra.mxu0 0
  %2751 = vmatprep.subr.bf16.mxu0 %v2696
  %2752 = vmatpush2.bf16.msra.mxu0 %v2695
  %2753 = vmatprep.mubr.bf16.mxu0 %v2719
  %2754 = vmatmul.mubr.bf16.gmra.mxu0 %v2715
  %v2755 = vpop.f32.mrf.mxu0
  %v2756 = vadd.f32 0.0, %v2755
  %v2757 = vpop.f32.mrf.mxu0
  %v2758 = vadd.f32 0.0, %v2757
  %v2759 = vpop.f32.mrf.mxu0
  %v2760 = vadd.f32 0.0, %v2759
  %v2761 = vpop.f32.mrf.mxu0
  %v2762 = vadd.f32 0.0, %v2761
  %2763 = vdwg.mxu0
  %2764 = vmatprep.subr.bf16.mxu0 %v2672
  %2765 = vmatpush1.bf16.msra.mxu0 %v2671
  %2766 = vmatprep.subr.bf16.mxu0 %v2646
  %2767 = vmatpush1.bf16.msra.mxu0 %v2645
  %2768 = vmatprep.subr.bf16.mxu0 %v2620
  %2769 = vmatpush1.bf16.msra.mxu0 %v2619
  %2770 = vmatprep.subr.bf16.mxu0 %v2594
  %2771 = vmatpush1.bf16.msra.mxu0 %v2593
  %2772 = vmatprep.subr.bf16.mxu0 %v2568
  %2773 = vmatpush1.bf16.msra.mxu0 %v2567
  %2774 = vmatprep.subr.bf16.mxu0 %v2542
  %2775 = vmatpush1.bf16.msra.mxu0 %v2541
  %2776 = vmatprep.subr.bf16.mxu0 %v2516
  %2777 = vmatpush1.bf16.msra.mxu0 %v2515
  %2778 = vmatprep.subr.bf16.mxu0 %v2492
  %2779 = vmatpush1.bf16.msra.mxu0 %v2491
  %2780 = vmatprep.subr.bf16.mxu0 0
  %2781 = vmatpush2.bf16.msra.mxu0 0
  %2782 = vmatprep.subr.bf16.mxu0 0
  %2783 = vmatpush2.bf16.msra.mxu0 0
  %2784 = vmatprep.subr.bf16.mxu0 0
  %2785 = vmatpush2.bf16.msra.mxu0 0
  %2786 = vmatprep.subr.bf16.mxu0 0
  %2787 = vmatpush2.bf16.msra.mxu0 0
  %2788 = vmatprep.subr.bf16.mxu0 0
  %2789 = vmatpush2.bf16.msra.mxu0 0
  %2790 = vmatprep.subr.bf16.mxu0 0
  %2791 = vmatpush2.bf16.msra.mxu0 0
  %2792 = vmatprep.subr.bf16.mxu0 0
  %2793 = vmatpush2.bf16.msra.mxu0 0
  %2794 = vmatprep.subr.bf16.mxu0 %v2698
  %2795 = vmatpush2.bf16.msra.mxu0 %v2697
  %2796 = vmatprep.mubr.bf16.mxu0 %v2719
  %2797 = vmatmul.mubr.bf16.gmra.mxu0 %v2715
  %v2798 = vpop.f32.mrf.mxu0
  %v2799 = vadd.f32 0.0, %v2798
  %v2800 = vpop.f32.mrf.mxu0
  %v2801 = vadd.f32 0.0, %v2800
  %v2802 = vpop.f32.mrf.mxu0
  %v2803 = vadd.f32 0.0, %v2802
  %v2804 = vpop.f32.mrf.mxu0
  %v2805 = vadd.f32 0.0, %v2804
  %2806 = vdwg.mxu0
  %2807 = vmatprep.subr.bf16.mxu0 %v2681
  %2808 = vmatpush1.bf16.msra.mxu0 %v2673
  %2809 = vmatprep.subr.bf16.mxu0 %v2655
  %2810 = vmatpush1.bf16.msra.mxu0 %v2647
  %2811 = vmatprep.subr.bf16.mxu0 %v2629
  %2812 = vmatpush1.bf16.msra.mxu0 %v2621
  %2813 = vmatprep.subr.bf16.mxu0 %v2603
  %2814 = vmatpush1.bf16.msra.mxu0 %v2595
  %2815 = vmatprep.subr.bf16.mxu0 %v2577
  %2816 = vmatpush1.bf16.msra.mxu0 %v2569
  %2817 = vmatprep.subr.bf16.mxu0 %v2551
  %2818 = vmatpush1.bf16.msra.mxu0 %v2543
  %2819 = vmatprep.subr.bf16.mxu0 %v2525
  %2820 = vmatpush1.bf16.msra.mxu0 %v2517
  %2821 = vmatprep.subr.bf16.mxu0 %v2494
  %2822 = vmatpush1.bf16.msra.mxu0 %v2493
  %2823 = vmatprep.subr.bf16.mxu0 0
  %2824 = vmatpush2.bf16.msra.mxu0 0
  %2825 = vmatprep.subr.bf16.mxu0 0
  %2826 = vmatpush2.bf16.msra.mxu0 0
  %2827 = vmatprep.subr.bf16.mxu0 0
  %2828 = vmatpush2.bf16.msra.mxu0 0
  %2829 = vmatprep.subr.bf16.mxu0 0
  %2830 = vmatpush2.bf16.msra.mxu0 0
  %2831 = vmatprep.subr.bf16.mxu0 0
  %2832 = vmatpush2.bf16.msra.mxu0 0
  %2833 = vmatprep.subr.bf16.mxu0 0
  %2834 = vmatpush2.bf16.msra.mxu0 0
  %2835 = vmatprep.subr.bf16.mxu0 0
  %2836 = vmatpush2.bf16.msra.mxu0 0
  %2837 = vmatprep.subr.bf16.mxu0 %v2707
  %2838 = vmatpush2.bf16.msra.mxu0 %v2699
  %2839 = vmatprep.mubr.bf16.mxu0 %v2719
  %2840 = vmatmul.mubr.bf16.gmra.mxu0 %v2715
  %v2841 = vpop.f32.mrf.mxu0
  %v2842 = vadd.f32 0.0, %v2841
  %v2843 = vpop.f32.mrf.mxu0
  %v2844 = vadd.f32 0.0, %v2843
  %v2845 = vpop.f32.mrf.mxu0
  %v2846 = vadd.f32 0.0, %v2845
  %v2847 = vpop.f32.mrf.mxu0
  %v2848 = vadd.f32 0.0, %v2847
  %2849 = vdwg.mxu0
  %v2850 = vadd.f32 %v883, %v1851
  %v2851 = vadd.f32 %v885, %v1853
  %v2852 = vadd.f32 %v946, %v1904
  %v2853 = vadd.f32 %v948, %v1906
  %v2854 = vadd.f32 %v1009, %v1957
  %v2855 = vadd.f32 %v1011, %v1959
  %v2856 = vadd.f32 %v887, %v1855
  %v2857 = vadd.f32 %v889, %v1857
  %v2858 = vadd.f32 %v950, %v1908
  %v2859 = vadd.f32 %v952, %v1910
  %v2860 = vadd.f32 %v1013, %v1961
  %v2861 = vadd.f32 %v1015, %v1963
  %v2862 = vadd.f32 %v2850, %v2756
  %v2863 = vadd.f32 %v2851, %v2758
  %v2864 = vadd.f32 %v2852, %v2799
  %v2865 = vadd.f32 %v2853, %v2801
  %v2866 = vadd.f32 %v2854, %v2842
  %v2867 = vadd.f32 %v2855, %v2844
  %v2868 = vadd.f32 %v2856, %v2760
  %v2869 = vadd.f32 %v2857, %v2762
  %v2870 = vadd.f32 %v2858, %v2803
  %v2871 = vadd.f32 %v2859, %v2805
  %v2872 = vadd.f32 %v2860, %v2846
  %v2873 = vadd.f32 %v2861, %v2848
  %v2874 = vld [vmem:[%s5 + $0x20] sm:$0xff]
  %v2875 = vld [vmem:[%s5 + $0x28] sm:$0xff]
  %v2876 = vld [vmem:[%s6 + $0x20] sm:$0xff]
  %v2877 = vld [vmem:[%s6 + $0x28] sm:$0xff]
  %v2878 = vmul.f32 %v2862, %v1025
  %v2879 = vmul.f32 %v2863, %v1029
  %v2880 = vmul.f32 %v2864, %v1033
  %v2881 = vmul.f32 %v2865, %v1037
  %v2882 = vmul.f32 %v2866, %v1041
  %v2883 = vmul.f32 %v2867, %v1045
  %v2884 = vmul.f32 %v2868, %v1025
  %v2885 = vmul.f32 %v2869, %v1029
  %v2886 = vmul.f32 %v2870, %v1033
  %v2887 = vmul.f32 %v2871, %v1037
  %v2888 = vmul.f32 %v2872, %v1041
  %v2889 = vmul.f32 %v2873, %v1045
  %v2890 = vadd.f32 %v2878, %v2879
  %v2891 = vadd.f32 %v2890, %v2880
  %v2892 = vadd.f32 %v2891, %v2881
  %v2893 = vadd.f32 %v2892, %v2882
  %v2894 = vadd.f32 %v2893, %v2883
  %2895 = vadd.xlane.f32.xlu0 %v2894
  %v2896 = vpop.xlane.xlu0 %2895
  %v2897 = vadd.f32 %v2884, %v2885
  %v2898 = vadd.f32 %v2897, %v2886
  %v2899 = vadd.f32 %v2898, %v2887
  %v2900 = vadd.f32 %v2899, %v2888
  %v2901 = vadd.f32 %v2900, %v2889
  %2902 = vadd.xlane.f32.xlu0 %v2901
  %v2903 = vpop.xlane.xlu0 %2902
  %v2904 = vmul.f32 %v2878, %v2878
  %v2905 = vmul.f32 %v2879, %v2879
  %v2906 = vmul.f32 %v2880, %v2880
  %v2907 = vmul.f32 %v2881, %v2881
  %v2908 = vmul.f32 %v2882, %v2882
  %v2909 = vmul.f32 %v2883, %v2883
  %v2910 = vmul.f32 %v2884, %v2884
  %v2911 = vmul.f32 %v2885, %v2885
  %v2912 = vmul.f32 %v2886, %v2886
  %v2913 = vmul.f32 %v2887, %v2887
  %v2914 = vmul.f32 %v2888, %v2888
  %v2915 = vmul.f32 %v2889, %v2889
  %v2916 = vadd.f32 %v2904, %v2905
  %v2917 = vadd.f32 %v2916, %v2906
  %v2918 = vadd.f32 %v2917, %v2907
  %v2919 = vadd.f32 %v2918, %v2908
  %v2920 = vadd.f32 %v2919, %v2909
  %2921 = vadd.xlane.f32.xlu0 %v2920
  %v2922 = vpop.xlane.xlu0 %2921
  %v2923 = vadd.f32 %v2910, %v2911
  %v2924 = vadd.f32 %v2923, %v2912
  %v2925 = vadd.f32 %v2924, %v2913
  %v2926 = vadd.f32 %v2925, %v2914
  %v2927 = vadd.f32 %v2926, %v2915
  %2928 = vadd.xlane.f32.xlu0 %v2927
  %v2929 = vpop.xlane.xlu0 %2928
  %v2930 = vmul.f32 %v2896, 0.001953125
  %v2931 = vmul.f32 %v2903, 0.001953125
  %v2932 = vmul.f32 %v2922, 0.001953125
  %v2933 = vmul.f32 %v2929, 0.001953125
  %v2934 = vmul.f32 %v2930, %v2930
  %v2935 = vmul.f32 %v2931, %v2931
  %v2936 = vsub.f32 %v2932, %v2934
  %v2937 = vsub.f32 %v2933, %v2935
  %v2938 = vmax.f32 %v2936, 0.0
  %v2939 = vmax.f32 %v2937, 0.0
  %v2940 = vsub.f32 %v2862, %v2930
  %v2941 = vsub.f32 %v2863, %v2930
  %v2942 = vsub.f32 %v2864, %v2930
  %v2943 = vsub.f32 %v2865, %v2930
  %v2944 = vsub.f32 %v2866, %v2930
  %v2945 = vsub.f32 %v2867, %v2930
  %v2946 = vsub.f32 %v2868, %v2931
  %v2947 = vsub.f32 %v2869, %v2931
  %v2948 = vsub.f32 %v2870, %v2931
  %v2949 = vsub.f32 %v2871, %v2931
  %v2950 = vsub.f32 %v2872, %v2931
  %v2951 = vsub.f32 %v2873, %v2931
  %v2952 = vadd.f32 %v2938, 1e-05
  %v2953 = vadd.f32 %v2939, 1e-05
  %v2954 = vrsqrt.pop %v2952
  %v2955 = vrsqrt.pop %v2953
  %v2956 = vmul.f32 %v2940, %v2954
  %v2957 = vmul.f32 %v2941, %v2954
  %v2958 = vmul.f32 %v2942, %v2954
  %v2959 = vmul.f32 %v2943, %v2954
  %v2960 = vmul.f32 %v2944, %v2954
  %v2961 = vmul.f32 %v2945, %v2954
  %v2962 = vmul.f32 %v2946, %v2955
  %v2963 = vmul.f32 %v2947, %v2955
  %v2964 = vmul.f32 %v2948, %v2955
  %v2965 = vmul.f32 %v2949, %v2955
  %v2966 = vmul.f32 %v2950, %v2955
  %v2967 = vmul.f32 %v2951, %v2955
  %2969 = vset.pattern.permute.xlu0 0
  %2970 = vperm.xlu0 %2969, %v2874
  %v2971 = vpop.permute.xlu0 %2970
  %2974 = vset.pattern.permute.xlu0 0
  %2975 = vperm.xlu0 %2974, %v2875
  %v2976 = vpop.permute.xlu0 %2975
  %v2978 = vmul.f32 %v2956, %v2971
  %v2979 = vmul.f32 %v2957, %v2971
  %v2980 = vmul.f32 %v2958, %v2971
  %v2981 = vmul.f32 %v2959, %v2971
  %v2982 = vmul.f32 %v2960, %v2971
  %v2983 = vmul.f32 %v2961, %v2971
  %v2984 = vmul.f32 %v2962, %v2976
  %v2985 = vmul.f32 %v2963, %v2976
  %v2986 = vmul.f32 %v2964, %v2976
  %v2987 = vmul.f32 %v2965, %v2976
  %v2988 = vmul.f32 %v2966, %v2976
  %v2989 = vmul.f32 %v2967, %v2976
  %2991 = vset.pattern.permute.xlu0 0
  %2992 = vperm.xlu0 %2991, %v2876
  %v2993 = vpop.permute.xlu0 %2992
  %2996 = vset.pattern.permute.xlu0 0
  %2997 = vperm.xlu0 %2996, %v2877
  %v2998 = vpop.permute.xlu0 %2997
  %v3000 = vadd.f32 %v2978, %v2993
  %v3001 = vadd.f32 %v2979, %v2993
  %v3002 = vadd.f32 %v2980, %v2993
  %v3003 = vadd.f32 %v2981, %v2993
  %v3004 = vadd.f32 %v2982, %v2993
  %v3005 = vadd.f32 %v2983, %v2993
  %v3006 = vadd.f32 %v2984, %v2998
  %v3007 = vadd.f32 %v2985, %v2998
  %v3008 = vadd.f32 %v2986, %v2998
  %v3009 = vadd.f32 %v2987, %v2998
  %v3010 = vadd.f32 %v2988, %v2998
  %v3011 = vadd.f32 %v2989, %v2998
  %v3012 = vmax.f32 %v3000, 0.0
  %v3013 = vmax.f32 %v3001, 0.0
  %v3014 = vmax.f32 %v3002, 0.0
  %v3015 = vmax.f32 %v3003, 0.0
  %v3016 = vmax.f32 %v3004, 0.0
  %v3017 = vmax.f32 %v3005, 0.0
  %v3018 = vmax.f32 %v3006, 0.0
  %v3019 = vmax.f32 %v3007, 0.0
  %v3020 = vmax.f32 %v3008, 0.0
  %v3021 = vmax.f32 %v3009, 0.0
  %v3022 = vmax.f32 %v3010, 0.0
  %v3023 = vmax.f32 %v3011, 0.0
  %3024 = vst [vmem:[%s7 + $0x120] sm:$0xff] %v3012
  %3025 = vst [vmem:[%s7 + $0x128] sm:$0xff] %v3013
  %3026 = vst [vmem:[%s7 + $0x130] sm:$0xff] %v3014
  %3027 = vst [vmem:[%s7 + $0x138] sm:$0xff] %v3015
  %3028 = vst [vmem:[%s7 + $0x140] sm:$0xff] %v3016
  %3029 = vst [vmem:[%s7 + $0x148] sm:$0xff] %v3017
  %3030 = vst [vmem:[%s7 + $0x150] sm:$0xff] %v3018
  %3031 = vst [vmem:[%s7 + $0x158] sm:$0xff] %v3019
  %3032 = vst [vmem:[%s7 + $0x160] sm:$0xff] %v3020
  %3033 = vst [vmem:[%s7 + $0x168] sm:$0xff] %v3021
  %3034 = vst [vmem:[%s7 + $0x170] sm:$0xff] %v3022
  %3035 = vst [vmem:[%s7 + $0x178] sm:$0xff] %v3023
  // Predicated region
  $region30: #{dense_block_forward.1} parent=0 // pred_check
    _
  $region31: #{dense_block_forward.1} parent=0 // pred_check_branch
    %3037 = sbr.rel (0) target = $region33
  $region32: #{dense_block_forward.1} parent=0 // pred_region
    _
  $region33: #{dense_block_forward.1} parent=0 // pred_fallthru
    _
  // Predicated region
  $region34: #{dense_block_forward.1} parent=0 // pred_check
    _
  $region35: #{dense_block_forward.1} parent=0 // pred_check_branch
    %3039 = sbr.rel (0) target = $region37
  $region36: #{dense_block_forward.1} parent=0 // pred_region
    _
  $region37: #{dense_block_forward.1} parent=0 // pred_fallthru
    _

</llo_original>
